<compile_context>
chip_gen: v5e
topology: v5e:2x2
jax: 0.10.0
libtpu: 0.0.40
codegen_flags: <defaults>
</compile_context>

<pallas_src>
import functools
import math

import jax
import jax.numpy as jnp
from jax.experimental import pallas as pl
from jax.experimental.pallas import tpu as pltpu

SELU_ALPHA = 1.6732632423543772
SELU_SCALE = 1.0507009873554805


def _selu(x):
    # scale * (max(0,x) + min(0, alpha*(exp(x)-1))), computed NaN/overflow-safe.
    neg = SELU_ALPHA * (jnp.exp(jnp.minimum(x, 0.0)) - 1.0)
    return SELU_SCALE * jnp.where(x > 0, x, neg)


def _conv_mm_kernel(w_ref, p_ref, b_ref, o_ref, *, apply_selu):
    """One output tile of conv-as-matmul with fused bias (+ SELU).

    w_ref : (Cout, Cin*K*K)      VMEM  reshaped conv weight (grid-invariant)
    p_ref : (1, Cin*K*K, TS)     VMEM  im2col patches, lane axis = spatial tile
    b_ref : (Cout, 1)            VMEM  bias (broadcast over lanes)
    o_ref : (1, Cout, TS)        VMEM  output tile
    """
    acc = jnp.dot(w_ref[...], p_ref[0], preferred_element_type=jnp.float32)
    acc = acc + b_ref[...]
    if apply_selu:
        acc = _selu(acc)
    o_ref[0] = acc.astype(o_ref.dtype)


def conv2d_same(x, w, b, *, apply_selu=False, spatial_tile=512):
    """'Same'-padded, stride-1 Conv2d (PyTorch cross-correlation convention)
    executed by a Pallas matmul kernel with fused bias + optional SELU."""
    B, Cin, H, W = x.shape
    Cout, Cin2, K, K2 = w.shape
    assert Cin == Cin2 and K == K2
    pad = K // 2

    xp = jnp.pad(x, ((0, 0), (0, 0), (pad, pad), (pad, pad))) if pad > 0 else x

    # im2col (zero-FLOP layout op, kept in XLA): (B, Cin*K*K, H*W).
    cols = [xp[:, :, ky:ky + H, kx:kx + W] for ky in range(K) for kx in range(K)]
    pat = jnp.stack(cols, axis=2).reshape(B, Cin * K * K, H * W).astype(jnp.float32)
    wm = w.reshape(Cout, Cin * K * K).astype(jnp.float32)
    bm = b.reshape(Cout, 1).astype(jnp.float32)

    CKK = Cin * K * K
    S = H * W
    TS = min(spatial_tile, S)               # lane-dense tile (multiple of 128 when tiled)
    n_tiles = pl.cdiv(S, TS)
    S_pad = n_tiles * TS
    if S_pad != S:
        pat = jnp.pad(pat, ((0, 0), (0, 0), (0, S_pad - S)))

    kernel = functools.partial(_conv_mm_kernel, apply_selu=apply_selu)
    out = pl.pallas_call(
        kernel,
        out_shape=jax.ShapeDtypeStruct((B, Cout, S_pad), jnp.float32),
        grid=(B, n_tiles),
        in_specs=[
            pl.BlockSpec((Cout, CKK), lambda bb, j: (0, 0)),      # weight (whole)
            pl.BlockSpec((1, CKK, TS), lambda bb, j: (bb, 0, j)),  # patches tile
            pl.BlockSpec((Cout, 1), lambda bb, j: (0, 0)),         # bias (whole)
        ],
        out_specs=pl.BlockSpec((1, Cout, TS), lambda bb, j: (bb, 0, j)),
        compiler_params=pltpu.CompilerParams(
            dimension_semantics=("parallel", "parallel"),
            vmem_limit_bytes=32 * 1024 * 1024,
        ),
    )(wm, pat, bm)

    return out[:, :, :S].reshape(B, Cout, H, W)


def _interpolate_nearest(x, out_h, out_w):
    """F.interpolate(x, (out_h, out_w)) with the default 'nearest' mode
    (src = floor(dst * in/out)). Pure gather; kept in XLA."""
    B, C, H, W = x.shape
    idx_h = jnp.floor(jnp.arange(out_h, dtype=jnp.float32) * (H / out_h)).astype(jnp.int32)
    idx_w = jnp.floor(jnp.arange(out_w, dtype=jnp.float32) * (W / out_w)).astype(jnp.int32)
    idx_h = jnp.clip(idx_h, 0, H - 1)
    idx_w = jnp.clip(idx_w, 0, W - 1)
    x = jnp.take(x, idx_h, axis=2)
    x = jnp.take(x, idx_w, axis=3)
    return x


def res_block_forward(x, p):
    """ResBlock.forward: selu(cat(conv2(selu(conv1(x))),
                                  up(conv4(selu(conv3(down(x))))),
                                  skip(x))).
    The trailing SELU is fused into the last conv of each branch."""
    B, C, H, W = x.shape
    # high-resolution branch
    t = conv2d_same(x, p["conv1_w"], p["conv1_b"], apply_selu=True)
    fx = conv2d_same(t, p["conv2_w"], p["conv2_b"], apply_selu=True)
    # low-resolution branch
    lx = _interpolate_nearest(x, H // 4, W // 4)
    lx = conv2d_same(lx, p["conv3_w"], p["conv3_b"], apply_selu=True)
    lx = conv2d_same(lx, p["conv4_w"], p["conv4_b"], apply_selu=True)
    lx = _interpolate_nearest(lx, H, W)
    # skip branch
    skip = conv2d_same(x, p["skip_w"], p["skip_b"], apply_selu=True)
    # channel concat (layout op, XLA)
    return jnp.concatenate([fx, lx, skip], axis=1)


def residual_network_forward(x, params):
    x = conv2d_same(x, params["begin_w"], params["begin_b"], apply_selu=False)
    for bp in params["blocks"]:
        x = res_block_forward(x, bp)
    x = conv2d_same(x, params["head_w"], params["head_b"], apply_selu=False)
    return x[:, 0]          # .squeeze(1)


# ---------------------------------------------------------------------------
# Parameter construction (PyTorch Conv2d default init: U(-1/sqrt(fan_in), +))
# ---------------------------------------------------------------------------
def _conv_init(key, cout, cin, k):
    kw, kb = jax.random.split(key)
    bound = 1.0 / math.sqrt(cin * k * k)
    w = jax.random.uniform(kw, (cout, cin, k, k), jnp.float32, -bound, bound)
    b = jax.random.uniform(kb, (cout,), jnp.float32, -bound, bound)
    return w, b


def init_params(key, layers=6, in_ch=12):
    keys = jax.random.split(key, 2 + layers)
    params = {}
    params["begin_w"], params["begin_b"] = _conv_init(keys[0], in_ch, in_ch, 1)
    blocks = []
    for i in range(layers):
        ks = jax.random.split(keys[2 + i], 5)
        bp = {}
        bp["conv1_w"], bp["conv1_b"] = _conv_init(ks[0], in_ch, in_ch, 7)
        bp["conv2_w"], bp["conv2_b"] = _conv_init(ks[1], in_ch // 3, in_ch, 5)
        bp["conv3_w"], bp["conv3_b"] = _conv_init(ks[2], in_ch, in_ch, 7)
        bp["conv4_w"], bp["conv4_b"] = _conv_init(ks[3], in_ch // 3, in_ch, 5)
        bp["skip_w"], bp["skip_b"] = _conv_init(ks[4], in_ch // 3, in_ch, 1)
        blocks.append(bp)
    params["blocks"] = blocks
    params["head_w"], params["head_b"] = _conv_init(keys[1], 1, in_ch, 3)
    return params


if __name__ == "__main__":
    key = jax.random.PRNGKey(0)
    k_x, k_p = jax.random.split(key)

    # ResidualNetwork expects 12 input channels; small deterministic test shape.
    B, C, H, W = 2, 12, 16, 16
    x = jax.random.normal(k_x, (B, C, H, W), dtype=jnp.float32)
    params = init_params(k_p, layers=6, in_ch=C)

    fwd = jax.jit(residual_network_forward)
    out = jax.block_until_ready(fwd(x, params))

    assert out.shape == (B, H, W), out.shape
    assert bool(jnp.all(jnp.isfinite(out)))
    print("KERNEL_OK")
</pallas_src>

<mosaic_0001>
module attributes {stable_mosaic.version = 11 : i64} {
  func.func @_conv_mm_kernel(%arg0: i32, %arg1: i32, %arg2: memref<12x12xf32, #tpu.memory_space<vmem>>, %arg3: memref<1x12x256xf32, #tpu.memory_space<vmem>>, %arg4: memref<12x1xf32, #tpu.memory_space<vmem>>, %arg5: memref<1x12x256xf32, #tpu.memory_space<vmem>>) attributes {dimension_semantics = [#tpu.dimension_semantics<parallel>, #tpu.dimension_semantics<parallel>], iteration_bounds = array<i64: 2, 1>, scalar_prefetch = 0 : i64, scratch_operands = 0 : i64, tpu.core_type = #tpu.core_type<tc>, window_params = [{pipeline_mode = #tpu.pipeline_mode<synchronous>, transform_indices = @transform_0, window_bounds = array<i64: 12, 12>}, {transform_indices = @transform_1, window_bounds = array<i64: 1, 12, 256>}, {pipeline_mode = #tpu.pipeline_mode<synchronous>, transform_indices = @transform_2, window_bounds = array<i64: 12, 1>}, {transform_indices = @transform_3, window_bounds = array<i64: 1, 12, 256>}]} {
    %c0 = arith.constant 0 : index
    %c0_0 = arith.constant 0 : index
    %0 = vector.load %arg2[%c0, %c0_0] : memref<12x12xf32, #tpu.memory_space<vmem>>, vector<12x12xf32>
    %c0_1 = arith.constant 0 : index
    %c0_2 = arith.constant 0 : index
    %c0_3 = arith.constant 0 : index
    %1 = vector.load %arg3[%c0_1, %c0_2, %c0_3] : memref<1x12x256xf32, #tpu.memory_space<vmem>>, vector<1x12x256xf32>
    %2 = vector.shape_cast %1 : vector<1x12x256xf32> to vector<12x256xf32>
    %cst = arith.constant dense<0.000000e+00> : vector<12x256xf32>
    %3 = tpu.matmul %0, %2, %cst {dimension_numbers = #tpu.dot_dimension_numbers<[1], [0], [0], [1], [0, 0, 1, 1], [], []>} : vector<12x12xf32>, vector<12x256xf32>, vector<12x256xf32> -> vector<12x256xf32>
    %c0_4 = arith.constant 0 : index
    %c0_5 = arith.constant 0 : index
    %4 = vector.load %arg4[%c0_4, %c0_5] : memref<12x1xf32, #tpu.memory_space<vmem>>, vector<12x1xf32>
    %5 = vector.broadcast %4 : vector<12x1xf32> to vector<12x256xf32>
    %6 = arith.addf %3, %5 : vector<12x256xf32>
    %c0_6 = arith.constant 0 : index
    %c0_7 = arith.constant 0 : index
    %c0_8 = arith.constant 0 : index
    %7 = vector.load %arg5[%c0_6, %c0_7, %c0_8] : memref<1x12x256xf32, #tpu.memory_space<vmem>>, vector<1x12x256xf32>
    %8 = vector.shape_cast %7 : vector<1x12x256xf32> to vector<12x256xf32>
    %9 = vector.shape_cast %6 : vector<12x256xf32> to vector<1x12x256xf32>
    tpu.vector_store %arg5[%c0_6, %c0_7, %c0_8], %9 {strides = array<i32>} : memref<1x12x256xf32, #tpu.memory_space<vmem>>, vector<1x12x256xf32>,
    return
  }
  func.func @transform_0(%arg0: i32, %arg1: i32) -> (i32, i32) {
    %c0_i32 = arith.constant 0 : i32
    %c0_i32_0 = arith.constant 0 : i32
    %c0_i32_1 = arith.constant 0 : i32
    return %c0_i32, %c0_i32_0 : i32, i32
  }
  func.func @transform_1(%arg0: i32, %arg1: i32) -> (i32, i32, i32) {
    %c0_i32 = arith.constant 0 : i32
    %c0_i32_0 = arith.constant 0 : i32
    return %arg0, %c0_i32, %arg1 : i32, i32, i32
  }
  func.func @transform_2(%arg0: i32, %arg1: i32) -> (i32, i32) {
    %c0_i32 = arith.constant 0 : i32
    %c0_i32_0 = arith.constant 0 : i32
    %c0_i32_1 = arith.constant 0 : i32
    return %c0_i32, %c0_i32_0 : i32, i32
  }
  func.func @transform_3(%arg0: i32, %arg1: i32) -> (i32, i32, i32) {
    %c0_i32 = arith.constant 0 : i32
    %c0_i32_0 = arith.constant 0 : i32
    return %arg0, %c0_i32, %arg1 : i32, i32, i32
  }
}

module attributes {stable_mosaic.version = 11 : i64} {
  func.func @_conv_mm_kernel(%arg0: i32, %arg1: i32, %arg2: memref<12x588xf32, #tpu.memory_space<vmem>>, %arg3: memref<1x588x256xf32, #tpu.memory_space<vmem>>, %arg4: memref<12x1xf32, #tpu.memory_space<vmem>>, %arg5: memref<1x12x256xf32, #tpu.memory_space<vmem>>) attributes {dimension_semantics = [#tpu.dimension_semantics<parallel>, #tpu.dimension_semantics<parallel>], iteration_bounds = array<i64: 2, 1>, scalar_prefetch = 0 : i64, scratch_operands = 0 : i64, tpu.core_type = #tpu.core_type<tc>, window_params = [{pipeline_mode = #tpu.pipeline_mode<synchronous>, transform_indices = @transform_0, window_bounds = array<i64: 12, 588>}, {transform_indices = @transform_1, window_bounds = array<i64: 1, 588, 256>}, {pipeline_mode = #tpu.pipeline_mode<synchronous>, transform_indices = @transform_2, window_bounds = array<i64: 12, 1>}, {transform_indices = @transform_3, window_bounds = array<i64: 1, 12, 256>}]} {
    %c0 = arith.constant 0 : index
    %c0_0 = arith.constant 0 : index
    %0 = vector.load %arg2[%c0, %c0_0] : memref<12x588xf32, #tpu.memory_space<vmem>>, vector<12x588xf32>
    %c0_1 = arith.constant 0 : index
    %c0_2 = arith.constant 0 : index
    %c0_3 = arith.constant 0 : index
    %1 = vector.load %arg3[%c0_1, %c0_2, %c0_3] : memref<1x588x256xf32, #tpu.memory_space<vmem>>, vector<1x588x256xf32>
    %2 = vector.shape_cast %1 : vector<1x588x256xf32> to vector<588x256xf32>
    %cst = arith.constant dense<0.000000e+00> : vector<12x256xf32>
    %3 = tpu.matmul %0, %2, %cst {dimension_numbers = #tpu.dot_dimension_numbers<[1], [0], [0], [1], [0, 0, 1, 1], [], []>} : vector<12x588xf32>, vector<588x256xf32>, vector<12x256xf32> -> vector<12x256xf32>
    %c0_4 = arith.constant 0 : index
    %c0_5 = arith.constant 0 : index
    %4 = vector.load %arg4[%c0_4, %c0_5] : memref<12x1xf32, #tpu.memory_space<vmem>>, vector<12x1xf32>
    %5 = vector.broadcast %4 : vector<12x1xf32> to vector<12x256xf32>
    %6 = arith.addf %3, %5 : vector<12x256xf32>
    %cst_6 = arith.constant 0.000000e+00 : f32
    %7 = vector.broadcast %cst_6 : f32 to vector<12x256xf32>
    %8 = arith.minimumf %6, %7 : vector<12x256xf32>
    %9 = math.exp %8 : vector<12x256xf32>
    %cst_7 = arith.constant 1.000000e+00 : f32
    %10 = vector.broadcast %cst_7 : f32 to vector<12x256xf32>
    %11 = arith.subf %9, %10 : vector<12x256xf32>
    %cst_8 = arith.constant 1.67326319 : f32
    %12 = vector.broadcast %cst_8 : f32 to vector<12x256xf32>
    %13 = arith.mulf %12, %11 : vector<12x256xf32>
    %cst_9 = arith.constant 0.000000e+00 : f32
    %14 = vector.broadcast %cst_9 : f32 to vector<12x256xf32>
    %15 = arith.cmpf ogt, %6, %14 : vector<12x256xf32>
    %16 = arith.select %15, %6, %13 : vector<12x256xi1>, vector<12x256xf32>
    %cst_10 = arith.constant 1.05070102 : f32
    %17 = vector.broadcast %cst_10 : f32 to vector<12x256xf32>
    %18 = arith.mulf %17, %16 : vector<12x256xf32>
    %c0_11 = arith.constant 0 : index
    %c0_12 = arith.constant 0 : index
    %c0_13 = arith.constant 0 : index
    %19 = vector.load %arg5[%c0_11, %c0_12, %c0_13] : memref<1x12x256xf32, #tpu.memory_space<vmem>>, vector<1x12x256xf32>
    %20 = vector.shape_cast %19 : vector<1x12x256xf32> to vector<12x256xf32>
    %21 = vector.shape_cast %18 : vector<12x256xf32> to vector<1x12x256xf32>
    tpu.vector_store %arg5[%c0_11, %c0_12, %c0_13], %21 {strides = array<i32>} : memref<1x12x256xf32, #tpu.memory_space<vmem>>, vector<1x12x256xf32>,
    return
  }
  func.func @transform_0(%arg0: i32, %arg1: i32) -> (i32, i32) {
    %c0_i32 = arith.constant 0 : i32
    %c0_i32_0 = arith.constant 0 : i32
    %c0_i32_1 = arith.constant 0 : i32
    return %c0_i32, %c0_i32_0 : i32, i32
  }
  func.func @transform_1(%arg0: i32, %arg1: i32) -> (i32, i32, i32) {
    %c0_i32 = arith.constant 0 : i32
    %c0_i32_0 = arith.constant 0 : i32
    return %arg0, %c0_i32, %arg1 : i32, i32, i32
  }
  func.func @transform_2(%arg0: i32, %arg1: i32) -> (i32, i32) {
    %c0_i32 = arith.constant 0 : i32
    %c0_i32_0 = arith.constant 0 : i32
    %c0_i32_1 = arith.constant 0 : i32
    return %c0_i32, %c0_i32_0 : i32, i32
  }
  func.func @transform_3(%arg0: i32, %arg1: i32) -> (i32, i32, i32) {
    %c0_i32 = arith.constant 0 : i32
    %c0_i32_0 = arith.constant 0 : i32
    return %arg0, %c0_i32, %arg1 : i32, i32, i32
  }
}

module attributes {stable_mosaic.version = 11 : i64} {
  func.func @_conv_mm_kernel(%arg0: i32, %arg1: i32, %arg2: memref<4x300xf32, #tpu.memory_space<vmem>>, %arg3: memref<1x300x256xf32, #tpu.memory_space<vmem>>, %arg4: memref<4x1xf32, #tpu.memory_space<vmem>>, %arg5: memref<1x4x256xf32, #tpu.memory_space<vmem>>) attributes {dimension_semantics = [#tpu.dimension_semantics<parallel>, #tpu.dimension_semantics<parallel>], iteration_bounds = array<i64: 2, 1>, scalar_prefetch = 0 : i64, scratch_operands = 0 : i64, tpu.core_type = #tpu.core_type<tc>, window_params = [{pipeline_mode = #tpu.pipeline_mode<synchronous>, transform_indices = @transform_0, window_bounds = array<i64: 4, 300>}, {transform_indices = @transform_1, window_bounds = array<i64: 1, 300, 256>}, {pipeline_mode = #tpu.pipeline_mode<synchronous>, transform_indices = @transform_2, window_bounds = array<i64: 4, 1>}, {transform_indices = @transform_3, window_bounds = array<i64: 1, 4, 256>}]} {
    %c0 = arith.constant 0 : index
    %c0_0 = arith.constant 0 : index
    %0 = vector.load %arg2[%c0, %c0_0] : memref<4x300xf32, #tpu.memory_space<vmem>>, vector<4x300xf32>
    %c0_1 = arith.constant 0 : index
    %c0_2 = arith.constant 0 : index
    %c0_3 = arith.constant 0 : index
    %1 = vector.load %arg3[%c0_1, %c0_2, %c0_3] : memref<1x300x256xf32, #tpu.memory_space<vmem>>, vector<1x300x256xf32>
    %2 = vector.shape_cast %1 : vector<1x300x256xf32> to vector<300x256xf32>
    %cst = arith.constant dense<0.000000e+00> : vector<4x256xf32>
    %3 = tpu.matmul %0, %2, %cst {dimension_numbers = #tpu.dot_dimension_numbers<[1], [0], [0], [1], [0, 0, 1, 1], [], []>} : vector<4x300xf32>, vector<300x256xf32>, vector<4x256xf32> -> vector<4x256xf32>
    %c0_4 = arith.constant 0 : index
    %c0_5 = arith.constant 0 : index
    %4 = vector.load %arg4[%c0_4, %c0_5] : memref<4x1xf32, #tpu.memory_space<vmem>>, vector<4x1xf32>
    %5 = vector.broadcast %4 : vector<4x1xf32> to vector<4x256xf32>
    %6 = arith.addf %3, %5 : vector<4x256xf32>
    %cst_6 = arith.constant 0.000000e+00 : f32
    %7 = vector.broadcast %cst_6 : f32 to vector<4x256xf32>
    %8 = arith.minimumf %6, %7 : vector<4x256xf32>
    %9 = math.exp %8 : vector<4x256xf32>
    %cst_7 = arith.constant 1.000000e+00 : f32
    %10 = vector.broadcast %cst_7 : f32 to vector<4x256xf32>
    %11 = arith.subf %9, %10 : vector<4x256xf32>
    %cst_8 = arith.constant 1.67326319 : f32
    %12 = vector.broadcast %cst_8 : f32 to vector<4x256xf32>
    %13 = arith.mulf %12, %11 : vector<4x256xf32>
    %cst_9 = arith.constant 0.000000e+00 : f32
    %14 = vector.broadcast %cst_9 : f32 to vector<4x256xf32>
    %15 = arith.cmpf ogt, %6, %14 : vector<4x256xf32>
    %16 = arith.select %15, %6, %13 : vector<4x256xi1>, vector<4x256xf32>
    %cst_10 = arith.constant 1.05070102 : f32
    %17 = vector.broadcast %cst_10 : f32 to vector<4x256xf32>
    %18 = arith.mulf %17, %16 : vector<4x256xf32>
    %c0_11 = arith.constant 0 : index
    %c0_12 = arith.constant 0 : index
    %c0_13 = arith.constant 0 : index
    %19 = vector.load %arg5[%c0_11, %c0_12, %c0_13] : memref<1x4x256xf32, #tpu.memory_space<vmem>>, vector<1x4x256xf32>
    %20 = vector.shape_cast %19 : vector<1x4x256xf32> to vector<4x256xf32>
    %21 = vector.shape_cast %18 : vector<4x256xf32> to vector<1x4x256xf32>
    tpu.vector_store %arg5[%c0_11, %c0_12, %c0_13], %21 {strides = array<i32>} : memref<1x4x256xf32, #tpu.memory_space<vmem>>, vector<1x4x256xf32>,
    return
  }
  func.func @transform_0(%arg0: i32, %arg1: i32) -> (i32, i32) {
    %c0_i32 = arith.constant 0 : i32
    %c0_i32_0 = arith.constant 0 : i32
    %c0_i32_1 = arith.constant 0 : i32
    return %c0_i32, %c0_i32_0 : i32, i32
  }
  func.func @transform_1(%arg0: i32, %arg1: i32) -> (i32, i32, i32) {
    %c0_i32 = arith.constant 0 : i32
    %c0_i32_0 = arith.constant 0 : i32
    return %arg0, %c0_i32, %arg1 : i32, i32, i32
  }
  func.func @transform_2(%arg0: i32, %arg1: i32) -> (i32, i32) {
    %c0_i32 = arith.constant 0 : i32
    %c0_i32_0 = arith.constant 0 : i32
    %c0_i32_1 = arith.constant 0 : i32
    return %c0_i32, %c0_i32_0 : i32, i32
  }
  func.func @transform_3(%arg0: i32, %arg1: i32) -> (i32, i32, i32) {
    %c0_i32 = arith.constant 0 : i32
    %c0_i32_0 = arith.constant 0 : i32
    return %arg0, %c0_i32, %arg1 : i32, i32, i32
  }
}

module attributes {stable_mosaic.version = 11 : i64} {
  func.func @_conv_mm_kernel(%arg0: i32, %arg1: i32, %arg2: memref<12x588xf32, #tpu.memory_space<vmem>>, %arg3: memref<1x588x16xf32, #tpu.memory_space<vmem>>, %arg4: memref<12x1xf32, #tpu.memory_space<vmem>>, %arg5: memref<1x12x16xf32, #tpu.memory_space<vmem>>) attributes {dimension_semantics = [#tpu.dimension_semantics<parallel>, #tpu.dimension_semantics<parallel>], iteration_bounds = array<i64: 2, 1>, scalar_prefetch = 0 : i64, scratch_operands = 0 : i64, tpu.core_type = #tpu.core_type<tc>, window_params = [{pipeline_mode = #tpu.pipeline_mode<synchronous>, transform_indices = @transform_0, window_bounds = array<i64: 12, 588>}, {transform_indices = @transform_1, window_bounds = array<i64: 1, 588, 16>}, {pipeline_mode = #tpu.pipeline_mode<synchronous>, transform_indices = @transform_2, window_bounds = array<i64: 12, 1>}, {transform_indices = @transform_3, window_bounds = array<i64: 1, 12, 16>}]} {
    %c0 = arith.constant 0 : index
    %c0_0 = arith.constant 0 : index
    %0 = vector.load %arg2[%c0, %c0_0] : memref<12x588xf32, #tpu.memory_space<vmem>>, vector<12x588xf32>
    %c0_1 = arith.constant 0 : index
    %c0_2 = arith.constant 0 : index
    %c0_3 = arith.constant 0 : index
    %1 = vector.load %arg3[%c0_1, %c0_2, %c0_3] : memref<1x588x16xf32, #tpu.memory_space<vmem>>, vector<1x588x16xf32>
    %2 = vector.shape_cast %1 : vector<1x588x16xf32> to vector<588x16xf32>
    %cst = arith.constant dense<0.000000e+00> : vector<12x16xf32>
    %3 = tpu.matmul %0, %2, %cst {dimension_numbers = #tpu.dot_dimension_numbers<[1], [0], [0], [1], [0, 0, 1, 1], [], []>} : vector<12x588xf32>, vector<588x16xf32>, vector<12x16xf32> -> vector<12x16xf32>
    %c0_4 = arith.constant 0 : index
    %c0_5 = arith.constant 0 : index
    %4 = vector.load %arg4[%c0_4, %c0_5] : memref<12x1xf32, #tpu.memory_space<vmem>>, vector<12x1xf32>
    %5 = vector.broadcast %4 : vector<12x1xf32> to vector<12x16xf32>
    %6 = arith.addf %3, %5 : vector<12x16xf32>
    %cst_6 = arith.constant 0.000000e+00 : f32
    %7 = vector.broadcast %cst_6 : f32 to vector<12x16xf32>
    %8 = arith.minimumf %6, %7 : vector<12x16xf32>
    %9 = math.exp %8 : vector<12x16xf32>
    %cst_7 = arith.constant 1.000000e+00 : f32
    %10 = vector.broadcast %cst_7 : f32 to vector<12x16xf32>
    %11 = arith.subf %9, %10 : vector<12x16xf32>
    %cst_8 = arith.constant 1.67326319 : f32
    %12 = vector.broadcast %cst_8 : f32 to vector<12x16xf32>
    %13 = arith.mulf %12, %11 : vector<12x16xf32>
    %cst_9 = arith.constant 0.000000e+00 : f32
    %14 = vector.broadcast %cst_9 : f32 to vector<12x16xf32>
    %15 = arith.cmpf ogt, %6, %14 : vector<12x16xf32>
    %16 = arith.select %15, %6, %13 : vector<12x16xi1>, vector<12x16xf32>
    %cst_10 = arith.constant 1.05070102 : f32
    %17 = vector.broadcast %cst_10 : f32 to vector<12x16xf32>
    %18 = arith.mulf %17, %16 : vector<12x16xf32>
    %c0_11 = arith.constant 0 : index
    %c0_12 = arith.constant 0 : index
    %c0_13 = arith.constant 0 : index
    %19 = vector.load %arg5[%c0_11, %c0_12, %c0_13] : memref<1x12x16xf32, #tpu.memory_space<vmem>>, vector<1x12x16xf32>
    %20 = vector.shape_cast %19 : vector<1x12x16xf32> to vector<12x16xf32>
    %21 = vector.shape_cast %18 : vector<12x16xf32> to vector<1x12x16xf32>
    tpu.vector_store %arg5[%c0_11, %c0_12, %c0_13], %21 {strides = array<i32>} : memref<1x12x16xf32, #tpu.memory_space<vmem>>, vector<1x12x16xf32>,
    return
  }
  func.func @transform_0(%arg0: i32, %arg1: i32) -> (i32, i32) {
    %c0_i32 = arith.constant 0 : i32
    %c0_i32_0 = arith.constant 0 : i32
    %c0_i32_1 = arith.constant 0 : i32
    return %c0_i32, %c0_i32_0 : i32, i32
  }
  func.func @transform_1(%arg0: i32, %arg1: i32) -> (i32, i32, i32) {
    %c0_i32 = arith.constant 0 : i32
    %c0_i32_0 = arith.constant 0 : i32
    return %arg0, %c0_i32, %arg1 : i32, i32, i32
  }
  func.func @transform_2(%arg0: i32, %arg1: i32) -> (i32, i32) {
    %c0_i32 = arith.constant 0 : i32
    %c0_i32_0 = arith.constant 0 : i32
    %c0_i32_1 = arith.constant 0 : i32
    return %c0_i32, %c0_i32_0 : i32, i32
  }
  func.func @transform_3(%arg0: i32, %arg1: i32) -> (i32, i32, i32) {
    %c0_i32 = arith.constant 0 : i32
    %c0_i32_0 = arith.constant 0 : i32
    return %arg0, %c0_i32, %arg1 : i32, i32, i32
  }
}

module attributes {stable_mosaic.version = 11 : i64} {
  func.func @_conv_mm_kernel(%arg0: i32, %arg1: i32, %arg2: memref<4x300xf32, #tpu.memory_space<vmem>>, %arg3: memref<1x300x16xf32, #tpu.memory_space<vmem>>, %arg4: memref<4x1xf32, #tpu.memory_space<vmem>>, %arg5: memref<1x4x16xf32, #tpu.memory_space<vmem>>) attributes {dimension_semantics = [#tpu.dimension_semantics<parallel>, #tpu.dimension_semantics<parallel>], iteration_bounds = array<i64: 2, 1>, scalar_prefetch = 0 : i64, scratch_operands = 0 : i64, tpu.core_type = #tpu.core_type<tc>, window_params = [{pipeline_mode = #tpu.pipeline_mode<synchronous>, transform_indices = @transform_0, window_bounds = array<i64: 4, 300>}, {transform_indices = @transform_1, window_bounds = array<i64: 1, 300, 16>}, {pipeline_mode = #tpu.pipeline_mode<synchronous>, transform_indices = @transform_2, window_bounds = array<i64: 4, 1>}, {transform_indices = @transform_3, window_bounds = array<i64: 1, 4, 16>}]} {
    %c0 = arith.constant 0 : index
    %c0_0 = arith.constant 0 : index
    %0 = vector.load %arg2[%c0, %c0_0] : memref<4x300xf32, #tpu.memory_space<vmem>>, vector<4x300xf32>
    %c0_1 = arith.constant 0 : index
    %c0_2 = arith.constant 0 : index
    %c0_3 = arith.constant 0 : index
    %1 = vector.load %arg3[%c0_1, %c0_2, %c0_3] : memref<1x300x16xf32, #tpu.memory_space<vmem>>, vector<1x300x16xf32>
    %2 = vector.shape_cast %1 : vector<1x300x16xf32> to vector<300x16xf32>
    %cst = arith.constant dense<0.000000e+00> : vector<4x16xf32>
    %3 = tpu.matmul %0, %2, %cst {dimension_numbers = #tpu.dot_dimension_numbers<[1], [0], [0], [1], [0, 0, 1, 1], [], []>} : vector<4x300xf32>, vector<300x16xf32>, vector<4x16xf32> -> vector<4x16xf32>
    %c0_4 = arith.constant 0 : index
    %c0_5 = arith.constant 0 : index
    %4 = vector.load %arg4[%c0_4, %c0_5] : memref<4x1xf32, #tpu.memory_space<vmem>>, vector<4x1xf32>
    %5 = vector.broadcast %4 : vector<4x1xf32> to vector<4x16xf32>
    %6 = arith.addf %3, %5 : vector<4x16xf32>
    %cst_6 = arith.constant 0.000000e+00 : f32
    %7 = vector.broadcast %cst_6 : f32 to vector<4x16xf32>
    %8 = arith.minimumf %6, %7 : vector<4x16xf32>
    %9 = math.exp %8 : vector<4x16xf32>
    %cst_7 = arith.constant 1.000000e+00 : f32
    %10 = vector.broadcast %cst_7 : f32 to vector<4x16xf32>
    %11 = arith.subf %9, %10 : vector<4x16xf32>
    %cst_8 = arith.constant 1.67326319 : f32
    %12 = vector.broadcast %cst_8 : f32 to vector<4x16xf32>
    %13 = arith.mulf %12, %11 : vector<4x16xf32>
    %cst_9 = arith.constant 0.000000e+00 : f32
    %14 = vector.broadcast %cst_9 : f32 to vector<4x16xf32>
    %15 = arith.cmpf ogt, %6, %14 : vector<4x16xf32>
    %16 = arith.select %15, %6, %13 : vector<4x16xi1>, vector<4x16xf32>
    %cst_10 = arith.constant 1.05070102 : f32
    %17 = vector.broadcast %cst_10 : f32 to vector<4x16xf32>
    %18 = arith.mulf %17, %16 : vector<4x16xf32>
    %c0_11 = arith.constant 0 : index
    %c0_12 = arith.constant 0 : index
    %c0_13 = arith.constant 0 : index
    %19 = vector.load %arg5[%c0_11, %c0_12, %c0_13] : memref<1x4x16xf32, #tpu.memory_space<vmem>>, vector<1x4x16xf32>
    %20 = vector.shape_cast %19 : vector<1x4x16xf32> to vector<4x16xf32>
    %21 = vector.shape_cast %18 : vector<4x16xf32> to vector<1x4x16xf32>
    tpu.vector_store %arg5[%c0_11, %c0_12, %c0_13], %21 {strides = array<i32>} : memref<1x4x16xf32, #tpu.memory_space<vmem>>, vector<1x4x16xf32>,
    return
  }
  func.func @transform_0(%arg0: i32, %arg1: i32) -> (i32, i32) {
    %c0_i32 = arith.constant 0 : i32
    %c0_i32_0 = arith.constant 0 : i32
    %c0_i32_1 = arith.constant 0 : i32
    return %c0_i32, %c0_i32_0 : i32, i32
  }
  func.func @transform_1(%arg0: i32, %arg1: i32) -> (i32, i32, i32) {
    %c0_i32 = arith.constant 0 : i32
    %c0_i32_0 = arith.constant 0 : i32
    return %arg0, %c0_i32, %arg1 : i32, i32, i32
  }
  func.func @transform_2(%arg0: i32, %arg1: i32) -> (i32, i32) {
    %c0_i32 = arith.constant 0 : i32
    %c0_i32_0 = arith.constant 0 : i32
    %c0_i32_1 = arith.constant 0 : i32
    return %c0_i32, %c0_i32_0 : i32, i32
  }
  func.func @transform_3(%arg0: i32, %arg1: i32) -> (i32, i32, i32) {
    %c0_i32 = arith.constant 0 : i32
    %c0_i32_0 = arith.constant 0 : i32
    return %arg0, %c0_i32, %arg1 : i32, i32, i32
  }
}

module attributes {stable_mosaic.version = 11 : i64} {
  func.func @_conv_mm_kernel(%arg0: i32, %arg1: i32, %arg2: memref<4x12xf32, #tpu.memory_space<vmem>>, %arg3: memref<1x12x256xf32, #tpu.memory_space<vmem>>, %arg4: memref<4x1xf32, #tpu.memory_space<vmem>>, %arg5: memref<1x4x256xf32, #tpu.memory_space<vmem>>) attributes {dimension_semantics = [#tpu.dimension_semantics<parallel>, #tpu.dimension_semantics<parallel>], iteration_bounds = array<i64: 2, 1>, scalar_prefetch = 0 : i64, scratch_operands = 0 : i64, tpu.core_type = #tpu.core_type<tc>, window_params = [{pipeline_mode = #tpu.pipeline_mode<synchronous>, transform_indices = @transform_0, window_bounds = array<i64: 4, 12>}, {transform_indices = @transform_1, window_bounds = array<i64: 1, 12, 256>}, {pipeline_mode = #tpu.pipeline_mode<synchronous>, transform_indices = @transform_2, window_bounds = array<i64: 4, 1>}, {transform_indices = @transform_3, window_bounds = array<i64: 1, 4, 256>}]} {
    %c0 = arith.constant 0 : index
    %c0_0 = arith.constant 0 : index
    %0 = vector.load %arg2[%c0, %c0_0] : memref<4x12xf32, #tpu.memory_space<vmem>>, vector<4x12xf32>
    %c0_1 = arith.constant 0 : index
    %c0_2 = arith.constant 0 : index
    %c0_3 = arith.constant 0 : index
    %1 = vector.load %arg3[%c0_1, %c0_2, %c0_3] : memref<1x12x256xf32, #tpu.memory_space<vmem>>, vector<1x12x256xf32>
    %2 = vector.shape_cast %1 : vector<1x12x256xf32> to vector<12x256xf32>
    %cst = arith.constant dense<0.000000e+00> : vector<4x256xf32>
    %3 = tpu.matmul %0, %2, %cst {dimension_numbers = #tpu.dot_dimension_numbers<[1], [0], [0], [1], [0, 0, 1, 1], [], []>} : vector<4x12xf32>, vector<12x256xf32>, vector<4x256xf32> -> vector<4x256xf32>
    %c0_4 = arith.constant 0 : index
    %c0_5 = arith.constant 0 : index
    %4 = vector.load %arg4[%c0_4, %c0_5] : memref<4x1xf32, #tpu.memory_space<vmem>>, vector<4x1xf32>
    %5 = vector.broadcast %4 : vector<4x1xf32> to vector<4x256xf32>
    %6 = arith.addf %3, %5 : vector<4x256xf32>
    %cst_6 = arith.constant 0.000000e+00 : f32
    %7 = vector.broadcast %cst_6 : f32 to vector<4x256xf32>
    %8 = arith.minimumf %6, %7 : vector<4x256xf32>
    %9 = math.exp %8 : vector<4x256xf32>
    %cst_7 = arith.constant 1.000000e+00 : f32
    %10 = vector.broadcast %cst_7 : f32 to vector<4x256xf32>
    %11 = arith.subf %9, %10 : vector<4x256xf32>
    %cst_8 = arith.constant 1.67326319 : f32
    %12 = vector.broadcast %cst_8 : f32 to vector<4x256xf32>
    %13 = arith.mulf %12, %11 : vector<4x256xf32>
    %cst_9 = arith.constant 0.000000e+00 : f32
    %14 = vector.broadcast %cst_9 : f32 to vector<4x256xf32>
    %15 = arith.cmpf ogt, %6, %14 : vector<4x256xf32>
    %16 = arith.select %15, %6, %13 : vector<4x256xi1>, vector<4x256xf32>
    %cst_10 = arith.constant 1.05070102 : f32
    %17 = vector.broadcast %cst_10 : f32 to vector<4x256xf32>
    %18 = arith.mulf %17, %16 : vector<4x256xf32>
    %c0_11 = arith.constant 0 : index
    %c0_12 = arith.constant 0 : index
    %c0_13 = arith.constant 0 : index
    %19 = vector.load %arg5[%c0_11, %c0_12, %c0_13] : memref<1x4x256xf32, #tpu.memory_space<vmem>>, vector<1x4x256xf32>
    %20 = vector.shape_cast %19 : vector<1x4x256xf32> to vector<4x256xf32>
    %21 = vector.shape_cast %18 : vector<4x256xf32> to vector<1x4x256xf32>
    tpu.vector_store %arg5[%c0_11, %c0_12, %c0_13], %21 {strides = array<i32>} : memref<1x4x256xf32, #tpu.memory_space<vmem>>, vector<1x4x256xf32>,
    return
  }
  func.func @transform_0(%arg0: i32, %arg1: i32) -> (i32, i32) {
    %c0_i32 = arith.constant 0 : i32
    %c0_i32_0 = arith.constant 0 : i32
    %c0_i32_1 = arith.constant 0 : i32
    return %c0_i32, %c0_i32_0 : i32, i32
  }
  func.func @transform_1(%arg0: i32, %arg1: i32) -> (i32, i32, i32) {
    %c0_i32 = arith.constant 0 : i32
    %c0_i32_0 = arith.constant 0 : i32
    return %arg0, %c0_i32, %arg1 : i32, i32, i32
  }
  func.func @transform_2(%arg0: i32, %arg1: i32) -> (i32, i32) {
    %c0_i32 = arith.constant 0 : i32
    %c0_i32_0 = arith.constant 0 : i32
    %c0_i32_1 = arith.constant 0 : i32
    return %c0_i32, %c0_i32_0 : i32, i32
  }
  func.func @transform_3(%arg0: i32, %arg1: i32) -> (i32, i32, i32) {
    %c0_i32 = arith.constant 0 : i32
    %c0_i32_0 = arith.constant 0 : i32
    return %arg0, %c0_i32, %arg1 : i32, i32, i32
  }
}

module attributes {stable_mosaic.version = 11 : i64} {
  func.func @_conv_mm_kernel(%arg0: i32, %arg1: i32, %arg2: memref<1x108xf32, #tpu.memory_space<vmem>>, %arg3: memref<1x108x256xf32, #tpu.memory_space<vmem>>, %arg4: memref<1x1xf32, #tpu.memory_space<vmem>>, %arg5: memref<1x1x256xf32, #tpu.memory_space<vmem>>) attributes {dimension_semantics = [#tpu.dimension_semantics<parallel>, #tpu.dimension_semantics<parallel>], iteration_bounds = array<i64: 2, 1>, scalar_prefetch = 0 : i64, scratch_operands = 0 : i64, tpu.core_type = #tpu.core_type<tc>, window_params = [{pipeline_mode = #tpu.pipeline_mode<synchronous>, transform_indices = @transform_0, window_bounds = array<i64: 1, 108>}, {transform_indices = @transform_1, window_bounds = array<i64: 1, 108, 256>}, {pipeline_mode = #tpu.pipeline_mode<synchronous>, transform_indices = @transform_2, window_bounds = array<i64: 1, 1>}, {transform_indices = @transform_3, window_bounds = array<i64: 1, 1, 256>}]} {
    %c0 = arith.constant 0 : index
    %c0_0 = arith.constant 0 : index
    %0 = vector.load %arg2[%c0, %c0_0] : memref<1x108xf32, #tpu.memory_space<vmem>>, vector<1x108xf32>
    %c0_1 = arith.constant 0 : index
    %c0_2 = arith.constant 0 : index
    %c0_3 = arith.constant 0 : index
    %1 = vector.load %arg3[%c0_1, %c0_2, %c0_3] : memref<1x108x256xf32, #tpu.memory_space<vmem>>, vector<1x108x256xf32>
    %2 = vector.shape_cast %1 : vector<1x108x256xf32> to vector<108x256xf32>
    %cst = arith.constant dense<0.000000e+00> : vector<1x256xf32>
    %3 = tpu.matmul %0, %2, %cst {dimension_numbers = #tpu.dot_dimension_numbers<[1], [0], [0], [1], [0, 0, 1, 1], [], []>} : vector<1x108xf32>, vector<108x256xf32>, vector<1x256xf32> -> vector<1x256xf32>
    %c0_4 = arith.constant 0 : index
    %c0_5 = arith.constant 0 : index
    %4 = vector.load %arg4[%c0_4, %c0_5] : memref<1x1xf32, #tpu.memory_space<vmem>>, vector<1x1xf32>
    %5 = vector.broadcast %4 : vector<1x1xf32> to vector<1x256xf32>
    %6 = arith.addf %3, %5 : vector<1x256xf32>
    %c0_6 = arith.constant 0 : index
    %c0_7 = arith.constant 0 : index
    %c0_8 = arith.constant 0 : index
    %7 = vector.load %arg5[%c0_6, %c0_7, %c0_8] : memref<1x1x256xf32, #tpu.memory_space<vmem>>, vector<1x1x256xf32>
    %8 = vector.shape_cast %7 : vector<1x1x256xf32> to vector<1x256xf32>
    %9 = vector.shape_cast %6 : vector<1x256xf32> to vector<1x1x256xf32>
    tpu.vector_store %arg5[%c0_6, %c0_7, %c0_8], %9 {strides = array<i32>} : memref<1x1x256xf32, #tpu.memory_space<vmem>>, vector<1x1x256xf32>,
    return
  }
  func.func @transform_0(%arg0: i32, %arg1: i32) -> (i32, i32) {
    %c0_i32 = arith.constant 0 : i32
    %c0_i32_0 = arith.constant 0 : i32
    %c0_i32_1 = arith.constant 0 : i32
    return %c0_i32, %c0_i32_0 : i32, i32
  }
  func.func @transform_1(%arg0: i32, %arg1: i32) -> (i32, i32, i32) {
    %c0_i32 = arith.constant 0 : i32
    %c0_i32_0 = arith.constant 0 : i32
    return %arg0, %c0_i32, %arg1 : i32, i32, i32
  }
  func.func @transform_2(%arg0: i32, %arg1: i32) -> (i32, i32) {
    %c0_i32 = arith.constant 0 : i32
    %c0_i32_0 = arith.constant 0 : i32
    %c0_i32_1 = arith.constant 0 : i32
    return %c0_i32, %c0_i32_0 : i32, i32
  }
  func.func @transform_3(%arg0: i32, %arg1: i32) -> (i32, i32, i32) {
    %c0_i32 = arith.constant 0 : i32
    %c0_i32_0 = arith.constant 0 : i32
    return %arg0, %c0_i32, %arg1 : i32, i32, i32
  }
}

</mosaic_0001>

<llo_original>
// kernel: residual_network_forward.32
$region0: #{residual_network_forward.32}
  #allocation0 [shape = 'u32[]', space=smem, size = 0x4, offset = 0x4, fixed_abs, tag = 'smem constant byte address 0x4 - core index']
  #allocation1 [shape = 'u32[72,128]{1,0:T(1,128)}', space=vmem, size = 0x9000, scoped, tag = 'internal scratch']
  %s0 = inlined_call_operand.vmem [shape: f32[12,12], index: 0, kind: input, shape index: {}]
  %s1 = inlined_call_operand.vmem [shape: f32[2,12,256], index: 1, kind: input, shape index: {}]
  %s2 = inlined_call_operand.vmem [shape: f32[12,1], index: 2, kind: input, shape index: {}]
  %s3 = inlined_call_operand.vmem [shape: f32[2,12,256], index: 3, kind: output, shape index: {}]
  %s4 = sld [smem:[#allocation0]]
  $region45: #{residual_network_forward.32} parent=0
    _
  %s6 = ssub.s32 1, %s4
  %s7 = scalar_select 0, %s6, %s4
  loop: start=0, step=1, limit=4
  $region2: #{residual_network_forward.32} parent=0 // loop_pre_header
    _
  $region3: #{residual_network_forward.32} parent=0 // loop_header
    %s9 = sphi 0, %s13
    %p10 = scmp.ge.s32.totalorder %s9, 4
    %s16 = sphi 0, %s28
    %s17 = sphi 0, %s24
    %s18 = sphi 0, %s16
    %s19 = sphi 0, %s17
    %s20 = sphi 0, %s18
    %s21 = sphi 0, %s19
    %s29 = sphi 0, %s29
    %s31 = sphi 0, %s29
    %s32 = sphi 0, %s31
    %s46 = sphi 0, %s32
    %s54 = sphi 0, %s56
    %s57 = sphi 0, %s54
    %s58 = sphi 0, %s57
    %s74 = sphi 0, %s58
    %s78 = sphi 0, %s78
    %s80 = sphi 0, %s78
    %s81 = sphi 0, %s80
    %s95 = sphi 0, %s81
    %s103 = sphi 0, %s105
    %s106 = sphi 0, %s103
    %s107 = sphi 0, %s106
    %s123 = sphi 0, %s107
  $region4: #{residual_network_forward.32} parent=0 // loop_header_branch
    %12 = sbr.rel (%p10) target = $region8
  $region5: #{residual_network_forward.32} parent=0 // loop_body
    %s14 = ssub.s32 %s9, 1
    %s15 = ssub.s32 %s9, 2
    %s22 = sadd.s32 1, %s17
    %p23 = scmp.ge.s32.totalorder %s22, 1
    %s24 = scalar_select %p23, 0, %s22
    %s25 = sadd.s32 1, %s16
    %s26 = scalar_select %p23, %s25, %s16
    %p27 = scmp.ge.s32.totalorder %s26, 2
    %s28 = scalar_select %p27, 0, %s26
    %s30 = sadd.s32 %s29, 1
    %p33 = scmp.eq.s32.totalorder %s9, 1
    %p34 = scmp.ne.s32.totalorder %s29, %s31
    %p35 = scmp.eq.s32.totalorder %s9, 0
    %p36 = por %p34, %p35
    %p37 = scmp.ne.s32.totalorder %s29, %s31
    %p38 = scmp.eq.s32.totalorder %s14, 1
    %p39 = por %p37, %p38
    %p40 = scmp.ne.s32.totalorder %s31, %s32
    %p41 = scmp.eq.s32.totalorder %s14, 0
    %p42 = por %p40, %p41
    %p43 = scmp.ne.s32.totalorder %s31, %s32
    %p44 = scmp.eq.s32.totalorder %s15, 1
    %p45 = por %p43, %p44
    %p47 = scmp.ne.s32.totalorder %s32, %s46
    %p48 = scmp.eq.s32.totalorder %s15, 0
    %p49 = por %p47, %p48
    %s50 = ssub.s32 %s16, %s28
    %s51 = ssub.s32 %s17, %s24
    %s52 = sor.u32 %s50, %s51
    %p53 = scmp.eq.s32.totalorder %s52, 0
    %s55 = sadd.s32 %s54, 1
    %s56 = scalar_select %p53, %s54, %s55
    %p59 = pneg %p53
    %p60 = scmp.eq.s32.totalorder %s9, 1
    %p61 = por %p59, %p60
    %p62 = scmp.ne.s32.totalorder %s54, %s57
    %p63 = scmp.eq.s32.totalorder %s9, 0
    %p64 = por %p62, %p63
    %p65 = scmp.ne.s32.totalorder %s54, %s57
    %p66 = scmp.eq.s32.totalorder %s14, 1
    %p67 = por %p65, %p66
    %p68 = scmp.ne.s32.totalorder %s57, %s58
    %p69 = scmp.eq.s32.totalorder %s14, 0
    %p70 = por %p68, %p69
    %p71 = scmp.ne.s32.totalorder %s57, %s58
    %p72 = scmp.eq.s32.totalorder %s15, 1
    %p73 = por %p71, %p72
    %p75 = scmp.ne.s32.totalorder %s58, %s74
    %p76 = scmp.eq.s32.totalorder %s15, 0
    %p77 = por %p75, %p76
    %s79 = sadd.s32 %s78, 1
    %p82 = scmp.eq.s32.totalorder %s9, 1
    %p83 = scmp.ne.s32.totalorder %s78, %s80
    %p84 = scmp.eq.s32.totalorder %s9, 0
    %p85 = por %p83, %p84
    %p86 = scmp.ne.s32.totalorder %s78, %s80
    %p87 = scmp.eq.s32.totalorder %s14, 1
    %p88 = por %p86, %p87
    %p89 = scmp.ne.s32.totalorder %s80, %s81
    %p90 = scmp.eq.s32.totalorder %s14, 0
    %p91 = por %p89, %p90
    %p92 = scmp.ne.s32.totalorder %s80, %s81
    %p93 = scmp.eq.s32.totalorder %s15, 1
    %p94 = por %p92, %p93
    %p96 = scmp.ne.s32.totalorder %s81, %s95
    %p97 = scmp.eq.s32.totalorder %s15, 0
    %p98 = por %p96, %p97
    %s99 = ssub.s32 %s16, %s28
    %s100 = ssub.s32 %s17, %s24
    %s101 = sor.u32 %s99, %s100
    %p102 = scmp.eq.s32.totalorder %s101, 0
    %s104 = sadd.s32 %s103, 1
    %s105 = scalar_select %p102, %s103, %s104
    %p108 = pneg %p102
    %p109 = scmp.eq.s32.totalorder %s9, 1
    %p110 = por %p108, %p109
    %p111 = scmp.ne.s32.totalorder %s103, %s106
    %p112 = scmp.eq.s32.totalorder %s9, 0
    %p113 = por %p111, %p112
    %p114 = scmp.ne.s32.totalorder %s103, %s106
    %p115 = scmp.eq.s32.totalorder %s14, 1
    %p116 = por %p114, %p115
    %p117 = scmp.ne.s32.totalorder %s106, %s107
    %p118 = scmp.eq.s32.totalorder %s14, 0
    %p119 = por %p117, %p118
    %p120 = scmp.ne.s32.totalorder %s106, %s107
    %p121 = scmp.eq.s32.totalorder %s15, 1
    %p122 = por %p120, %p121
    %p124 = scmp.ne.s32.totalorder %s107, %s123
    %p125 = scmp.eq.s32.totalorder %s15, 0
    %p126 = por %p124, %p125
    %p127 = scmp.le.s32.totalorder 1, %s9
    %p128 = scmp.lt.s32.totalorder %s9, 3
    %p129 = pnand %p127, %p128
    %p130 = pneg %p129
    // Predicated region
    $region9: #{residual_network_forward.32} parent=5 // pred_check
      _
    $region10: #{residual_network_forward.32} parent=5 // pred_check_branch
      %132 = sbr.rel (%p129) target = $region12
    $region11: #{residual_network_forward.32} parent=5 // pred_region
      %s133 = ssub.s32 %s9, 1
      // Predicated region
      $region13: #{residual_network_forward.32} parent=11 // pred_check
        %p134 = pneg %p42
      $region14: #{residual_network_forward.32} parent=11 // pred_check_branch
        %136 = sbr.rel (%p134) target = $region16
      $region15: #{residual_network_forward.32} parent=11 // pred_region
        _
      $region16: #{residual_network_forward.32} parent=11 // pred_fallthru
        _
      // Predicated region
      $region17: #{residual_network_forward.32} parent=11 // pred_check
        %p137 = pneg %p91
      $region18: #{residual_network_forward.32} parent=11 // pred_check_branch
        %139 = sbr.rel (%p137) target = $region20
      $region19: #{residual_network_forward.32} parent=11 // pred_region
        _
      $region20: #{residual_network_forward.32} parent=11 // pred_fallthru
        _
    $region12: #{residual_network_forward.32} parent=5 // pred_fallthru
      _
    %p140 = scmp.lt.s32.totalorder %s9, 2
    // Predicated region
    $region21: #{residual_network_forward.32} parent=5 // pred_check
      %p141 = pneg %p140
    $region22: #{residual_network_forward.32} parent=5 // pred_check_branch
      %143 = sbr.rel (%p141) target = $region24
    $region23: #{residual_network_forward.32} parent=5 // pred_region
      // Predicated region
      $region25: #{residual_network_forward.32} parent=23 // pred_check
        %p144 = pneg %p64
      $region26: #{residual_network_forward.32} parent=23 // pred_check_branch
        %146 = sbr.rel (%p144) target = $region28
      $region27: #{residual_network_forward.32} parent=23 // pred_region
        %s147 = smul.u32 2, %s17
        %p148 = scmp.lt.s32.totalorder %s16, 1
        %s149 = scalar_select %p148, %s16, 1
        %p150 = scmp.lt.s32.totalorder %s147, 1
        %s151 = scalar_select %p150, %s147, 1
        %s152 = smul.addr %s149, 4
        %s153 = sadd.s32 %s151, %s152
        %s154 = smul.addr %s153, 8
        %s155 = scalar_lea.vmem %s1, %s154
        %s156 = smul.u32 2, %s17
      $region28: #{residual_network_forward.32} parent=23 // pred_fallthru
        _
    $region24: #{residual_network_forward.32} parent=5 // pred_fallthru
      _
    %p157 = scmp.le.s32.totalorder 1, %s9
    %p158 = scmp.lt.s32.totalorder %s9, 3
    %p159 = pnand %p157, %p158
    %p160 = pneg %p159
    // Predicated region
    $region29: #{residual_network_forward.32} parent=5 // pred_check
      _
    $region30: #{residual_network_forward.32} parent=5 // pred_check_branch
      %162 = sbr.rel (%p159) target = $region32
    $region31: #{residual_network_forward.32} parent=5 // pred_region
      %s163 = ssub.s32 %s9, 1
      %p164 = pneg %p42
      %p165 = pneg %p39
      %s166 = smul.u32 2, %s19
      %p167 = scmp.lt.s32.totalorder %s18, 1
      %s168 = scalar_select %p167, %s18, 1
      %p169 = scmp.lt.s32.totalorder %s166, 1
      %s170 = scalar_select %p169, %s166, 1
      %s171 = smul.addr %s168, 4
      %s172 = sadd.s32 %s170, %s171
      %s173 = smul.addr %s172, 8
      %s174 = scalar_lea.vmem %s1, %s173
      %p175 = pneg %p70
      %p176 = pneg %p67
      %p177 = pneg %p91
      %p178 = pneg %p88
      %p179 = pneg %p119
      %p180 = pneg %p116
      %s181 = smul.u32 2, %s19
      %p182 = scmp.lt.s32.totalorder %s18, 1
      %s183 = scalar_select %p182, %s18, 1
      %p184 = scmp.lt.s32.totalorder %s181, 1
      %s185 = scalar_select %p184, %s181, 1
      %s186 = smul.addr %s183, 4
      %s187 = sadd.s32 %s185, %s186
      %s188 = smul.addr %s187, 8
      %s189 = scalar_lea.vmem %s3, %s188
      %s190 = smul.u32 2, %s19
      %p191 = scmp.lt.s32.totalorder %s18, 1
      %s192 = scalar_select %p191, %s18, 1
      %p193 = scmp.lt.s32.totalorder %s190, 1
      %s194 = scalar_select %p193, %s190, 1
      %s195 = smul.addr %s192, 4
      %s196 = sadd.s32 %s194, %s195
      %s197 = smul.addr %s196, 8
      %s198 = scalar_lea.vmem %s1, %s197
      %s199 = smul.u32 2, %s19
      %s200 = smul.u32 2, %s19
      %p201 = scmp.lt.s32.totalorder %s18, 1
      %s202 = scalar_select %p201, %s18, 1
      %p203 = scmp.lt.s32.totalorder %s200, 1
      %s204 = scalar_select %p203, %s200, 1
      %s205 = smul.addr %s202, 4
      %s206 = sadd.s32 %s204, %s205
      %s207 = smul.addr %s206, 8
      %s208 = scalar_lea.vmem %s3, %s207
      %s209 = smul.u32 2, %s19
      %v210 = vld [vmem:[%s0] sm:$0xff]
      %v211 = vld [vmem:[%s0 + $0x8] sm:$0xf]
      %v212 = vld [vmem:[%s198] sm:$0xff]
      %v213 = vld [vmem:[%s198 + $0x8] sm:$0xff]
      %v214 = vld [vmem:[%s198 + $0x10] sm:$0xf]
      %v215 = vld [vmem:[%s198 + $0x18] sm:$0xf]
      %v216 = vld [vmem:[%s2] sm:$0xff]
      %v217 = vld [vmem:[%s2 + $0x8] sm:$0xf]
      %219 = vset.pattern.permute.xlu0 0
      %220 = vperm.xlu0 %219, %v216
      %v221 = vpop.permute.xlu0 %220
      %224 = vset.pattern.permute.xlu0 0
      %225 = vperm.xlu0 %224, %v217
      %v226 = vpop.permute.xlu0 %225
      %vm228 = vcmask 97280
      %v230 = vsel %vm228, %v210, 0
      %v233 = vsel %vm228, %v211, 0
      %vm235 = vcmask 1043456
      %v237 = vsel %vm235, %v214, 0
      %v240 = vsel %vm235, %v215, 0
      %242 = vmatpush.msra.mxu0 0.0
      %243 = vmatpush.msra.mxu0 0.0
      %244 = vmatpush.msra.mxu0 0.0
      %245 = vmatpush.msra.mxu0 0.0
      %246 = vmatpush.msra.mxu0 0.0
      %247 = vmatpush.msra.mxu0 0.0
      %248 = vmatpush.msra.mxu0 0.0
      %249 = vmatpush.msra.mxu0 0.0
      %250 = vmatpush.msra.mxu0 0.0
      %251 = vmatpush.msra.mxu0 0.0
      %252 = vmatpush.msra.mxu0 0.0
      %253 = vmatpush.msra.mxu0 0.0
      %254 = vmatpush.msra.mxu0 0.0
      %255 = vmatpush.msra.mxu0 0.0
      %256 = vmatpush.msra.mxu0 %v237
      %257 = vmatpush.msra.mxu0 %v212
      %258 = vmatmul.f32.gmra.mxu0 %v230
      %v259 = vpop.f32.mrf.mxu0
      %v260 = vadd.f32 %v221, %v259
      %261 = vmatmul.f32.gmra.mxu0 %v233
      %v262 = vpop.f32.mrf.mxu0
      %v263 = vadd.f32 %v226, %v262
      %264 = vdwg.mxu0
      %265 = vmatpush.msra.mxu0 0.0
      %266 = vmatpush.msra.mxu0 0.0
      %267 = vmatpush.msra.mxu0 0.0
      %268 = vmatpush.msra.mxu0 0.0
      %269 = vmatpush.msra.mxu0 0.0
      %270 = vmatpush.msra.mxu0 0.0
      %271 = vmatpush.msra.mxu0 0.0
      %272 = vmatpush.msra.mxu0 0.0
      %273 = vmatpush.msra.mxu0 0.0
      %274 = vmatpush.msra.mxu0 0.0
      %275 = vmatpush.msra.mxu0 0.0
      %276 = vmatpush.msra.mxu0 0.0
      %277 = vmatpush.msra.mxu0 0.0
      %278 = vmatpush.msra.mxu0 0.0
      %279 = vmatpush.msra.mxu0 %v240
      %280 = vmatpush.msra.mxu0 %v213
      %281 = vmatmul.f32.gmra.mxu0 %v230
      %v282 = vpop.f32.mrf.mxu0
      %v283 = vadd.f32 %v221, %v282
      %284 = vmatmul.f32.gmra.mxu0 %v233
      %v285 = vpop.f32.mrf.mxu0
      %v286 = vadd.f32 %v226, %v285
      %287 = vdwg.mxu0
      %288 = vst [vmem:[%s208] sm:$0xff] %v260
      %289 = vst [vmem:[%s208 + $0x8] sm:$0xff] %v283
      %290 = vst [vmem:[%s208 + $0x10] sm:$0xf] %v263
      %291 = vst [vmem:[%s208 + $0x18] sm:$0xf] %v286
      %s292 = smul.u32 2, %s19
      %p293 = scmp.lt.s32.totalorder %s18, 1
      %s294 = scalar_select %p293, %s18, 1
      %p295 = scmp.lt.s32.totalorder %s292, 1
      %s296 = scalar_select %p295, %s292, 1
      %s297 = smul.addr %s294, 4
      %s298 = sadd.s32 %s296, %s297
      %s299 = smul.addr %s298, 8
      %s300 = scalar_lea.vmem %s3, %s299
      // Predicated region
      $region33: #{residual_network_forward.32} parent=31 // pred_check
        %p301 = pneg %p116
      $region34: #{residual_network_forward.32} parent=31 // pred_check_branch
        %303 = sbr.rel (%p301) target = $region36
      $region35: #{residual_network_forward.32} parent=31 // pred_region
        %s304 = smul.u32 2, %s19
      $region36: #{residual_network_forward.32} parent=31 // pred_fallthru
        _
    $region32: #{residual_network_forward.32} parent=5 // pred_fallthru
      _
    %p305 = scmp.le.s32.totalorder 2, %s9
    // Predicated region
    $region37: #{residual_network_forward.32} parent=5 // pred_check
      %p306 = pneg %p305
    $region38: #{residual_network_forward.32} parent=5 // pred_check_branch
      %308 = sbr.rel (%p306) target = $region40
    $region39: #{residual_network_forward.32} parent=5 // pred_region
      %s309 = ssub.s32 %s9, 2
      // Predicated region
      $region41: #{residual_network_forward.32} parent=39 // pred_check
        %p310 = pneg %p122
      $region42: #{residual_network_forward.32} parent=39 // pred_check_branch
        %312 = sbr.rel (%p310) target = $region44
      $region43: #{residual_network_forward.32} parent=39 // pred_region
        %s313 = smul.u32 2, %s21
        %p314 = scmp.lt.s32.totalorder %s20, 1
        %s315 = scalar_select %p314, %s20, 1
        %p316 = scmp.lt.s32.totalorder %s313, 1
        %s317 = scalar_select %p316, %s313, 1
        %s318 = smul.addr %s315, 4
        %s319 = sadd.s32 %s317, %s318
        %s320 = smul.addr %s319, 8
        %s321 = scalar_lea.vmem %s3, %s320
      $region44: #{residual_network_forward.32} parent=39 // pred_fallthru
        _
    $region40: #{residual_network_forward.32} parent=5 // pred_fallthru
      _
  $region6: #{residual_network_forward.32} parent=0 // loop_footer
    %s13 = sadd.s32 1, %s9
  $region7: #{residual_network_forward.32} parent=0 // loop_footer_branch
    %8 = sbr.rel target = $region3
  $region8: #{residual_network_forward.32} parent=0 // loop_exit
    _

// kernel: residual_network_forward.33
$region0: #{residual_network_forward.33}
  #allocation0 [shape = 'u32[]', space=smem, size = 0x4, offset = 0x4, fixed_abs, tag = 'smem constant byte address 0x4 - core index']
  #allocation1 [shape = 'u32[72,128]{1,0:T(1,128)}', space=vmem, size = 0x9000, scoped, tag = 'internal scratch']
  %s0 = inlined_call_operand.vmem [shape: f32[12,588], index: 0, kind: input, shape index: {}]
  %s1 = inlined_call_operand.vmem [shape: f32[2,588,256], index: 1, kind: input, shape index: {}]
  %s2 = inlined_call_operand.vmem [shape: f32[12,1], index: 2, kind: input, shape index: {}]
  %s3 = inlined_call_operand.vmem [shape: f32[2,12,256], index: 3, kind: output, shape index: {}]
  %s4 = sld [smem:[#allocation0]]
  $region45: #{residual_network_forward.33} parent=0
    _
  %s6 = ssub.s32 1, %s4
  %s7 = scalar_select 0, %s6, %s4
  loop: start=0, step=1, limit=4
  $region2: #{residual_network_forward.33} parent=0 // loop_pre_header
    _
  $region3: #{residual_network_forward.33} parent=0 // loop_header
    %s9 = sphi 0, %s13
    %p10 = scmp.ge.s32.totalorder %s9, 4
    %s16 = sphi 0, %s28
    %s17 = sphi 0, %s24
    %s18 = sphi 0, %s16
    %s19 = sphi 0, %s17
    %s20 = sphi 0, %s18
    %s21 = sphi 0, %s19
    %s29 = sphi 0, %s29
    %s31 = sphi 0, %s29
    %s32 = sphi 0, %s31
    %s46 = sphi 0, %s32
    %s54 = sphi 0, %s56
    %s57 = sphi 0, %s54
    %s58 = sphi 0, %s57
    %s74 = sphi 0, %s58
    %s78 = sphi 0, %s78
    %s80 = sphi 0, %s78
    %s81 = sphi 0, %s80
    %s95 = sphi 0, %s81
    %s103 = sphi 0, %s105
    %s106 = sphi 0, %s103
    %s107 = sphi 0, %s106
    %s123 = sphi 0, %s107
  $region4: #{residual_network_forward.33} parent=0 // loop_header_branch
    %12 = sbr.rel (%p10) target = $region8
  $region5: #{residual_network_forward.33} parent=0 // loop_body
    %s14 = ssub.s32 %s9, 1
    %s15 = ssub.s32 %s9, 2
    %s22 = sadd.s32 1, %s17
    %p23 = scmp.ge.s32.totalorder %s22, 1
    %s24 = scalar_select %p23, 0, %s22
    %s25 = sadd.s32 1, %s16
    %s26 = scalar_select %p23, %s25, %s16
    %p27 = scmp.ge.s32.totalorder %s26, 2
    %s28 = scalar_select %p27, 0, %s26
    %s30 = sadd.s32 %s29, 1
    %p33 = scmp.eq.s32.totalorder %s9, 1
    %p34 = scmp.ne.s32.totalorder %s29, %s31
    %p35 = scmp.eq.s32.totalorder %s9, 0
    %p36 = por %p34, %p35
    %p37 = scmp.ne.s32.totalorder %s29, %s31
    %p38 = scmp.eq.s32.totalorder %s14, 1
    %p39 = por %p37, %p38
    %p40 = scmp.ne.s32.totalorder %s31, %s32
    %p41 = scmp.eq.s32.totalorder %s14, 0
    %p42 = por %p40, %p41
    %p43 = scmp.ne.s32.totalorder %s31, %s32
    %p44 = scmp.eq.s32.totalorder %s15, 1
    %p45 = por %p43, %p44
    %p47 = scmp.ne.s32.totalorder %s32, %s46
    %p48 = scmp.eq.s32.totalorder %s15, 0
    %p49 = por %p47, %p48
    %s50 = ssub.s32 %s16, %s28
    %s51 = ssub.s32 %s17, %s24
    %s52 = sor.u32 %s50, %s51
    %p53 = scmp.eq.s32.totalorder %s52, 0
    %s55 = sadd.s32 %s54, 1
    %s56 = scalar_select %p53, %s54, %s55
    %p59 = pneg %p53
    %p60 = scmp.eq.s32.totalorder %s9, 1
    %p61 = por %p59, %p60
    %p62 = scmp.ne.s32.totalorder %s54, %s57
    %p63 = scmp.eq.s32.totalorder %s9, 0
    %p64 = por %p62, %p63
    %p65 = scmp.ne.s32.totalorder %s54, %s57
    %p66 = scmp.eq.s32.totalorder %s14, 1
    %p67 = por %p65, %p66
    %p68 = scmp.ne.s32.totalorder %s57, %s58
    %p69 = scmp.eq.s32.totalorder %s14, 0
    %p70 = por %p68, %p69
    %p71 = scmp.ne.s32.totalorder %s57, %s58
    %p72 = scmp.eq.s32.totalorder %s15, 1
    %p73 = por %p71, %p72
    %p75 = scmp.ne.s32.totalorder %s58, %s74
    %p76 = scmp.eq.s32.totalorder %s15, 0
    %p77 = por %p75, %p76
    %s79 = sadd.s32 %s78, 1
    %p82 = scmp.eq.s32.totalorder %s9, 1
    %p83 = scmp.ne.s32.totalorder %s78, %s80
    %p84 = scmp.eq.s32.totalorder %s9, 0
    %p85 = por %p83, %p84
    %p86 = scmp.ne.s32.totalorder %s78, %s80
    %p87 = scmp.eq.s32.totalorder %s14, 1
    %p88 = por %p86, %p87
    %p89 = scmp.ne.s32.totalorder %s80, %s81
    %p90 = scmp.eq.s32.totalorder %s14, 0
    %p91 = por %p89, %p90
    %p92 = scmp.ne.s32.totalorder %s80, %s81
    %p93 = scmp.eq.s32.totalorder %s15, 1
    %p94 = por %p92, %p93
    %p96 = scmp.ne.s32.totalorder %s81, %s95
    %p97 = scmp.eq.s32.totalorder %s15, 0
    %p98 = por %p96, %p97
    %s99 = ssub.s32 %s16, %s28
    %s100 = ssub.s32 %s17, %s24
    %s101 = sor.u32 %s99, %s100
    %p102 = scmp.eq.s32.totalorder %s101, 0
    %s104 = sadd.s32 %s103, 1
    %s105 = scalar_select %p102, %s103, %s104
    %p108 = pneg %p102
    %p109 = scmp.eq.s32.totalorder %s9, 1
    %p110 = por %p108, %p109
    %p111 = scmp.ne.s32.totalorder %s103, %s106
    %p112 = scmp.eq.s32.totalorder %s9, 0
    %p113 = por %p111, %p112
    %p114 = scmp.ne.s32.totalorder %s103, %s106
    %p115 = scmp.eq.s32.totalorder %s14, 1
    %p116 = por %p114, %p115
    %p117 = scmp.ne.s32.totalorder %s106, %s107
    %p118 = scmp.eq.s32.totalorder %s14, 0
    %p119 = por %p117, %p118
    %p120 = scmp.ne.s32.totalorder %s106, %s107
    %p121 = scmp.eq.s32.totalorder %s15, 1
    %p122 = por %p120, %p121
    %p124 = scmp.ne.s32.totalorder %s107, %s123
    %p125 = scmp.eq.s32.totalorder %s15, 0
    %p126 = por %p124, %p125
    %p127 = scmp.le.s32.totalorder 1, %s9
    %p128 = scmp.lt.s32.totalorder %s9, 3
    %p129 = pnand %p127, %p128
    %p130 = pneg %p129
    // Predicated region
    $region9: #{residual_network_forward.33} parent=5 // pred_check
      _
    $region10: #{residual_network_forward.33} parent=5 // pred_check_branch
      %132 = sbr.rel (%p129) target = $region12
    $region11: #{residual_network_forward.33} parent=5 // pred_region
      %s133 = ssub.s32 %s9, 1
      // Predicated region
      $region13: #{residual_network_forward.33} parent=11 // pred_check
        %p134 = pneg %p42
      $region14: #{residual_network_forward.33} parent=11 // pred_check_branch
        %136 = sbr.rel (%p134) target = $region16
      $region15: #{residual_network_forward.33} parent=11 // pred_region
        _
      $region16: #{residual_network_forward.33} parent=11 // pred_fallthru
        _
      // Predicated region
      $region17: #{residual_network_forward.33} parent=11 // pred_check
        %p137 = pneg %p91
      $region18: #{residual_network_forward.33} parent=11 // pred_check_branch
        %139 = sbr.rel (%p137) target = $region20
      $region19: #{residual_network_forward.33} parent=11 // pred_region
        _
      $region20: #{residual_network_forward.33} parent=11 // pred_fallthru
        _
    $region12: #{residual_network_forward.33} parent=5 // pred_fallthru
      _
    %p140 = scmp.lt.s32.totalorder %s9, 2
    // Predicated region
    $region21: #{residual_network_forward.33} parent=5 // pred_check
      %p141 = pneg %p140
    $region22: #{residual_network_forward.33} parent=5 // pred_check_branch
      %143 = sbr.rel (%p141) target = $region24
    $region23: #{residual_network_forward.33} parent=5 // pred_region
      // Predicated region
      $region25: #{residual_network_forward.33} parent=23 // pred_check
        %p144 = pneg %p64
      $region26: #{residual_network_forward.33} parent=23 // pred_check_branch
        %146 = sbr.rel (%p144) target = $region28
      $region27: #{residual_network_forward.33} parent=23 // pred_region
        %s147 = smul.u32 2, %s17
        %p148 = scmp.lt.s32.totalorder %s16, 1
        %s149 = scalar_select %p148, %s16, 1
        %p150 = scmp.lt.s32.totalorder %s147, 1
        %s151 = scalar_select %p150, %s147, 1
        %s152 = smul.addr %s149, 148
        %s153 = sadd.s32 %s151, %s152
        %s154 = smul.addr %s153, 8
        %s155 = scalar_lea.vmem %s1, %s154
        %s156 = smul.u32 2, %s17
      $region28: #{residual_network_forward.33} parent=23 // pred_fallthru
        _
    $region24: #{residual_network_forward.33} parent=5 // pred_fallthru
      _
    %p157 = scmp.le.s32.totalorder 1, %s9
    %p158 = scmp.lt.s32.totalorder %s9, 3
    %p159 = pnand %p157, %p158
    %p160 = pneg %p159
    // Predicated region
    $region29: #{residual_network_forward.33} parent=5 // pred_check
      _
    $region30: #{residual_network_forward.33} parent=5 // pred_check_branch
      %162 = sbr.rel (%p159) target = $region32
    $region31: #{residual_network_forward.33} parent=5 // pred_region
      %s163 = ssub.s32 %s9, 1
      %p164 = pneg %p42
      %p165 = pneg %p39
      %s166 = smul.u32 2, %s19
      %p167 = scmp.lt.s32.totalorder %s18, 1
      %s168 = scalar_select %p167, %s18, 1
      %p169 = scmp.lt.s32.totalorder %s166, 1
      %s170 = scalar_select %p169, %s166, 1
      %s171 = smul.addr %s168, 148
      %s172 = sadd.s32 %s170, %s171
      %s173 = smul.addr %s172, 8
      %s174 = scalar_lea.vmem %s1, %s173
      %p175 = pneg %p70
      %p176 = pneg %p67
      %p177 = pneg %p91
      %p178 = pneg %p88
      %p179 = pneg %p119
      %p180 = pneg %p116
      %s181 = smul.u32 2, %s19
      %p182 = scmp.lt.s32.totalorder %s18, 1
      %s183 = scalar_select %p182, %s18, 1
      %p184 = scmp.lt.s32.totalorder %s181, 1
      %s185 = scalar_select %p184, %s181, 1
      %s186 = smul.addr %s183, 4
      %s187 = sadd.s32 %s185, %s186
      %s188 = smul.addr %s187, 8
      %s189 = scalar_lea.vmem %s3, %s188
      %s190 = smul.u32 2, %s19
      %p191 = scmp.lt.s32.totalorder %s18, 1
      %s192 = scalar_select %p191, %s18, 1
      %p193 = scmp.lt.s32.totalorder %s190, 1
      %s194 = scalar_select %p193, %s190, 1
      %s195 = smul.addr %s192, 148
      %s196 = sadd.s32 %s194, %s195
      %s197 = smul.addr %s196, 8
      %s198 = scalar_lea.vmem %s1, %s197
      %s199 = smul.u32 2, %s19
      %s200 = smul.u32 2, %s19
      %p201 = scmp.lt.s32.totalorder %s18, 1
      %s202 = scalar_select %p201, %s18, 1
      %p203 = scmp.lt.s32.totalorder %s200, 1
      %s204 = scalar_select %p203, %s200, 1
      %s205 = smul.addr %s202, 4
      %s206 = sadd.s32 %s204, %s205
      %s207 = smul.addr %s206, 8
      %s208 = scalar_lea.vmem %s3, %s207
      %s209 = smul.u32 2, %s19
      %v210 = vld [vmem:[%s0] sm:$0xff]
      %v211 = vld [vmem:[%s0 + $0x8] sm:$0xff]
      %v212 = vld [vmem:[%s0 + $0x10] sm:$0xff]
      %v213 = vld [vmem:[%s0 + $0x18] sm:$0xff]
      %v214 = vld [vmem:[%s0 + $0x20] sm:$0xff]
      %v215 = vld [vmem:[%s0 + $0x28] sm:$0xf]
      %v216 = vld [vmem:[%s0 + $0x30] sm:$0xf]
      %v217 = vld [vmem:[%s0 + $0x38] sm:$0xf]
      %v218 = vld [vmem:[%s0 + $0x40] sm:$0xf]
      %v219 = vld [vmem:[%s0 + $0x48] sm:$0xf]
      %v220 = vld [vmem:[%s198] sm:$0xff]
      %v221 = vld [vmem:[%s198 + $0x8] sm:$0xff]
      %v222 = vld [vmem:[%s198 + $0x10] sm:$0xff]
      %v223 = vld [vmem:[%s198 + $0x18] sm:$0xff]
      %v224 = vld [vmem:[%s198 + $0x20] sm:$0xff]
      %v225 = vld [vmem:[%s198 + $0x28] sm:$0xff]
      %v226 = vld [vmem:[%s198 + $0x30] sm:$0xff]
      %v227 = vld [vmem:[%s198 + $0x38] sm:$0xff]
      %v228 = vld [vmem:[%s198 + $0x40] sm:$0xff]
      %v229 = vld [vmem:[%s198 + $0x48] sm:$0xff]
      %v230 = vld [vmem:[%s198 + $0x50] sm:$0xff]
      %v231 = vld [vmem:[%s198 + $0x58] sm:$0xff]
      %v232 = vld [vmem:[%s198 + $0x60] sm:$0xff]
      %v233 = vld [vmem:[%s198 + $0x68] sm:$0xff]
      %v234 = vld [vmem:[%s198 + $0x70] sm:$0xff]
      %v235 = vld [vmem:[%s198 + $0x78] sm:$0xff]
      %v236 = vld [vmem:[%s198 + $0x80] sm:$0xff]
      %v237 = vld [vmem:[%s198 + $0x88] sm:$0xff]
      %v238 = vld [vmem:[%s198 + $0x90] sm:$0xff]
      %v239 = vld [vmem:[%s198 + $0x98] sm:$0xff]
      %v240 = vld [vmem:[%s198 + $0xa0] sm:$0xff]
      %v241 = vld [vmem:[%s198 + $0xa8] sm:$0xff]
      %v242 = vld [vmem:[%s198 + $0xb0] sm:$0xff]
      %v243 = vld [vmem:[%s198 + $0xb8] sm:$0xff]
      %v244 = vld [vmem:[%s198 + $0xc0] sm:$0xff]
      %v245 = vld [vmem:[%s198 + $0xc8] sm:$0xff]
      %v246 = vld [vmem:[%s198 + $0xd0] sm:$0xff]
      %v247 = vld [vmem:[%s198 + $0xd8] sm:$0xff]
      %v248 = vld [vmem:[%s198 + $0xe0] sm:$0xff]
      %v249 = vld [vmem:[%s198 + $0xe8] sm:$0xff]
      %v250 = vld [vmem:[%s198 + $0xf0] sm:$0xff]
      %v251 = vld [vmem:[%s198 + $0xf8] sm:$0xff]
      %v252 = vld [vmem:[%s198 + $0x100] sm:$0xff]
      %v253 = vld [vmem:[%s198 + $0x108] sm:$0xff]
      %v254 = vld [vmem:[%s198 + $0x110] sm:$0xff]
      %v255 = vld [vmem:[%s198 + $0x118] sm:$0xff]
      %v256 = vld [vmem:[%s198 + $0x120] sm:$0xff]
      %v257 = vld [vmem:[%s198 + $0x128] sm:$0xff]
      %v258 = vld [vmem:[%s198 + $0x130] sm:$0xff]
      %v259 = vld [vmem:[%s198 + $0x138] sm:$0xff]
      %v260 = vld [vmem:[%s198 + $0x140] sm:$0xff]
      %v261 = vld [vmem:[%s198 + $0x148] sm:$0xff]
      %v262 = vld [vmem:[%s198 + $0x150] sm:$0xff]
      %v263 = vld [vmem:[%s198 + $0x158] sm:$0xff]
      %v264 = vld [vmem:[%s198 + $0x160] sm:$0xff]
      %v265 = vld [vmem:[%s198 + $0x168] sm:$0xff]
      %v266 = vld [vmem:[%s198 + $0x170] sm:$0xff]
      %v267 = vld [vmem:[%s198 + $0x178] sm:$0xff]
      %v268 = vld [vmem:[%s198 + $0x180] sm:$0xff]
      %v269 = vld [vmem:[%s198 + $0x188] sm:$0xff]
      %v270 = vld [vmem:[%s198 + $0x190] sm:$0xff]
      %v271 = vld [vmem:[%s198 + $0x198] sm:$0xff]
      %v272 = vld [vmem:[%s198 + $0x1a0] sm:$0xff]
      %v273 = vld [vmem:[%s198 + $0x1a8] sm:$0xff]
      %v274 = vld [vmem:[%s198 + $0x1b0] sm:$0xff]
      %v275 = vld [vmem:[%s198 + $0x1b8] sm:$0xff]
      %v276 = vld [vmem:[%s198 + $0x1c0] sm:$0xff]
      %v277 = vld [vmem:[%s198 + $0x1c8] sm:$0xff]
      %v278 = vld [vmem:[%s198 + $0x1d0] sm:$0xff]
      %v279 = vld [vmem:[%s198 + $0x1d8] sm:$0xff]
      %v280 = vld [vmem:[%s198 + $0x1e0] sm:$0xff]
      %v281 = vld [vmem:[%s198 + $0x1e8] sm:$0xff]
      %v282 = vld [vmem:[%s198 + $0x1f0] sm:$0xff]
      %v283 = vld [vmem:[%s198 + $0x1f8] sm:$0xff]
      %v284 = vld [vmem:[%s198 + $0x200] sm:$0xff]
      %v285 = vld [vmem:[%s198 + $0x208] sm:$0xff]
      %v286 = vld [vmem:[%s198 + $0x210] sm:$0xff]
      %v287 = vld [vmem:[%s198 + $0x218] sm:$0xff]
      %v288 = vld [vmem:[%s198 + $0x220] sm:$0xff]
      %v289 = vld [vmem:[%s198 + $0x228] sm:$0xff]
      %v290 = vld [vmem:[%s198 + $0x230] sm:$0xff]
      %v291 = vld [vmem:[%s198 + $0x238] sm:$0xff]
      %v292 = vld [vmem:[%s198 + $0x240] sm:$0xff]
      %v293 = vld [vmem:[%s198 + $0x248] sm:$0xff]
      %v294 = vld [vmem:[%s198 + $0x250] sm:$0xff]
      %v295 = vld [vmem:[%s198 + $0x258] sm:$0xff]
      %v296 = vld [vmem:[%s198 + $0x260] sm:$0xff]
      %v297 = vld [vmem:[%s198 + $0x268] sm:$0xff]
      %v298 = vld [vmem:[%s198 + $0x270] sm:$0xff]
      %v299 = vld [vmem:[%s198 + $0x278] sm:$0xff]
      %v300 = vld [vmem:[%s198 + $0x280] sm:$0xff]
      %v301 = vld [vmem:[%s198 + $0x288] sm:$0xff]
      %v302 = vld [vmem:[%s198 + $0x290] sm:$0xff]
      %v303 = vld [vmem:[%s198 + $0x298] sm:$0xff]
      %v304 = vld [vmem:[%s198 + $0x2a0] sm:$0xff]
      %v305 = vld [vmem:[%s198 + $0x2a8] sm:$0xff]
      %v306 = vld [vmem:[%s198 + $0x2b0] sm:$0xff]
      %v307 = vld [vmem:[%s198 + $0x2b8] sm:$0xff]
      %v308 = vld [vmem:[%s198 + $0x2c0] sm:$0xff]
      %v309 = vld [vmem:[%s198 + $0x2c8] sm:$0xff]
      %v310 = vld [vmem:[%s198 + $0x2d0] sm:$0xff]
      %v311 = vld [vmem:[%s198 + $0x2d8] sm:$0xff]
      %v312 = vld [vmem:[%s198 + $0x2e0] sm:$0xff]
      %v313 = vld [vmem:[%s198 + $0x2e8] sm:$0xff]
      %v314 = vld [vmem:[%s198 + $0x2f0] sm:$0xff]
      %v315 = vld [vmem:[%s198 + $0x2f8] sm:$0xff]
      %v316 = vld [vmem:[%s198 + $0x300] sm:$0xff]
      %v317 = vld [vmem:[%s198 + $0x308] sm:$0xff]
      %v318 = vld [vmem:[%s198 + $0x310] sm:$0xff]
      %v319 = vld [vmem:[%s198 + $0x318] sm:$0xff]
      %v320 = vld [vmem:[%s198 + $0x320] sm:$0xff]
      %v321 = vld [vmem:[%s198 + $0x328] sm:$0xff]
      %v322 = vld [vmem:[%s198 + $0x330] sm:$0xff]
      %v323 = vld [vmem:[%s198 + $0x338] sm:$0xff]
      %v324 = vld [vmem:[%s198 + $0x340] sm:$0xff]
      %v325 = vld [vmem:[%s198 + $0x348] sm:$0xff]
      %v326 = vld [vmem:[%s198 + $0x350] sm:$0xff]
      %v327 = vld [vmem:[%s198 + $0x358] sm:$0xff]
      %v328 = vld [vmem:[%s198 + $0x360] sm:$0xff]
      %v329 = vld [vmem:[%s198 + $0x368] sm:$0xff]
      %v330 = vld [vmem:[%s198 + $0x370] sm:$0xff]
      %v331 = vld [vmem:[%s198 + $0x378] sm:$0xff]
      %v332 = vld [vmem:[%s198 + $0x380] sm:$0xff]
      %v333 = vld [vmem:[%s198 + $0x388] sm:$0xff]
      %v334 = vld [vmem:[%s198 + $0x390] sm:$0xff]
      %v335 = vld [vmem:[%s198 + $0x398] sm:$0xff]
      %v336 = vld [vmem:[%s198 + $0x3a0] sm:$0xff]
      %v337 = vld [vmem:[%s198 + $0x3a8] sm:$0xff]
      %v338 = vld [vmem:[%s198 + $0x3b0] sm:$0xff]
      %v339 = vld [vmem:[%s198 + $0x3b8] sm:$0xff]
      %v340 = vld [vmem:[%s198 + $0x3c0] sm:$0xff]
      %v341 = vld [vmem:[%s198 + $0x3c8] sm:$0xff]
      %v342 = vld [vmem:[%s198 + $0x3d0] sm:$0xff]
      %v343 = vld [vmem:[%s198 + $0x3d8] sm:$0xff]
      %v344 = vld [vmem:[%s198 + $0x3e0] sm:$0xff]
      %v345 = vld [vmem:[%s198 + $0x3e8] sm:$0xff]
      %v346 = vld [vmem:[%s198 + $0x3f0] sm:$0xff]
      %v347 = vld [vmem:[%s198 + $0x3f8] sm:$0xff]
      %v348 = vld [vmem:[%s198 + $0x400] sm:$0xff]
      %v349 = vld [vmem:[%s198 + $0x408] sm:$0xff]
      %v350 = vld [vmem:[%s198 + $0x410] sm:$0xff]
      %v351 = vld [vmem:[%s198 + $0x418] sm:$0xff]
      %v352 = vld [vmem:[%s198 + $0x420] sm:$0xff]
      %v353 = vld [vmem:[%s198 + $0x428] sm:$0xff]
      %v354 = vld [vmem:[%s198 + $0x430] sm:$0xff]
      %v355 = vld [vmem:[%s198 + $0x438] sm:$0xff]
      %v356 = vld [vmem:[%s198 + $0x440] sm:$0xff]
      %v357 = vld [vmem:[%s198 + $0x448] sm:$0xff]
      %v358 = vld [vmem:[%s198 + $0x450] sm:$0xff]
      %v359 = vld [vmem:[%s198 + $0x458] sm:$0xff]
      %v360 = vld [vmem:[%s198 + $0x460] sm:$0xff]
      %v361 = vld [vmem:[%s198 + $0x468] sm:$0xff]
      %v362 = vld [vmem:[%s198 + $0x470] sm:$0xff]
      %v363 = vld [vmem:[%s198 + $0x478] sm:$0xff]
      %v364 = vld [vmem:[%s198 + $0x480] sm:$0xff]
      %v365 = vld [vmem:[%s198 + $0x488] sm:$0xff]
      %v366 = vld [vmem:[%s198 + $0x490] sm:$0xf]
      %v367 = vld [vmem:[%s198 + $0x498] sm:$0xf]
      %v368 = vld [vmem:[%s2] sm:$0xff]
      %v369 = vld [vmem:[%s2 + $0x8] sm:$0xf]
      %371 = vset.pattern.permute.xlu0 0
      %372 = vperm.xlu0 %371, %v368
      %v373 = vpop.permute.xlu0 %372
      %376 = vset.pattern.permute.xlu0 0
      %377 = vperm.xlu0 %376, %v369
      %v378 = vpop.permute.xlu0 %377
      %vm380 = vcmask 621568
      %v382 = vsel %vm380, %v214, 0
      %v385 = vsel %vm380, %v219, 0
      %vm387 = vcmask 1043456
      %v389 = vsel %vm387, %v366, 0
      %v392 = vsel %vm387, %v367, 0
      %394 = vmatpush.msra.mxu0 %v250
      %395 = vmatpush.msra.mxu0 %v248
      %396 = vmatpush.msra.mxu0 %v246
      %397 = vmatpush.msra.mxu0 %v244
      %398 = vmatpush.msra.mxu0 %v242
      %399 = vmatpush.msra.mxu0 %v240
      %400 = vmatpush.msra.mxu0 %v238
      %401 = vmatpush.msra.mxu0 %v236
      %402 = vmatpush.msra.mxu0 %v234
      %403 = vmatpush.msra.mxu0 %v232
      %404 = vmatpush.msra.mxu0 %v230
      %405 = vmatpush.msra.mxu0 %v228
      %406 = vmatpush.msra.mxu0 %v226
      %407 = vmatpush.msra.mxu0 %v224
      %408 = vmatpush.msra.mxu0 %v222
      %409 = vmatpush.msra.mxu0 %v220
      %410 = vmatmul.f32.gmra.mxu0 %v210
      %v411 = vpop.f32.mrf.mxu0
      %v412 = vadd.f32 %v373, %v411
      %413 = vmatmul.f32.gmra.mxu0 %v215
      %v414 = vpop.f32.mrf.mxu0
      %v415 = vadd.f32 %v378, %v414
      %416 = vdwg.mxu0
      %417 = vmatpush.msra.mxu0 %v282
      %418 = vmatpush.msra.mxu0 %v280
      %419 = vmatpush.msra.mxu0 %v278
      %420 = vmatpush.msra.mxu0 %v276
      %421 = vmatpush.msra.mxu0 %v274
      %422 = vmatpush.msra.mxu0 %v272
      %423 = vmatpush.msra.mxu0 %v270
      %424 = vmatpush.msra.mxu0 %v268
      %425 = vmatpush.msra.mxu0 %v266
      %426 = vmatpush.msra.mxu0 %v264
      %427 = vmatpush.msra.mxu0 %v262
      %428 = vmatpush.msra.mxu0 %v260
      %429 = vmatpush.msra.mxu0 %v258
      %430 = vmatpush.msra.mxu0 %v256
      %431 = vmatpush.msra.mxu0 %v254
      %432 = vmatpush.msra.mxu0 %v252
      %433 = vmatmul.f32.gmra.mxu0 %v211
      %v434 = vpop.f32.mrf.mxu0
      %v435 = vadd.f32 %v412, %v434
      %436 = vmatmul.f32.gmra.mxu0 %v216
      %v437 = vpop.f32.mrf.mxu0
      %v438 = vadd.f32 %v415, %v437
      %439 = vdwg.mxu0
      %440 = vmatpush.msra.mxu0 %v314
      %441 = vmatpush.msra.mxu0 %v312
      %442 = vmatpush.msra.mxu0 %v310
      %443 = vmatpush.msra.mxu0 %v308
      %444 = vmatpush.msra.mxu0 %v306
      %445 = vmatpush.msra.mxu0 %v304
      %446 = vmatpush.msra.mxu0 %v302
      %447 = vmatpush.msra.mxu0 %v300
      %448 = vmatpush.msra.mxu0 %v298
      %449 = vmatpush.msra.mxu0 %v296
      %450 = vmatpush.msra.mxu0 %v294
      %451 = vmatpush.msra.mxu0 %v292
      %452 = vmatpush.msra.mxu0 %v290
      %453 = vmatpush.msra.mxu0 %v288
      %454 = vmatpush.msra.mxu0 %v286
      %455 = vmatpush.msra.mxu0 %v284
      %456 = vmatmul.f32.gmra.mxu0 %v212
      %v457 = vpop.f32.mrf.mxu0
      %v458 = vadd.f32 %v435, %v457
      %459 = vmatmul.f32.gmra.mxu0 %v217
      %v460 = vpop.f32.mrf.mxu0
      %v461 = vadd.f32 %v438, %v460
      %462 = vdwg.mxu0
      %463 = vmatpush.msra.mxu0 %v346
      %464 = vmatpush.msra.mxu0 %v344
      %465 = vmatpush.msra.mxu0 %v342
      %466 = vmatpush.msra.mxu0 %v340
      %467 = vmatpush.msra.mxu0 %v338
      %468 = vmatpush.msra.mxu0 %v336
      %469 = vmatpush.msra.mxu0 %v334
      %470 = vmatpush.msra.mxu0 %v332
      %471 = vmatpush.msra.mxu0 %v330
      %472 = vmatpush.msra.mxu0 %v328
      %473 = vmatpush.msra.mxu0 %v326
      %474 = vmatpush.msra.mxu0 %v324
      %475 = vmatpush.msra.mxu0 %v322
      %476 = vmatpush.msra.mxu0 %v320
      %477 = vmatpush.msra.mxu0 %v318
      %478 = vmatpush.msra.mxu0 %v316
      %479 = vmatmul.f32.gmra.mxu0 %v213
      %v480 = vpop.f32.mrf.mxu0
      %v481 = vadd.f32 %v458, %v480
      %482 = vmatmul.f32.gmra.mxu0 %v218
      %v483 = vpop.f32.mrf.mxu0
      %v484 = vadd.f32 %v461, %v483
      %485 = vdwg.mxu0
      %486 = vmatpush.msra.mxu0 0.0
      %487 = vmatpush.msra.mxu0 0.0
      %488 = vmatpush.msra.mxu0 0.0
      %489 = vmatpush.msra.mxu0 0.0
      %490 = vmatpush.msra.mxu0 0.0
      %491 = vmatpush.msra.mxu0 0.0
      %492 = vmatpush.msra.mxu0 %v389
      %493 = vmatpush.msra.mxu0 %v364
      %494 = vmatpush.msra.mxu0 %v362
      %495 = vmatpush.msra.mxu0 %v360
      %496 = vmatpush.msra.mxu0 %v358
      %497 = vmatpush.msra.mxu0 %v356
      %498 = vmatpush.msra.mxu0 %v354
      %499 = vmatpush.msra.mxu0 %v352
      %500 = vmatpush.msra.mxu0 %v350
      %501 = vmatpush.msra.mxu0 %v348
      %502 = vmatmul.f32.gmra.mxu0 %v382
      %v503 = vpop.f32.mrf.mxu0
      %v504 = vadd.f32 %v481, %v503
      %505 = vmatmul.f32.gmra.mxu0 %v385
      %v506 = vpop.f32.mrf.mxu0
      %v507 = vadd.f32 %v484, %v506
      %508 = vdwg.mxu0
      %509 = vmatpush.msra.mxu0 %v251
      %510 = vmatpush.msra.mxu0 %v249
      %511 = vmatpush.msra.mxu0 %v247
      %512 = vmatpush.msra.mxu0 %v245
      %513 = vmatpush.msra.mxu0 %v243
      %514 = vmatpush.msra.mxu0 %v241
      %515 = vmatpush.msra.mxu0 %v239
      %516 = vmatpush.msra.mxu0 %v237
      %517 = vmatpush.msra.mxu0 %v235
      %518 = vmatpush.msra.mxu0 %v233
      %519 = vmatpush.msra.mxu0 %v231
      %520 = vmatpush.msra.mxu0 %v229
      %521 = vmatpush.msra.mxu0 %v227
      %522 = vmatpush.msra.mxu0 %v225
      %523 = vmatpush.msra.mxu0 %v223
      %524 = vmatpush.msra.mxu0 %v221
      %525 = vmatmul.f32.gmra.mxu0 %v210
      %v526 = vpop.f32.mrf.mxu0
      %v527 = vadd.f32 %v373, %v526
      %528 = vmatmul.f32.gmra.mxu0 %v215
      %v529 = vpop.f32.mrf.mxu0
      %v530 = vadd.f32 %v378, %v529
      %531 = vdwg.mxu0
      %532 = vmatpush.msra.mxu0 %v283
      %533 = vmatpush.msra.mxu0 %v281
      %534 = vmatpush.msra.mxu0 %v279
      %535 = vmatpush.msra.mxu0 %v277
      %536 = vmatpush.msra.mxu0 %v275
      %537 = vmatpush.msra.mxu0 %v273
      %538 = vmatpush.msra.mxu0 %v271
      %539 = vmatpush.msra.mxu0 %v269
      %540 = vmatpush.msra.mxu0 %v267
      %541 = vmatpush.msra.mxu0 %v265
      %542 = vmatpush.msra.mxu0 %v263
      %543 = vmatpush.msra.mxu0 %v261
      %544 = vmatpush.msra.mxu0 %v259
      %545 = vmatpush.msra.mxu0 %v257
      %546 = vmatpush.msra.mxu0 %v255
      %547 = vmatpush.msra.mxu0 %v253
      %548 = vmatmul.f32.gmra.mxu0 %v211
      %v549 = vpop.f32.mrf.mxu0
      %v550 = vadd.f32 %v527, %v549
      %551 = vmatmul.f32.gmra.mxu0 %v216
      %v552 = vpop.f32.mrf.mxu0
      %v553 = vadd.f32 %v530, %v552
      %554 = vdwg.mxu0
      %555 = vmatpush.msra.mxu0 %v315
      %556 = vmatpush.msra.mxu0 %v313
      %557 = vmatpush.msra.mxu0 %v311
      %558 = vmatpush.msra.mxu0 %v309
      %559 = vmatpush.msra.mxu0 %v307
      %560 = vmatpush.msra.mxu0 %v305
      %561 = vmatpush.msra.mxu0 %v303
      %562 = vmatpush.msra.mxu0 %v301
      %563 = vmatpush.msra.mxu0 %v299
      %564 = vmatpush.msra.mxu0 %v297
      %565 = vmatpush.msra.mxu0 %v295
      %566 = vmatpush.msra.mxu0 %v293
      %567 = vmatpush.msra.mxu0 %v291
      %568 = vmatpush.msra.mxu0 %v289
      %569 = vmatpush.msra.mxu0 %v287
      %570 = vmatpush.msra.mxu0 %v285
      %571 = vmatmul.f32.gmra.mxu0 %v212
      %v572 = vpop.f32.mrf.mxu0
      %v573 = vadd.f32 %v550, %v572
      %574 = vmatmul.f32.gmra.mxu0 %v217
      %v575 = vpop.f32.mrf.mxu0
      %v576 = vadd.f32 %v553, %v575
      %577 = vdwg.mxu0
      %578 = vmatpush.msra.mxu0 %v347
      %579 = vmatpush.msra.mxu0 %v345
      %580 = vmatpush.msra.mxu0 %v343
      %581 = vmatpush.msra.mxu0 %v341
      %582 = vmatpush.msra.mxu0 %v339
      %583 = vmatpush.msra.mxu0 %v337
      %584 = vmatpush.msra.mxu0 %v335
      %585 = vmatpush.msra.mxu0 %v333
      %586 = vmatpush.msra.mxu0 %v331
      %587 = vmatpush.msra.mxu0 %v329
      %588 = vmatpush.msra.mxu0 %v327
      %589 = vmatpush.msra.mxu0 %v325
      %590 = vmatpush.msra.mxu0 %v323
      %591 = vmatpush.msra.mxu0 %v321
      %592 = vmatpush.msra.mxu0 %v319
      %593 = vmatpush.msra.mxu0 %v317
      %594 = vmatmul.f32.gmra.mxu0 %v213
      %v595 = vpop.f32.mrf.mxu0
      %v596 = vadd.f32 %v573, %v595
      %597 = vmatmul.f32.gmra.mxu0 %v218
      %v598 = vpop.f32.mrf.mxu0
      %v599 = vadd.f32 %v576, %v598
      %600 = vdwg.mxu0
      %601 = vmatpush.msra.mxu0 0.0
      %602 = vmatpush.msra.mxu0 0.0
      %603 = vmatpush.msra.mxu0 0.0
      %604 = vmatpush.msra.mxu0 0.0
      %605 = vmatpush.msra.mxu0 0.0
      %606 = vmatpush.msra.mxu0 0.0
      %607 = vmatpush.msra.mxu0 %v392
      %608 = vmatpush.msra.mxu0 %v365
      %609 = vmatpush.msra.mxu0 %v363
      %610 = vmatpush.msra.mxu0 %v361
      %611 = vmatpush.msra.mxu0 %v359
      %612 = vmatpush.msra.mxu0 %v357
      %613 = vmatpush.msra.mxu0 %v355
      %614 = vmatpush.msra.mxu0 %v353
      %615 = vmatpush.msra.mxu0 %v351
      %616 = vmatpush.msra.mxu0 %v349
      %617 = vmatmul.f32.gmra.mxu0 %v382
      %v618 = vpop.f32.mrf.mxu0
      %v619 = vadd.f32 %v596, %v618
      %620 = vmatmul.f32.gmra.mxu0 %v385
      %v621 = vpop.f32.mrf.mxu0
      %v622 = vadd.f32 %v599, %v621
      %623 = vdwg.mxu0
      %v624 = vmin.f32 %v504, 0.0
      %v625 = vmin.f32 %v619, 0.0
      %v626 = vmin.f32 %v507, 0.0
      %v627 = vmin.f32 %v622, 0.0
      %v628 = vmul.f32 %v624, 1.442695
      %v629 = vpow.pop %v628
      %v630 = vmul.f32 %v625, 1.442695
      %v631 = vpow.pop %v630
      %v632 = vmul.f32 %v626, 1.442695
      %v633 = vpow.pop %v632
      %v634 = vmul.f32 %v627, 1.442695
      %v635 = vpow.pop %v634
      %v636 = vsub.f32 %v629, 1.0
      %v637 = vsub.f32 %v631, 1.0
      %v638 = vsub.f32 %v633, 1.0
      %v639 = vsub.f32 %v635, 1.0
      %v640 = vmul.f32 %v636, 1.6732632
      %v641 = vmul.f32 %v637, 1.6732632
      %v642 = vmul.f32 %v638, 1.6732632
      %v643 = vmul.f32 %v639, 1.6732632
      %vm644 = vcmp.gt.f32.partialorder %v504, 0.0
      %vm645 = vcmp.gt.f32.partialorder %v619, 0.0
      %vm646 = vcmp.gt.f32.partialorder %v507, 0.0
      %vm647 = vcmp.gt.f32.partialorder %v622, 0.0
      %v648 = vsel %vm644, %v504, %v640
      %v649 = vsel %vm645, %v619, %v641
      %v650 = vsel %vm646, %v507, %v642
      %v651 = vsel %vm647, %v622, %v643
      %v652 = vmul.f32 %v648, 1.050701
      %v653 = vmul.f32 %v649, 1.050701
      %v654 = vmul.f32 %v650, 1.050701
      %v655 = vmul.f32 %v651, 1.050701
      %656 = vst [vmem:[%s208] sm:$0xff] %v652
      %657 = vst [vmem:[%s208 + $0x8] sm:$0xff] %v653
      %658 = vst [vmem:[%s208 + $0x10] sm:$0xf] %v654
      %659 = vst [vmem:[%s208 + $0x18] sm:$0xf] %v655
      %s660 = smul.u32 2, %s19
      %p661 = scmp.lt.s32.totalorder %s18, 1
      %s662 = scalar_select %p661, %s18, 1
      %p663 = scmp.lt.s32.totalorder %s660, 1
      %s664 = scalar_select %p663, %s660, 1
      %s665 = smul.addr %s662, 4
      %s666 = sadd.s32 %s664, %s665
      %s667 = smul.addr %s666, 8
      %s668 = scalar_lea.vmem %s3, %s667
      // Predicated region
      $region33: #{residual_network_forward.33} parent=31 // pred_check
        %p669 = pneg %p116
      $region34: #{residual_network_forward.33} parent=31 // pred_check_branch
        %671 = sbr.rel (%p669) target = $region36
      $region35: #{residual_network_forward.33} parent=31 // pred_region
        %s672 = smul.u32 2, %s19
      $region36: #{residual_network_forward.33} parent=31 // pred_fallthru
        _
    $region32: #{residual_network_forward.33} parent=5 // pred_fallthru
      _
    %p673 = scmp.le.s32.totalorder 2, %s9
    // Predicated region
    $region37: #{residual_network_forward.33} parent=5 // pred_check
      %p674 = pneg %p673
    $region38: #{residual_network_forward.33} parent=5 // pred_check_branch
      %676 = sbr.rel (%p674) target = $region40
    $region39: #{residual_network_forward.33} parent=5 // pred_region
      %s677 = ssub.s32 %s9, 2
      // Predicated region
      $region41: #{residual_network_forward.33} parent=39 // pred_check
        %p678 = pneg %p122
      $region42: #{residual_network_forward.33} parent=39 // pred_check_branch
        %680 = sbr.rel (%p678) target = $region44
      $region43: #{residual_network_forward.33} parent=39 // pred_region
        %s681 = smul.u32 2, %s21
        %p682 = scmp.lt.s32.totalorder %s20, 1
        %s683 = scalar_select %p682, %s20, 1
        %p684 = scmp.lt.s32.totalorder %s681, 1
        %s685 = scalar_select %p684, %s681, 1
        %s686 = smul.addr %s683, 4
        %s687 = sadd.s32 %s685, %s686
        %s688 = smul.addr %s687, 8
        %s689 = scalar_lea.vmem %s3, %s688
      $region44: #{residual_network_forward.33} parent=39 // pred_fallthru
        _
    $region40: #{residual_network_forward.33} parent=5 // pred_fallthru
      _
  $region6: #{residual_network_forward.33} parent=0 // loop_footer
    %s13 = sadd.s32 1, %s9
  $region7: #{residual_network_forward.33} parent=0 // loop_footer_branch
    %8 = sbr.rel target = $region3
  $region8: #{residual_network_forward.33} parent=0 // loop_exit
    _

// kernel: residual_network_forward.34
$region0: #{residual_network_forward.34}
  #allocation0 [shape = 'u32[]', space=smem, size = 0x4, offset = 0x4, fixed_abs, tag = 'smem constant byte address 0x4 - core index']
  #allocation1 [shape = 'u32[72,128]{1,0:T(1,128)}', space=vmem, size = 0x9000, scoped, tag = 'internal scratch']
  %s0 = inlined_call_operand.vmem [shape: f32[4,300], index: 0, kind: input, shape index: {}]
  %s1 = inlined_call_operand.vmem [shape: f32[2,300,256], index: 1, kind: input, shape index: {}]
  %s2 = inlined_call_operand.vmem [shape: f32[4,1], index: 2, kind: input, shape index: {}]
  %s3 = inlined_call_operand.vmem [shape: f32[2,4,256], index: 3, kind: output, shape index: {}]
  %s4 = sld [smem:[#allocation0]]
  $region45: #{residual_network_forward.34} parent=0
    _
  %s6 = ssub.s32 1, %s4
  %s7 = scalar_select 0, %s6, %s4
  loop: start=0, step=1, limit=4
  $region2: #{residual_network_forward.34} parent=0 // loop_pre_header
    _
  $region3: #{residual_network_forward.34} parent=0 // loop_header
    %s9 = sphi 0, %s13
    %p10 = scmp.ge.s32.totalorder %s9, 4
    %s16 = sphi 0, %s28
    %s17 = sphi 0, %s24
    %s18 = sphi 0, %s16
    %s19 = sphi 0, %s17
    %s20 = sphi 0, %s18
    %s21 = sphi 0, %s19
    %s29 = sphi 0, %s29
    %s31 = sphi 0, %s29
    %s32 = sphi 0, %s31
    %s46 = sphi 0, %s32
    %s54 = sphi 0, %s56
    %s57 = sphi 0, %s54
    %s58 = sphi 0, %s57
    %s74 = sphi 0, %s58
    %s78 = sphi 0, %s78
    %s80 = sphi 0, %s78
    %s81 = sphi 0, %s80
    %s95 = sphi 0, %s81
    %s103 = sphi 0, %s105
    %s106 = sphi 0, %s103
    %s107 = sphi 0, %s106
    %s123 = sphi 0, %s107
  $region4: #{residual_network_forward.34} parent=0 // loop_header_branch
    %12 = sbr.rel (%p10) target = $region8
  $region5: #{residual_network_forward.34} parent=0 // loop_body
    %s14 = ssub.s32 %s9, 1
    %s15 = ssub.s32 %s9, 2
    %s22 = sadd.s32 1, %s17
    %p23 = scmp.ge.s32.totalorder %s22, 1
    %s24 = scalar_select %p23, 0, %s22
    %s25 = sadd.s32 1, %s16
    %s26 = scalar_select %p23, %s25, %s16
    %p27 = scmp.ge.s32.totalorder %s26, 2
    %s28 = scalar_select %p27, 0, %s26
    %s30 = sadd.s32 %s29, 1
    %p33 = scmp.eq.s32.totalorder %s9, 1
    %p34 = scmp.ne.s32.totalorder %s29, %s31
    %p35 = scmp.eq.s32.totalorder %s9, 0
    %p36 = por %p34, %p35
    %p37 = scmp.ne.s32.totalorder %s29, %s31
    %p38 = scmp.eq.s32.totalorder %s14, 1
    %p39 = por %p37, %p38
    %p40 = scmp.ne.s32.totalorder %s31, %s32
    %p41 = scmp.eq.s32.totalorder %s14, 0
    %p42 = por %p40, %p41
    %p43 = scmp.ne.s32.totalorder %s31, %s32
    %p44 = scmp.eq.s32.totalorder %s15, 1
    %p45 = por %p43, %p44
    %p47 = scmp.ne.s32.totalorder %s32, %s46
    %p48 = scmp.eq.s32.totalorder %s15, 0
    %p49 = por %p47, %p48
    %s50 = ssub.s32 %s16, %s28
    %s51 = ssub.s32 %s17, %s24
    %s52 = sor.u32 %s50, %s51
    %p53 = scmp.eq.s32.totalorder %s52, 0
    %s55 = sadd.s32 %s54, 1
    %s56 = scalar_select %p53, %s54, %s55
    %p59 = pneg %p53
    %p60 = scmp.eq.s32.totalorder %s9, 1
    %p61 = por %p59, %p60
    %p62 = scmp.ne.s32.totalorder %s54, %s57
    %p63 = scmp.eq.s32.totalorder %s9, 0
    %p64 = por %p62, %p63
    %p65 = scmp.ne.s32.totalorder %s54, %s57
    %p66 = scmp.eq.s32.totalorder %s14, 1
    %p67 = por %p65, %p66
    %p68 = scmp.ne.s32.totalorder %s57, %s58
    %p69 = scmp.eq.s32.totalorder %s14, 0
    %p70 = por %p68, %p69
    %p71 = scmp.ne.s32.totalorder %s57, %s58
    %p72 = scmp.eq.s32.totalorder %s15, 1
    %p73 = por %p71, %p72
    %p75 = scmp.ne.s32.totalorder %s58, %s74
    %p76 = scmp.eq.s32.totalorder %s15, 0
    %p77 = por %p75, %p76
    %s79 = sadd.s32 %s78, 1
    %p82 = scmp.eq.s32.totalorder %s9, 1
    %p83 = scmp.ne.s32.totalorder %s78, %s80
    %p84 = scmp.eq.s32.totalorder %s9, 0
    %p85 = por %p83, %p84
    %p86 = scmp.ne.s32.totalorder %s78, %s80
    %p87 = scmp.eq.s32.totalorder %s14, 1
    %p88 = por %p86, %p87
    %p89 = scmp.ne.s32.totalorder %s80, %s81
    %p90 = scmp.eq.s32.totalorder %s14, 0
    %p91 = por %p89, %p90
    %p92 = scmp.ne.s32.totalorder %s80, %s81
    %p93 = scmp.eq.s32.totalorder %s15, 1
    %p94 = por %p92, %p93
    %p96 = scmp.ne.s32.totalorder %s81, %s95
    %p97 = scmp.eq.s32.totalorder %s15, 0
    %p98 = por %p96, %p97
    %s99 = ssub.s32 %s16, %s28
    %s100 = ssub.s32 %s17, %s24
    %s101 = sor.u32 %s99, %s100
    %p102 = scmp.eq.s32.totalorder %s101, 0
    %s104 = sadd.s32 %s103, 1
    %s105 = scalar_select %p102, %s103, %s104
    %p108 = pneg %p102
    %p109 = scmp.eq.s32.totalorder %s9, 1
    %p110 = por %p108, %p109
    %p111 = scmp.ne.s32.totalorder %s103, %s106
    %p112 = scmp.eq.s32.totalorder %s9, 0
    %p113 = por %p111, %p112
    %p114 = scmp.ne.s32.totalorder %s103, %s106
    %p115 = scmp.eq.s32.totalorder %s14, 1
    %p116 = por %p114, %p115
    %p117 = scmp.ne.s32.totalorder %s106, %s107
    %p118 = scmp.eq.s32.totalorder %s14, 0
    %p119 = por %p117, %p118
    %p120 = scmp.ne.s32.totalorder %s106, %s107
    %p121 = scmp.eq.s32.totalorder %s15, 1
    %p122 = por %p120, %p121
    %p124 = scmp.ne.s32.totalorder %s107, %s123
    %p125 = scmp.eq.s32.totalorder %s15, 0
    %p126 = por %p124, %p125
    %p127 = scmp.le.s32.totalorder 1, %s9
    %p128 = scmp.lt.s32.totalorder %s9, 3
    %p129 = pnand %p127, %p128
    %p130 = pneg %p129
    // Predicated region
    $region9: #{residual_network_forward.34} parent=5 // pred_check
      _
    $region10: #{residual_network_forward.34} parent=5 // pred_check_branch
      %132 = sbr.rel (%p129) target = $region12
    $region11: #{residual_network_forward.34} parent=5 // pred_region
      %s133 = ssub.s32 %s9, 1
      // Predicated region
      $region13: #{residual_network_forward.34} parent=11 // pred_check
        %p134 = pneg %p42
      $region14: #{residual_network_forward.34} parent=11 // pred_check_branch
        %136 = sbr.rel (%p134) target = $region16
      $region15: #{residual_network_forward.34} parent=11 // pred_region
        _
      $region16: #{residual_network_forward.34} parent=11 // pred_fallthru
        _
      // Predicated region
      $region17: #{residual_network_forward.34} parent=11 // pred_check
        %p137 = pneg %p91
      $region18: #{residual_network_forward.34} parent=11 // pred_check_branch
        %139 = sbr.rel (%p137) target = $region20
      $region19: #{residual_network_forward.34} parent=11 // pred_region
        _
      $region20: #{residual_network_forward.34} parent=11 // pred_fallthru
        _
    $region12: #{residual_network_forward.34} parent=5 // pred_fallthru
      _
    %p140 = scmp.lt.s32.totalorder %s9, 2
    // Predicated region
    $region21: #{residual_network_forward.34} parent=5 // pred_check
      %p141 = pneg %p140
    $region22: #{residual_network_forward.34} parent=5 // pred_check_branch
      %143 = sbr.rel (%p141) target = $region24
    $region23: #{residual_network_forward.34} parent=5 // pred_region
      // Predicated region
      $region25: #{residual_network_forward.34} parent=23 // pred_check
        %p144 = pneg %p64
      $region26: #{residual_network_forward.34} parent=23 // pred_check_branch
        %146 = sbr.rel (%p144) target = $region28
      $region27: #{residual_network_forward.34} parent=23 // pred_region
        %s147 = smul.u32 2, %s17
        %p148 = scmp.lt.s32.totalorder %s16, 1
        %s149 = scalar_select %p148, %s16, 1
        %p150 = scmp.lt.s32.totalorder %s147, 1
        %s151 = scalar_select %p150, %s147, 1
        %s152 = smul.addr %s149, 76
        %s153 = sadd.s32 %s151, %s152
        %s154 = smul.addr %s153, 8
        %s155 = scalar_lea.vmem %s1, %s154
        %s156 = smul.u32 2, %s17
      $region28: #{residual_network_forward.34} parent=23 // pred_fallthru
        _
    $region24: #{residual_network_forward.34} parent=5 // pred_fallthru
      _
    %p157 = scmp.le.s32.totalorder 1, %s9
    %p158 = scmp.lt.s32.totalorder %s9, 3
    %p159 = pnand %p157, %p158
    %p160 = pneg %p159
    // Predicated region
    $region29: #{residual_network_forward.34} parent=5 // pred_check
      _
    $region30: #{residual_network_forward.34} parent=5 // pred_check_branch
      %162 = sbr.rel (%p159) target = $region32
    $region31: #{residual_network_forward.34} parent=5 // pred_region
      %s163 = ssub.s32 %s9, 1
      %p164 = pneg %p42
      %p165 = pneg %p39
      %s166 = smul.u32 2, %s19
      %p167 = scmp.lt.s32.totalorder %s18, 1
      %s168 = scalar_select %p167, %s18, 1
      %p169 = scmp.lt.s32.totalorder %s166, 1
      %s170 = scalar_select %p169, %s166, 1
      %s171 = smul.addr %s168, 76
      %s172 = sadd.s32 %s170, %s171
      %s173 = smul.addr %s172, 8
      %s174 = scalar_lea.vmem %s1, %s173
      %p175 = pneg %p70
      %p176 = pneg %p67
      %p177 = pneg %p91
      %p178 = pneg %p88
      %p179 = pneg %p119
      %p180 = pneg %p116
      %s181 = smul.u32 2, %s19
      %p182 = scmp.lt.s32.totalorder %s18, 1
      %s183 = scalar_select %p182, %s18, 1
      %p184 = scmp.lt.s32.totalorder %s181, 1
      %s185 = scalar_select %p184, %s181, 1
      %s186 = smul.addr %s183, 2
      %s187 = sadd.s32 %s185, %s186
      %s188 = smul.addr %s187, 4
      %s189 = scalar_lea.vmem %s3, %s188
      %s190 = smul.u32 2, %s19
      %p191 = scmp.lt.s32.totalorder %s18, 1
      %s192 = scalar_select %p191, %s18, 1
      %p193 = scmp.lt.s32.totalorder %s190, 1
      %s194 = scalar_select %p193, %s190, 1
      %s195 = smul.addr %s192, 76
      %s196 = sadd.s32 %s194, %s195
      %s197 = smul.addr %s196, 8
      %s198 = scalar_lea.vmem %s1, %s197
      %s199 = smul.u32 2, %s19
      %s200 = smul.u32 2, %s19
      %p201 = scmp.lt.s32.totalorder %s18, 1
      %s202 = scalar_select %p201, %s18, 1
      %p203 = scmp.lt.s32.totalorder %s200, 1
      %s204 = scalar_select %p203, %s200, 1
      %s205 = smul.addr %s202, 2
      %s206 = sadd.s32 %s204, %s205
      %s207 = smul.addr %s206, 4
      %s208 = scalar_lea.vmem %s3, %s207
      %s209 = smul.u32 2, %s19
      %v210 = vld [vmem:[%s0] sm:$0xff]
      %v211 = vld [vmem:[%s0 + $0x8] sm:$0xf]
      %v212 = vld [vmem:[%s198] sm:$0xff]
      %v213 = vld [vmem:[%s198 + $0x8] sm:$0xff]
      %v214 = vld [vmem:[%s198 + $0x10] sm:$0xff]
      %v215 = vld [vmem:[%s198 + $0x18] sm:$0xff]
      %v216 = vld [vmem:[%s198 + $0x20] sm:$0xff]
      %v217 = vld [vmem:[%s198 + $0x28] sm:$0xff]
      %v218 = vld [vmem:[%s198 + $0x30] sm:$0xff]
      %v219 = vld [vmem:[%s198 + $0x38] sm:$0xff]
      %v220 = vld [vmem:[%s198 + $0x40] sm:$0xff]
      %v221 = vld [vmem:[%s198 + $0x48] sm:$0xff]
      %v222 = vld [vmem:[%s198 + $0x50] sm:$0xff]
      %v223 = vld [vmem:[%s198 + $0x58] sm:$0xff]
      %v224 = vld [vmem:[%s198 + $0x60] sm:$0xff]
      %v225 = vld [vmem:[%s198 + $0x68] sm:$0xff]
      %v226 = vld [vmem:[%s198 + $0x70] sm:$0xff]
      %v227 = vld [vmem:[%s198 + $0x78] sm:$0xff]
      %v228 = vld [vmem:[%s198 + $0x80] sm:$0xff]
      %v229 = vld [vmem:[%s198 + $0x88] sm:$0xff]
      %v230 = vld [vmem:[%s198 + $0x90] sm:$0xff]
      %v231 = vld [vmem:[%s198 + $0x98] sm:$0xff]
      %v232 = vld [vmem:[%s198 + $0xa0] sm:$0xff]
      %v233 = vld [vmem:[%s198 + $0xa8] sm:$0xff]
      %v234 = vld [vmem:[%s198 + $0xb0] sm:$0xff]
      %v235 = vld [vmem:[%s198 + $0xb8] sm:$0xff]
      %v236 = vld [vmem:[%s198 + $0xc0] sm:$0xff]
      %v237 = vld [vmem:[%s198 + $0xc8] sm:$0xff]
      %v238 = vld [vmem:[%s198 + $0xd0] sm:$0xff]
      %v239 = vld [vmem:[%s198 + $0xd8] sm:$0xff]
      %v240 = vld [vmem:[%s198 + $0xe0] sm:$0xff]
      %v241 = vld [vmem:[%s198 + $0xe8] sm:$0xff]
      %v242 = vld [vmem:[%s198 + $0xf0] sm:$0xff]
      %v243 = vld [vmem:[%s198 + $0xf8] sm:$0xff]
      %v244 = vld [vmem:[%s198 + $0x100] sm:$0xff]
      %v245 = vld [vmem:[%s198 + $0x108] sm:$0xff]
      %v246 = vld [vmem:[%s198 + $0x110] sm:$0xff]
      %v247 = vld [vmem:[%s198 + $0x118] sm:$0xff]
      %v248 = vld [vmem:[%s198 + $0x120] sm:$0xff]
      %v249 = vld [vmem:[%s198 + $0x128] sm:$0xff]
      %v250 = vld [vmem:[%s198 + $0x130] sm:$0xff]
      %v251 = vld [vmem:[%s198 + $0x138] sm:$0xff]
      %v252 = vld [vmem:[%s198 + $0x140] sm:$0xff]
      %v253 = vld [vmem:[%s198 + $0x148] sm:$0xff]
      %v254 = vld [vmem:[%s198 + $0x150] sm:$0xff]
      %v255 = vld [vmem:[%s198 + $0x158] sm:$0xff]
      %v256 = vld [vmem:[%s198 + $0x160] sm:$0xff]
      %v257 = vld [vmem:[%s198 + $0x168] sm:$0xff]
      %v258 = vld [vmem:[%s198 + $0x170] sm:$0xff]
      %v259 = vld [vmem:[%s198 + $0x178] sm:$0xff]
      %v260 = vld [vmem:[%s198 + $0x180] sm:$0xff]
      %v261 = vld [vmem:[%s198 + $0x188] sm:$0xff]
      %v262 = vld [vmem:[%s198 + $0x190] sm:$0xff]
      %v263 = vld [vmem:[%s198 + $0x198] sm:$0xff]
      %v264 = vld [vmem:[%s198 + $0x1a0] sm:$0xff]
      %v265 = vld [vmem:[%s198 + $0x1a8] sm:$0xff]
      %v266 = vld [vmem:[%s198 + $0x1b0] sm:$0xff]
      %v267 = vld [vmem:[%s198 + $0x1b8] sm:$0xff]
      %v268 = vld [vmem:[%s198 + $0x1c0] sm:$0xff]
      %v269 = vld [vmem:[%s198 + $0x1c8] sm:$0xff]
      %v270 = vld [vmem:[%s198 + $0x1d0] sm:$0xff]
      %v271 = vld [vmem:[%s198 + $0x1d8] sm:$0xff]
      %v272 = vld [vmem:[%s198 + $0x1e0] sm:$0xff]
      %v273 = vld [vmem:[%s198 + $0x1e8] sm:$0xff]
      %v274 = vld [vmem:[%s198 + $0x1f0] sm:$0xff]
      %v275 = vld [vmem:[%s198 + $0x1f8] sm:$0xff]
      %v276 = vld [vmem:[%s198 + $0x200] sm:$0xff]
      %v277 = vld [vmem:[%s198 + $0x208] sm:$0xff]
      %v278 = vld [vmem:[%s198 + $0x210] sm:$0xff]
      %v279 = vld [vmem:[%s198 + $0x218] sm:$0xff]
      %v280 = vld [vmem:[%s198 + $0x220] sm:$0xff]
      %v281 = vld [vmem:[%s198 + $0x228] sm:$0xff]
      %v282 = vld [vmem:[%s198 + $0x230] sm:$0xff]
      %v283 = vld [vmem:[%s198 + $0x238] sm:$0xff]
      %v284 = vld [vmem:[%s198 + $0x240] sm:$0xff]
      %v285 = vld [vmem:[%s198 + $0x248] sm:$0xff]
      %v286 = vld [vmem:[%s198 + $0x250] sm:$0xf]
      %v287 = vld [vmem:[%s198 + $0x258] sm:$0xf]
      %v288 = vld [vmem:[%s2] sm:$0xf]
      %290 = vset.pattern.permute.xlu0 0
      %291 = vperm.xlu0 %290, %v288
      %v292 = vpop.permute.xlu0 %291
      %296 = vst [vmem:[#allocation1] ss:$2 sm:$0xff] %v210
      %s297 = scalar_lea.vmem [#allocation1], 16
      %298 = vst [vmem:[%s297] ss:$2 sm:$0xff] %v211
      %v299 = vld.sshfl [vmem:[#allocation1] sm:$0xff pattern:$0x75316420]
      %v300 = vld.sshfl [vmem:[#allocation1 + $0x8] sm:$0xff pattern:$0x75316420]
      %v301 = vld.sshfl [vmem:[#allocation1 + $0x10] sm:$0xff pattern:$0x75316420]
      %vm304 = vcmask 359424
      %v305 = vsel %vm304, %v301, 0
      %vm307 = vcmask 1043456
      %v309 = vsel %vm307, %v286, 0
      %v312 = vsel %vm307, %v287, 0
      %314 = vmatpush.msra.mxu0 %v242
      %315 = vmatpush.msra.mxu0 %v240
      %316 = vmatpush.msra.mxu0 %v238
      %317 = vmatpush.msra.mxu0 %v236
      %318 = vmatpush.msra.mxu0 %v234
      %319 = vmatpush.msra.mxu0 %v232
      %320 = vmatpush.msra.mxu0 %v230
      %321 = vmatpush.msra.mxu0 %v228
      %322 = vmatpush.msra.mxu0 %v226
      %323 = vmatpush.msra.mxu0 %v224
      %324 = vmatpush.msra.mxu0 %v222
      %325 = vmatpush.msra.mxu0 %v220
      %326 = vmatpush.msra.mxu0 %v218
      %327 = vmatpush.msra.mxu0 %v216
      %328 = vmatpush.msra.mxu0 %v214
      %329 = vmatpush.msra.mxu0 %v212
      %330 = vmatmul.f32.gmra.mxu0 %v299
      %v331 = vpop.f32.mrf.mxu0
      %v332 = vadd.f32 %v292, %v331
      %333 = vdwg.mxu0
      %334 = vmatpush.msra.mxu0 %v274
      %335 = vmatpush.msra.mxu0 %v272
      %336 = vmatpush.msra.mxu0 %v270
      %337 = vmatpush.msra.mxu0 %v268
      %338 = vmatpush.msra.mxu0 %v266
      %339 = vmatpush.msra.mxu0 %v264
      %340 = vmatpush.msra.mxu0 %v262
      %341 = vmatpush.msra.mxu0 %v260
      %342 = vmatpush.msra.mxu0 %v258
      %343 = vmatpush.msra.mxu0 %v256
      %344 = vmatpush.msra.mxu0 %v254
      %345 = vmatpush.msra.mxu0 %v252
      %346 = vmatpush.msra.mxu0 %v250
      %347 = vmatpush.msra.mxu0 %v248
      %348 = vmatpush.msra.mxu0 %v246
      %349 = vmatpush.msra.mxu0 %v244
      %350 = vmatmul.f32.gmra.mxu0 %v300
      %v351 = vpop.f32.mrf.mxu0
      %v352 = vadd.f32 %v332, %v351
      %353 = vdwg.mxu0
      %354 = vmatpush.msra.mxu0 0.0
      %355 = vmatpush.msra.mxu0 0.0
      %356 = vmatpush.msra.mxu0 0.0
      %357 = vmatpush.msra.mxu0 0.0
      %358 = vmatpush.msra.mxu0 0.0
      %359 = vmatpush.msra.mxu0 0.0
      %360 = vmatpush.msra.mxu0 0.0
      %361 = vmatpush.msra.mxu0 0.0
      %362 = vmatpush.msra.mxu0 0.0
      %363 = vmatpush.msra.mxu0 0.0
      %364 = vmatpush.msra.mxu0 %v309
      %365 = vmatpush.msra.mxu0 %v284
      %366 = vmatpush.msra.mxu0 %v282
      %367 = vmatpush.msra.mxu0 %v280
      %368 = vmatpush.msra.mxu0 %v278
      %369 = vmatpush.msra.mxu0 %v276
      %370 = vmatmul.f32.gmra.mxu0 %v305
      %v371 = vpop.f32.mrf.mxu0
      %v372 = vadd.f32 %v352, %v371
      %373 = vdwg.mxu0
      %374 = vmatpush.msra.mxu0 %v243
      %375 = vmatpush.msra.mxu0 %v241
      %376 = vmatpush.msra.mxu0 %v239
      %377 = vmatpush.msra.mxu0 %v237
      %378 = vmatpush.msra.mxu0 %v235
      %379 = vmatpush.msra.mxu0 %v233
      %380 = vmatpush.msra.mxu0 %v231
      %381 = vmatpush.msra.mxu0 %v229
      %382 = vmatpush.msra.mxu0 %v227
      %383 = vmatpush.msra.mxu0 %v225
      %384 = vmatpush.msra.mxu0 %v223
      %385 = vmatpush.msra.mxu0 %v221
      %386 = vmatpush.msra.mxu0 %v219
      %387 = vmatpush.msra.mxu0 %v217
      %388 = vmatpush.msra.mxu0 %v215
      %389 = vmatpush.msra.mxu0 %v213
      %390 = vmatmul.f32.gmra.mxu0 %v299
      %v391 = vpop.f32.mrf.mxu0
      %v392 = vadd.f32 %v292, %v391
      %393 = vdwg.mxu0
      %394 = vmatpush.msra.mxu0 %v275
      %395 = vmatpush.msra.mxu0 %v273
      %396 = vmatpush.msra.mxu0 %v271
      %397 = vmatpush.msra.mxu0 %v269
      %398 = vmatpush.msra.mxu0 %v267
      %399 = vmatpush.msra.mxu0 %v265
      %400 = vmatpush.msra.mxu0 %v263
      %401 = vmatpush.msra.mxu0 %v261
      %402 = vmatpush.msra.mxu0 %v259
      %403 = vmatpush.msra.mxu0 %v257
      %404 = vmatpush.msra.mxu0 %v255
      %405 = vmatpush.msra.mxu0 %v253
      %406 = vmatpush.msra.mxu0 %v251
      %407 = vmatpush.msra.mxu0 %v249
      %408 = vmatpush.msra.mxu0 %v247
      %409 = vmatpush.msra.mxu0 %v245
      %410 = vmatmul.f32.gmra.mxu0 %v300
      %v411 = vpop.f32.mrf.mxu0
      %v412 = vadd.f32 %v392, %v411
      %413 = vdwg.mxu0
      %414 = vmatpush.msra.mxu0 0.0
      %415 = vmatpush.msra.mxu0 0.0
      %416 = vmatpush.msra.mxu0 0.0
      %417 = vmatpush.msra.mxu0 0.0
      %418 = vmatpush.msra.mxu0 0.0
      %419 = vmatpush.msra.mxu0 0.0
      %420 = vmatpush.msra.mxu0 0.0
      %421 = vmatpush.msra.mxu0 0.0
      %422 = vmatpush.msra.mxu0 0.0
      %423 = vmatpush.msra.mxu0 0.0
      %424 = vmatpush.msra.mxu0 %v312
      %425 = vmatpush.msra.mxu0 %v285
      %426 = vmatpush.msra.mxu0 %v283
      %427 = vmatpush.msra.mxu0 %v281
      %428 = vmatpush.msra.mxu0 %v279
      %429 = vmatpush.msra.mxu0 %v277
      %430 = vmatmul.f32.gmra.mxu0 %v305
      %v431 = vpop.f32.mrf.mxu0
      %v432 = vadd.f32 %v412, %v431
      %433 = vdwg.mxu0
      %v434 = vmin.f32 %v372, 0.0
      %v435 = vmin.f32 %v432, 0.0
      %v436 = vmul.f32 %v434, 1.442695
      %v437 = vpow.pop %v436
      %v438 = vmul.f32 %v435, 1.442695
      %v439 = vpow.pop %v438
      %v440 = vsub.f32 %v437, 1.0
      %v441 = vsub.f32 %v439, 1.0
      %v442 = vmul.f32 %v440, 1.6732632
      %v443 = vmul.f32 %v441, 1.6732632
      %vm444 = vcmp.gt.f32.partialorder %v372, 0.0
      %vm445 = vcmp.gt.f32.partialorder %v432, 0.0
      %v446 = vsel %vm444, %v372, %v442
      %v447 = vsel %vm445, %v432, %v443
      %v448 = vmul.f32 %v446, 1.050701
      %v449 = vmul.f32 %v447, 1.050701
      %v452 = vrot.slane %v449, 4
      %v453 = vsel %vm307, %v448, %v452
      %455 = vst [vmem:[%s208] sm:$0xff] %v453
      %s456 = smul.u32 2, %s19
      %p457 = scmp.lt.s32.totalorder %s18, 1
      %s458 = scalar_select %p457, %s18, 1
      %p459 = scmp.lt.s32.totalorder %s456, 1
      %s460 = scalar_select %p459, %s456, 1
      %s461 = smul.addr %s458, 2
      %s462 = sadd.s32 %s460, %s461
      %s463 = smul.addr %s462, 4
      %s464 = scalar_lea.vmem %s3, %s463
      // Predicated region
      $region33: #{residual_network_forward.34} parent=31 // pred_check
        %p465 = pneg %p116
      $region34: #{residual_network_forward.34} parent=31 // pred_check_branch
        %467 = sbr.rel (%p465) target = $region36
      $region35: #{residual_network_forward.34} parent=31 // pred_region
        %s468 = smul.u32 2, %s19
      $region36: #{residual_network_forward.34} parent=31 // pred_fallthru
        _
    $region32: #{residual_network_forward.34} parent=5 // pred_fallthru
      _
    %p469 = scmp.le.s32.totalorder 2, %s9
    // Predicated region
    $region37: #{residual_network_forward.34} parent=5 // pred_check
      %p470 = pneg %p469
    $region38: #{residual_network_forward.34} parent=5 // pred_check_branch
      %472 = sbr.rel (%p470) target = $region40
    $region39: #{residual_network_forward.34} parent=5 // pred_region
      %s473 = ssub.s32 %s9, 2
      // Predicated region
      $region41: #{residual_network_forward.34} parent=39 // pred_check
        %p474 = pneg %p122
      $region42: #{residual_network_forward.34} parent=39 // pred_check_branch
        %476 = sbr.rel (%p474) target = $region44
      $region43: #{residual_network_forward.34} parent=39 // pred_region
        %s477 = smul.u32 2, %s21
        %p478 = scmp.lt.s32.totalorder %s20, 1
        %s479 = scalar_select %p478, %s20, 1
        %p480 = scmp.lt.s32.totalorder %s477, 1
        %s481 = scalar_select %p480, %s477, 1
        %s482 = smul.addr %s479, 2
        %s483 = sadd.s32 %s481, %s482
        %s484 = smul.addr %s483, 4
        %s485 = scalar_lea.vmem %s3, %s484
      $region44: #{residual_network_forward.34} parent=39 // pred_fallthru
        _
    $region40: #{residual_network_forward.34} parent=5 // pred_fallthru
      _
  $region6: #{residual_network_forward.34} parent=0 // loop_footer
    %s13 = sadd.s32 1, %s9
  $region7: #{residual_network_forward.34} parent=0 // loop_footer_branch
    %8 = sbr.rel target = $region3
  $region8: #{residual_network_forward.34} parent=0 // loop_exit
    _

// kernel: residual_network_forward.35
$region0: #{residual_network_forward.35}
  #allocation0 [shape = 'u32[]', space=smem, size = 0x4, offset = 0x4, fixed_abs, tag = 'smem constant byte address 0x4 - core index']
  #allocation1 [shape = 'u32[72,128]{1,0:T(1,128)}', space=vmem, size = 0x9000, scoped, tag = 'internal scratch']
  %s0 = inlined_call_operand.vmem [shape: f32[12,588], index: 0, kind: input, shape index: {}]
  %s1 = inlined_call_operand.vmem [shape: f32[2,588,16], index: 1, kind: input, shape index: {}]
  %s2 = inlined_call_operand.vmem [shape: f32[12,1], index: 2, kind: input, shape index: {}]
  %s3 = inlined_call_operand.vmem [shape: f32[2,12,16], index: 3, kind: output, shape index: {}]
  %s4 = sld [smem:[#allocation0]]
  $region45: #{residual_network_forward.35} parent=0
    _
  %s6 = ssub.s32 1, %s4
  %s7 = scalar_select 0, %s6, %s4
  loop: start=0, step=1, limit=4
  $region2: #{residual_network_forward.35} parent=0 // loop_pre_header
    _
  $region3: #{residual_network_forward.35} parent=0 // loop_header
    %s9 = sphi 0, %s13
    %p10 = scmp.ge.s32.totalorder %s9, 4
    %s16 = sphi 0, %s28
    %s17 = sphi 0, %s24
    %s18 = sphi 0, %s16
    %s19 = sphi 0, %s17
    %s20 = sphi 0, %s18
    %s21 = sphi 0, %s19
    %s29 = sphi 0, %s29
    %s31 = sphi 0, %s29
    %s32 = sphi 0, %s31
    %s46 = sphi 0, %s32
    %s54 = sphi 0, %s56
    %s57 = sphi 0, %s54
    %s58 = sphi 0, %s57
    %s74 = sphi 0, %s58
    %s78 = sphi 0, %s78
    %s80 = sphi 0, %s78
    %s81 = sphi 0, %s80
    %s95 = sphi 0, %s81
    %s103 = sphi 0, %s105
    %s106 = sphi 0, %s103
    %s107 = sphi 0, %s106
    %s123 = sphi 0, %s107
  $region4: #{residual_network_forward.35} parent=0 // loop_header_branch
    %12 = sbr.rel (%p10) target = $region8
  $region5: #{residual_network_forward.35} parent=0 // loop_body
    %s14 = ssub.s32 %s9, 1
    %s15 = ssub.s32 %s9, 2
    %s22 = sadd.s32 1, %s17
    %p23 = scmp.ge.s32.totalorder %s22, 1
    %s24 = scalar_select %p23, 0, %s22
    %s25 = sadd.s32 1, %s16
    %s26 = scalar_select %p23, %s25, %s16
    %p27 = scmp.ge.s32.totalorder %s26, 2
    %s28 = scalar_select %p27, 0, %s26
    %s30 = sadd.s32 %s29, 1
    %p33 = scmp.eq.s32.totalorder %s9, 1
    %p34 = scmp.ne.s32.totalorder %s29, %s31
    %p35 = scmp.eq.s32.totalorder %s9, 0
    %p36 = por %p34, %p35
    %p37 = scmp.ne.s32.totalorder %s29, %s31
    %p38 = scmp.eq.s32.totalorder %s14, 1
    %p39 = por %p37, %p38
    %p40 = scmp.ne.s32.totalorder %s31, %s32
    %p41 = scmp.eq.s32.totalorder %s14, 0
    %p42 = por %p40, %p41
    %p43 = scmp.ne.s32.totalorder %s31, %s32
    %p44 = scmp.eq.s32.totalorder %s15, 1
    %p45 = por %p43, %p44
    %p47 = scmp.ne.s32.totalorder %s32, %s46
    %p48 = scmp.eq.s32.totalorder %s15, 0
    %p49 = por %p47, %p48
    %s50 = ssub.s32 %s16, %s28
    %s51 = ssub.s32 %s17, %s24
    %s52 = sor.u32 %s50, %s51
    %p53 = scmp.eq.s32.totalorder %s52, 0
    %s55 = sadd.s32 %s54, 1
    %s56 = scalar_select %p53, %s54, %s55
    %p59 = pneg %p53
    %p60 = scmp.eq.s32.totalorder %s9, 1
    %p61 = por %p59, %p60
    %p62 = scmp.ne.s32.totalorder %s54, %s57
    %p63 = scmp.eq.s32.totalorder %s9, 0
    %p64 = por %p62, %p63
    %p65 = scmp.ne.s32.totalorder %s54, %s57
    %p66 = scmp.eq.s32.totalorder %s14, 1
    %p67 = por %p65, %p66
    %p68 = scmp.ne.s32.totalorder %s57, %s58
    %p69 = scmp.eq.s32.totalorder %s14, 0
    %p70 = por %p68, %p69
    %p71 = scmp.ne.s32.totalorder %s57, %s58
    %p72 = scmp.eq.s32.totalorder %s15, 1
    %p73 = por %p71, %p72
    %p75 = scmp.ne.s32.totalorder %s58, %s74
    %p76 = scmp.eq.s32.totalorder %s15, 0
    %p77 = por %p75, %p76
    %s79 = sadd.s32 %s78, 1
    %p82 = scmp.eq.s32.totalorder %s9, 1
    %p83 = scmp.ne.s32.totalorder %s78, %s80
    %p84 = scmp.eq.s32.totalorder %s9, 0
    %p85 = por %p83, %p84
    %p86 = scmp.ne.s32.totalorder %s78, %s80
    %p87 = scmp.eq.s32.totalorder %s14, 1
    %p88 = por %p86, %p87
    %p89 = scmp.ne.s32.totalorder %s80, %s81
    %p90 = scmp.eq.s32.totalorder %s14, 0
    %p91 = por %p89, %p90
    %p92 = scmp.ne.s32.totalorder %s80, %s81
    %p93 = scmp.eq.s32.totalorder %s15, 1
    %p94 = por %p92, %p93
    %p96 = scmp.ne.s32.totalorder %s81, %s95
    %p97 = scmp.eq.s32.totalorder %s15, 0
    %p98 = por %p96, %p97
    %s99 = ssub.s32 %s16, %s28
    %s100 = ssub.s32 %s17, %s24
    %s101 = sor.u32 %s99, %s100
    %p102 = scmp.eq.s32.totalorder %s101, 0
    %s104 = sadd.s32 %s103, 1
    %s105 = scalar_select %p102, %s103, %s104
    %p108 = pneg %p102
    %p109 = scmp.eq.s32.totalorder %s9, 1
    %p110 = por %p108, %p109
    %p111 = scmp.ne.s32.totalorder %s103, %s106
    %p112 = scmp.eq.s32.totalorder %s9, 0
    %p113 = por %p111, %p112
    %p114 = scmp.ne.s32.totalorder %s103, %s106
    %p115 = scmp.eq.s32.totalorder %s14, 1
    %p116 = por %p114, %p115
    %p117 = scmp.ne.s32.totalorder %s106, %s107
    %p118 = scmp.eq.s32.totalorder %s14, 0
    %p119 = por %p117, %p118
    %p120 = scmp.ne.s32.totalorder %s106, %s107
    %p121 = scmp.eq.s32.totalorder %s15, 1
    %p122 = por %p120, %p121
    %p124 = scmp.ne.s32.totalorder %s107, %s123
    %p125 = scmp.eq.s32.totalorder %s15, 0
    %p126 = por %p124, %p125
    %p127 = scmp.le.s32.totalorder 1, %s9
    %p128 = scmp.lt.s32.totalorder %s9, 3
    %p129 = pnand %p127, %p128
    %p130 = pneg %p129
    // Predicated region
    $region9: #{residual_network_forward.35} parent=5 // pred_check
      _
    $region10: #{residual_network_forward.35} parent=5 // pred_check_branch
      %132 = sbr.rel (%p129) target = $region12
    $region11: #{residual_network_forward.35} parent=5 // pred_region
      %s133 = ssub.s32 %s9, 1
      // Predicated region
      $region13: #{residual_network_forward.35} parent=11 // pred_check
        %p134 = pneg %p42
      $region14: #{residual_network_forward.35} parent=11 // pred_check_branch
        %136 = sbr.rel (%p134) target = $region16
      $region15: #{residual_network_forward.35} parent=11 // pred_region
        _
      $region16: #{residual_network_forward.35} parent=11 // pred_fallthru
        _
      // Predicated region
      $region17: #{residual_network_forward.35} parent=11 // pred_check
        %p137 = pneg %p91
      $region18: #{residual_network_forward.35} parent=11 // pred_check_branch
        %139 = sbr.rel (%p137) target = $region20
      $region19: #{residual_network_forward.35} parent=11 // pred_region
        _
      $region20: #{residual_network_forward.35} parent=11 // pred_fallthru
        _
    $region12: #{residual_network_forward.35} parent=5 // pred_fallthru
      _
    %p140 = scmp.lt.s32.totalorder %s9, 2
    // Predicated region
    $region21: #{residual_network_forward.35} parent=5 // pred_check
      %p141 = pneg %p140
    $region22: #{residual_network_forward.35} parent=5 // pred_check_branch
      %143 = sbr.rel (%p141) target = $region24
    $region23: #{residual_network_forward.35} parent=5 // pred_region
      // Predicated region
      $region25: #{residual_network_forward.35} parent=23 // pred_check
        %p144 = pneg %p64
      $region26: #{residual_network_forward.35} parent=23 // pred_check_branch
        %146 = sbr.rel (%p144) target = $region28
      $region27: #{residual_network_forward.35} parent=23 // pred_region
        %p147 = scmp.lt.s32.totalorder %s16, 1
        %s148 = scalar_select %p147, %s16, 1
        %p149 = scmp.lt.s32.totalorder %s17, 0
        %s150 = scalar_select %p149, %s17, 0
        %s151 = smul.addr %s148, 74
        %s152 = sadd.s32 %s150, %s151
        %s153 = smul.addr %s152, 8
        %s154 = scalar_lea.vmem %s1, %s153
      $region28: #{residual_network_forward.35} parent=23 // pred_fallthru
        _
    $region24: #{residual_network_forward.35} parent=5 // pred_fallthru
      _
    %p155 = scmp.le.s32.totalorder 1, %s9
    %p156 = scmp.lt.s32.totalorder %s9, 3
    %p157 = pnand %p155, %p156
    %p158 = pneg %p157
    // Predicated region
    $region29: #{residual_network_forward.35} parent=5 // pred_check
      _
    $region30: #{residual_network_forward.35} parent=5 // pred_check_branch
      %160 = sbr.rel (%p157) target = $region32
    $region31: #{residual_network_forward.35} parent=5 // pred_region
      %s161 = ssub.s32 %s9, 1
      %p162 = pneg %p42
      %p163 = pneg %p39
      %p164 = scmp.lt.s32.totalorder %s18, 1
      %s165 = scalar_select %p164, %s18, 1
      %p166 = scmp.lt.s32.totalorder %s19, 0
      %s167 = scalar_select %p166, %s19, 0
      %s168 = smul.addr %s165, 74
      %s169 = sadd.s32 %s167, %s168
      %s170 = smul.addr %s169, 8
      %s171 = scalar_lea.vmem %s1, %s170
      %p172 = pneg %p70
      %p173 = pneg %p67
      %p174 = pneg %p91
      %p175 = pneg %p88
      %p176 = pneg %p119
      %p177 = pneg %p116
      %p178 = scmp.lt.s32.totalorder %s18, 1
      %s179 = scalar_select %p178, %s18, 1
      %p180 = scmp.lt.s32.totalorder %s19, 0
      %s181 = scalar_select %p180, %s19, 0
      %s182 = smul.addr %s179, 2
      %s183 = sadd.s32 %s181, %s182
      %s184 = smul.addr %s183, 8
      %s185 = scalar_lea.vmem %s3, %s184
      %p186 = scmp.lt.s32.totalorder %s18, 1
      %s187 = scalar_select %p186, %s18, 1
      %p188 = scmp.lt.s32.totalorder %s19, 0
      %s189 = scalar_select %p188, %s19, 0
      %s190 = smul.addr %s187, 74
      %s191 = sadd.s32 %s189, %s190
      %s192 = smul.addr %s191, 8
      %s193 = scalar_lea.vmem %s1, %s192
      %p194 = scmp.lt.s32.totalorder %s18, 1
      %s195 = scalar_select %p194, %s18, 1
      %p196 = scmp.lt.s32.totalorder %s19, 0
      %s197 = scalar_select %p196, %s19, 0
      %s198 = smul.addr %s195, 2
      %s199 = sadd.s32 %s197, %s198
      %s200 = smul.addr %s199, 8
      %s201 = scalar_lea.vmem %s3, %s200
      %v202 = vld [vmem:[%s0] sm:$0xff]
      %v203 = vld [vmem:[%s0 + $0x8] sm:$0xff]
      %v204 = vld [vmem:[%s0 + $0x10] sm:$0xff]
      %v205 = vld [vmem:[%s0 + $0x18] sm:$0xff]
      %v206 = vld [vmem:[%s0 + $0x20] sm:$0xff]
      %v207 = vld [vmem:[%s0 + $0x28] sm:$0xf]
      %v208 = vld [vmem:[%s0 + $0x30] sm:$0xf]
      %v209 = vld [vmem:[%s0 + $0x38] sm:$0xf]
      %v210 = vld [vmem:[%s0 + $0x40] sm:$0xf]
      %v211 = vld [vmem:[%s0 + $0x48] sm:$0xf]
      %v212 = vld [vmem:[%s193] sm:$0xff]
      %v213 = vld [vmem:[%s193 + $0x8] sm:$0xff]
      %v214 = vld [vmem:[%s193 + $0x10] sm:$0xff]
      %v215 = vld [vmem:[%s193 + $0x18] sm:$0xff]
      %v216 = vld [vmem:[%s193 + $0x20] sm:$0xff]
      %v217 = vld [vmem:[%s193 + $0x28] sm:$0xff]
      %v218 = vld [vmem:[%s193 + $0x30] sm:$0xff]
      %v219 = vld [vmem:[%s193 + $0x38] sm:$0xff]
      %v220 = vld [vmem:[%s193 + $0x40] sm:$0xff]
      %v221 = vld [vmem:[%s193 + $0x48] sm:$0xff]
      %v222 = vld [vmem:[%s193 + $0x50] sm:$0xff]
      %v223 = vld [vmem:[%s193 + $0x58] sm:$0xff]
      %v224 = vld [vmem:[%s193 + $0x60] sm:$0xff]
      %v225 = vld [vmem:[%s193 + $0x68] sm:$0xff]
      %v226 = vld [vmem:[%s193 + $0x70] sm:$0xff]
      %v227 = vld [vmem:[%s193 + $0x78] sm:$0xff]
      %v228 = vld [vmem:[%s193 + $0x80] sm:$0xff]
      %v229 = vld [vmem:[%s193 + $0x88] sm:$0xff]
      %v230 = vld [vmem:[%s193 + $0x90] sm:$0xff]
      %v231 = vld [vmem:[%s193 + $0x98] sm:$0xff]
      %v232 = vld [vmem:[%s193 + $0xa0] sm:$0xff]
      %v233 = vld [vmem:[%s193 + $0xa8] sm:$0xff]
      %v234 = vld [vmem:[%s193 + $0xb0] sm:$0xff]
      %v235 = vld [vmem:[%s193 + $0xb8] sm:$0xff]
      %v236 = vld [vmem:[%s193 + $0xc0] sm:$0xff]
      %v237 = vld [vmem:[%s193 + $0xc8] sm:$0xff]
      %v238 = vld [vmem:[%s193 + $0xd0] sm:$0xff]
      %v239 = vld [vmem:[%s193 + $0xd8] sm:$0xff]
      %v240 = vld [vmem:[%s193 + $0xe0] sm:$0xff]
      %v241 = vld [vmem:[%s193 + $0xe8] sm:$0xff]
      %v242 = vld [vmem:[%s193 + $0xf0] sm:$0xff]
      %v243 = vld [vmem:[%s193 + $0xf8] sm:$0xff]
      %v244 = vld [vmem:[%s193 + $0x100] sm:$0xff]
      %v245 = vld [vmem:[%s193 + $0x108] sm:$0xff]
      %v246 = vld [vmem:[%s193 + $0x110] sm:$0xff]
      %v247 = vld [vmem:[%s193 + $0x118] sm:$0xff]
      %v248 = vld [vmem:[%s193 + $0x120] sm:$0xff]
      %v249 = vld [vmem:[%s193 + $0x128] sm:$0xff]
      %v250 = vld [vmem:[%s193 + $0x130] sm:$0xff]
      %v251 = vld [vmem:[%s193 + $0x138] sm:$0xff]
      %v252 = vld [vmem:[%s193 + $0x140] sm:$0xff]
      %v253 = vld [vmem:[%s193 + $0x148] sm:$0xff]
      %v254 = vld [vmem:[%s193 + $0x150] sm:$0xff]
      %v255 = vld [vmem:[%s193 + $0x158] sm:$0xff]
      %v256 = vld [vmem:[%s193 + $0x160] sm:$0xff]
      %v257 = vld [vmem:[%s193 + $0x168] sm:$0xff]
      %v258 = vld [vmem:[%s193 + $0x170] sm:$0xff]
      %v259 = vld [vmem:[%s193 + $0x178] sm:$0xff]
      %v260 = vld [vmem:[%s193 + $0x180] sm:$0xff]
      %v261 = vld [vmem:[%s193 + $0x188] sm:$0xff]
      %v262 = vld [vmem:[%s193 + $0x190] sm:$0xff]
      %v263 = vld [vmem:[%s193 + $0x198] sm:$0xff]
      %v264 = vld [vmem:[%s193 + $0x1a0] sm:$0xff]
      %v265 = vld [vmem:[%s193 + $0x1a8] sm:$0xff]
      %v266 = vld [vmem:[%s193 + $0x1b0] sm:$0xff]
      %v267 = vld [vmem:[%s193 + $0x1b8] sm:$0xff]
      %v268 = vld [vmem:[%s193 + $0x1c0] sm:$0xff]
      %v269 = vld [vmem:[%s193 + $0x1c8] sm:$0xff]
      %v270 = vld [vmem:[%s193 + $0x1d0] sm:$0xff]
      %v271 = vld [vmem:[%s193 + $0x1d8] sm:$0xff]
      %v272 = vld [vmem:[%s193 + $0x1e0] sm:$0xff]
      %v273 = vld [vmem:[%s193 + $0x1e8] sm:$0xff]
      %v274 = vld [vmem:[%s193 + $0x1f0] sm:$0xff]
      %v275 = vld [vmem:[%s193 + $0x1f8] sm:$0xff]
      %v276 = vld [vmem:[%s193 + $0x200] sm:$0xff]
      %v277 = vld [vmem:[%s193 + $0x208] sm:$0xff]
      %v278 = vld [vmem:[%s193 + $0x210] sm:$0xff]
      %v279 = vld [vmem:[%s193 + $0x218] sm:$0xff]
      %v280 = vld [vmem:[%s193 + $0x220] sm:$0xff]
      %v281 = vld [vmem:[%s193 + $0x228] sm:$0xff]
      %v282 = vld [vmem:[%s193 + $0x230] sm:$0xff]
      %v283 = vld [vmem:[%s193 + $0x238] sm:$0xff]
      %v284 = vld [vmem:[%s193 + $0x240] sm:$0xff]
      %v285 = vld [vmem:[%s193 + $0x248] sm:$0xf]
      %v286 = vld [vmem:[%s2] sm:$0xff]
      %v287 = vld [vmem:[%s2 + $0x8] sm:$0xf]
      %289 = vset.pattern.permute.xlu0 0
      %290 = vperm.xlu0 %289, %v286
      %v291 = vpop.permute.xlu0 %290
      %294 = vset.pattern.permute.xlu0 0
      %295 = vperm.xlu0 %294, %v287
      %v296 = vpop.permute.xlu0 %295
      %vm298 = vcmask 621568
      %v300 = vsel %vm298, %v206, 0
      %v303 = vsel %vm298, %v211, 0
      %vm305 = vcmask 1043456
      %v307 = vsel %vm305, %v285, 0
      %309 = vmatpush.msra.mxu0 %v227
      %310 = vmatpush.msra.mxu0 %v226
      %311 = vmatpush.msra.mxu0 %v225
      %312 = vmatpush.msra.mxu0 %v224
      %313 = vmatpush.msra.mxu0 %v223
      %314 = vmatpush.msra.mxu0 %v222
      %315 = vmatpush.msra.mxu0 %v221
      %316 = vmatpush.msra.mxu0 %v220
      %317 = vmatpush.msra.mxu0 %v219
      %318 = vmatpush.msra.mxu0 %v218
      %319 = vmatpush.msra.mxu0 %v217
      %320 = vmatpush.msra.mxu0 %v216
      %321 = vmatpush.msra.mxu0 %v215
      %322 = vmatpush.msra.mxu0 %v214
      %323 = vmatpush.msra.mxu0 %v213
      %324 = vmatpush.msra.mxu0 %v212
      %325 = vmatmul.f32.gmra.mxu0 %v202
      %v326 = vpop.f32.mrf.mxu0
      %v327 = vadd.f32 %v291, %v326
      %328 = vmatmul.f32.gmra.mxu0 %v207
      %v329 = vpop.f32.mrf.mxu0
      %v330 = vadd.f32 %v296, %v329
      %331 = vdwg.mxu0
      %332 = vmatpush.msra.mxu0 %v243
      %333 = vmatpush.msra.mxu0 %v242
      %334 = vmatpush.msra.mxu0 %v241
      %335 = vmatpush.msra.mxu0 %v240
      %336 = vmatpush.msra.mxu0 %v239
      %337 = vmatpush.msra.mxu0 %v238
      %338 = vmatpush.msra.mxu0 %v237
      %339 = vmatpush.msra.mxu0 %v236
      %340 = vmatpush.msra.mxu0 %v235
      %341 = vmatpush.msra.mxu0 %v234
      %342 = vmatpush.msra.mxu0 %v233
      %343 = vmatpush.msra.mxu0 %v232
      %344 = vmatpush.msra.mxu0 %v231
      %345 = vmatpush.msra.mxu0 %v230
      %346 = vmatpush.msra.mxu0 %v229
      %347 = vmatpush.msra.mxu0 %v228
      %348 = vmatmul.f32.gmra.mxu0 %v203
      %v349 = vpop.f32.mrf.mxu0
      %v350 = vadd.f32 %v327, %v349
      %351 = vmatmul.f32.gmra.mxu0 %v208
      %v352 = vpop.f32.mrf.mxu0
      %v353 = vadd.f32 %v330, %v352
      %354 = vdwg.mxu0
      %355 = vmatpush.msra.mxu0 %v259
      %356 = vmatpush.msra.mxu0 %v258
      %357 = vmatpush.msra.mxu0 %v257
      %358 = vmatpush.msra.mxu0 %v256
      %359 = vmatpush.msra.mxu0 %v255
      %360 = vmatpush.msra.mxu0 %v254
      %361 = vmatpush.msra.mxu0 %v253
      %362 = vmatpush.msra.mxu0 %v252
      %363 = vmatpush.msra.mxu0 %v251
      %364 = vmatpush.msra.mxu0 %v250
      %365 = vmatpush.msra.mxu0 %v249
      %366 = vmatpush.msra.mxu0 %v248
      %367 = vmatpush.msra.mxu0 %v247
      %368 = vmatpush.msra.mxu0 %v246
      %369 = vmatpush.msra.mxu0 %v245
      %370 = vmatpush.msra.mxu0 %v244
      %371 = vmatmul.f32.gmra.mxu0 %v204
      %v372 = vpop.f32.mrf.mxu0
      %v373 = vadd.f32 %v350, %v372
      %374 = vmatmul.f32.gmra.mxu0 %v209
      %v375 = vpop.f32.mrf.mxu0
      %v376 = vadd.f32 %v353, %v375
      %377 = vdwg.mxu0
      %378 = vmatpush.msra.mxu0 %v275
      %379 = vmatpush.msra.mxu0 %v274
      %380 = vmatpush.msra.mxu0 %v273
      %381 = vmatpush.msra.mxu0 %v272
      %382 = vmatpush.msra.mxu0 %v271
      %383 = vmatpush.msra.mxu0 %v270
      %384 = vmatpush.msra.mxu0 %v269
      %385 = vmatpush.msra.mxu0 %v268
      %386 = vmatpush.msra.mxu0 %v267
      %387 = vmatpush.msra.mxu0 %v266
      %388 = vmatpush.msra.mxu0 %v265
      %389 = vmatpush.msra.mxu0 %v264
      %390 = vmatpush.msra.mxu0 %v263
      %391 = vmatpush.msra.mxu0 %v262
      %392 = vmatpush.msra.mxu0 %v261
      %393 = vmatpush.msra.mxu0 %v260
      %394 = vmatmul.f32.gmra.mxu0 %v205
      %v395 = vpop.f32.mrf.mxu0
      %v396 = vadd.f32 %v373, %v395
      %397 = vmatmul.f32.gmra.mxu0 %v210
      %v398 = vpop.f32.mrf.mxu0
      %v399 = vadd.f32 %v376, %v398
      %400 = vdwg.mxu0
      %401 = vmatpush.msra.mxu0 0.0
      %402 = vmatpush.msra.mxu0 0.0
      %403 = vmatpush.msra.mxu0 0.0
      %404 = vmatpush.msra.mxu0 0.0
      %405 = vmatpush.msra.mxu0 0.0
      %406 = vmatpush.msra.mxu0 0.0
      %407 = vmatpush.msra.mxu0 %v307
      %408 = vmatpush.msra.mxu0 %v284
      %409 = vmatpush.msra.mxu0 %v283
      %410 = vmatpush.msra.mxu0 %v282
      %411 = vmatpush.msra.mxu0 %v281
      %412 = vmatpush.msra.mxu0 %v280
      %413 = vmatpush.msra.mxu0 %v279
      %414 = vmatpush.msra.mxu0 %v278
      %415 = vmatpush.msra.mxu0 %v277
      %416 = vmatpush.msra.mxu0 %v276
      %417 = vmatmul.f32.gmra.mxu0 %v300
      %v418 = vpop.f32.mrf.mxu0
      %v419 = vadd.f32 %v396, %v418
      %420 = vmatmul.f32.gmra.mxu0 %v303
      %v421 = vpop.f32.mrf.mxu0
      %v422 = vadd.f32 %v399, %v421
      %423 = vdwg.mxu0
      %v424 = vmin.f32 %v419, 0.0
      %v425 = vmin.f32 %v422, 0.0
      %v426 = vmul.f32 %v424, 1.442695
      %v427 = vpow.pop %v426
      %v428 = vmul.f32 %v425, 1.442695
      %v429 = vpow.pop %v428
      %v430 = vsub.f32 %v427, 1.0
      %v431 = vsub.f32 %v429, 1.0
      %v432 = vmul.f32 %v430, 1.6732632
      %v433 = vmul.f32 %v431, 1.6732632
      %vm434 = vcmp.gt.f32.partialorder %v419, 0.0
      %vm435 = vcmp.gt.f32.partialorder %v422, 0.0
      %v436 = vsel %vm434, %v419, %v432
      %v437 = vsel %vm435, %v422, %v433
      %v438 = vmul.f32 %v436, 1.050701
      %v439 = vmul.f32 %v437, 1.050701
      %vm440 = vcmask 130048
      %441 = vst.msk [vmem:[%s201] sm:$0xff] %vm440, %v438
      %vm442 = vcmask 125952
      %443 = vst.msk [vmem:[%s201 + $0x8] sm:$0xf] %vm442, %v439
      %p444 = scmp.lt.s32.totalorder %s18, 1
      %s445 = scalar_select %p444, %s18, 1
      %p446 = scmp.lt.s32.totalorder %s19, 0
      %s447 = scalar_select %p446, %s19, 0
      %s448 = smul.addr %s445, 2
      %s449 = sadd.s32 %s447, %s448
      %s450 = smul.addr %s449, 8
      %s451 = scalar_lea.vmem %s3, %s450
      // Predicated region
      $region33: #{residual_network_forward.35} parent=31 // pred_check
        %p452 = pneg %p116
      $region34: #{residual_network_forward.35} parent=31 // pred_check_branch
        %454 = sbr.rel (%p452) target = $region36
      $region35: #{residual_network_forward.35} parent=31 // pred_region
        _
      $region36: #{residual_network_forward.35} parent=31 // pred_fallthru
        _
    $region32: #{residual_network_forward.35} parent=5 // pred_fallthru
      _
    %p455 = scmp.le.s32.totalorder 2, %s9
    // Predicated region
    $region37: #{residual_network_forward.35} parent=5 // pred_check
      %p456 = pneg %p455
    $region38: #{residual_network_forward.35} parent=5 // pred_check_branch
      %458 = sbr.rel (%p456) target = $region40
    $region39: #{residual_network_forward.35} parent=5 // pred_region
      %s459 = ssub.s32 %s9, 2
      // Predicated region
      $region41: #{residual_network_forward.35} parent=39 // pred_check
        %p460 = pneg %p122
      $region42: #{residual_network_forward.35} parent=39 // pred_check_branch
        %462 = sbr.rel (%p460) target = $region44
      $region43: #{residual_network_forward.35} parent=39 // pred_region
        %p463 = scmp.lt.s32.totalorder %s20, 1
        %s464 = scalar_select %p463, %s20, 1
        %p465 = scmp.lt.s32.totalorder %s21, 0
        %s466 = scalar_select %p465, %s21, 0
        %s467 = smul.addr %s464, 2
        %s468 = sadd.s32 %s466, %s467
        %s469 = smul.addr %s468, 8
        %s470 = scalar_lea.vmem %s3, %s469
      $region44: #{residual_network_forward.35} parent=39 // pred_fallthru
        _
    $region40: #{residual_network_forward.35} parent=5 // pred_fallthru
      _
  $region6: #{residual_network_forward.35} parent=0 // loop_footer
    %s13 = sadd.s32 1, %s9
  $region7: #{residual_network_forward.35} parent=0 // loop_footer_branch
    %8 = sbr.rel target = $region3
  $region8: #{residual_network_forward.35} parent=0 // loop_exit
    _

// kernel: residual_network_forward.36
$region0: #{residual_network_forward.36}
  #allocation0 [shape = 'u32[]', space=smem, size = 0x4, offset = 0x4, fixed_abs, tag = 'smem constant byte address 0x4 - core index']
  #allocation1 [shape = 'u32[72,128]{1,0:T(1,128)}', space=vmem, size = 0x9000, scoped, tag = 'internal scratch']
  %s0 = inlined_call_operand.vmem [shape: f32[4,300], index: 0, kind: input, shape index: {}]
  %s1 = inlined_call_operand.vmem [shape: f32[2,300,16], index: 1, kind: input, shape index: {}]
  %s2 = inlined_call_operand.vmem [shape: f32[4,1], index: 2, kind: input, shape index: {}]
  %s3 = inlined_call_operand.vmem [shape: f32[2,4,16], index: 3, kind: output, shape index: {}]
  %s4 = sld [smem:[#allocation0]]
  $region45: #{residual_network_forward.36} parent=0
    _
  %s6 = ssub.s32 1, %s4
  %s7 = scalar_select 0, %s6, %s4
  loop: start=0, step=1, limit=4
  $region2: #{residual_network_forward.36} parent=0 // loop_pre_header
    _
  $region3: #{residual_network_forward.36} parent=0 // loop_header
    %s9 = sphi 0, %s13
    %p10 = scmp.ge.s32.totalorder %s9, 4
    %s16 = sphi 0, %s28
    %s17 = sphi 0, %s24
    %s18 = sphi 0, %s16
    %s19 = sphi 0, %s17
    %s20 = sphi 0, %s18
    %s21 = sphi 0, %s19
    %s29 = sphi 0, %s29
    %s31 = sphi 0, %s29
    %s32 = sphi 0, %s31
    %s46 = sphi 0, %s32
    %s54 = sphi 0, %s56
    %s57 = sphi 0, %s54
    %s58 = sphi 0, %s57
    %s74 = sphi 0, %s58
    %s78 = sphi 0, %s78
    %s80 = sphi 0, %s78
    %s81 = sphi 0, %s80
    %s95 = sphi 0, %s81
    %s103 = sphi 0, %s105
    %s106 = sphi 0, %s103
    %s107 = sphi 0, %s106
    %s123 = sphi 0, %s107
  $region4: #{residual_network_forward.36} parent=0 // loop_header_branch
    %12 = sbr.rel (%p10) target = $region8
  $region5: #{residual_network_forward.36} parent=0 // loop_body
    %s14 = ssub.s32 %s9, 1
    %s15 = ssub.s32 %s9, 2
    %s22 = sadd.s32 1, %s17
    %p23 = scmp.ge.s32.totalorder %s22, 1
    %s24 = scalar_select %p23, 0, %s22
    %s25 = sadd.s32 1, %s16
    %s26 = scalar_select %p23, %s25, %s16
    %p27 = scmp.ge.s32.totalorder %s26, 2
    %s28 = scalar_select %p27, 0, %s26
    %s30 = sadd.s32 %s29, 1
    %p33 = scmp.eq.s32.totalorder %s9, 1
    %p34 = scmp.ne.s32.totalorder %s29, %s31
    %p35 = scmp.eq.s32.totalorder %s9, 0
    %p36 = por %p34, %p35
    %p37 = scmp.ne.s32.totalorder %s29, %s31
    %p38 = scmp.eq.s32.totalorder %s14, 1
    %p39 = por %p37, %p38
    %p40 = scmp.ne.s32.totalorder %s31, %s32
    %p41 = scmp.eq.s32.totalorder %s14, 0
    %p42 = por %p40, %p41
    %p43 = scmp.ne.s32.totalorder %s31, %s32
    %p44 = scmp.eq.s32.totalorder %s15, 1
    %p45 = por %p43, %p44
    %p47 = scmp.ne.s32.totalorder %s32, %s46
    %p48 = scmp.eq.s32.totalorder %s15, 0
    %p49 = por %p47, %p48
    %s50 = ssub.s32 %s16, %s28
    %s51 = ssub.s32 %s17, %s24
    %s52 = sor.u32 %s50, %s51
    %p53 = scmp.eq.s32.totalorder %s52, 0
    %s55 = sadd.s32 %s54, 1
    %s56 = scalar_select %p53, %s54, %s55
    %p59 = pneg %p53
    %p60 = scmp.eq.s32.totalorder %s9, 1
    %p61 = por %p59, %p60
    %p62 = scmp.ne.s32.totalorder %s54, %s57
    %p63 = scmp.eq.s32.totalorder %s9, 0
    %p64 = por %p62, %p63
    %p65 = scmp.ne.s32.totalorder %s54, %s57
    %p66 = scmp.eq.s32.totalorder %s14, 1
    %p67 = por %p65, %p66
    %p68 = scmp.ne.s32.totalorder %s57, %s58
    %p69 = scmp.eq.s32.totalorder %s14, 0
    %p70 = por %p68, %p69
    %p71 = scmp.ne.s32.totalorder %s57, %s58
    %p72 = scmp.eq.s32.totalorder %s15, 1
    %p73 = por %p71, %p72
    %p75 = scmp.ne.s32.totalorder %s58, %s74
    %p76 = scmp.eq.s32.totalorder %s15, 0
    %p77 = por %p75, %p76
    %s79 = sadd.s32 %s78, 1
    %p82 = scmp.eq.s32.totalorder %s9, 1
    %p83 = scmp.ne.s32.totalorder %s78, %s80
    %p84 = scmp.eq.s32.totalorder %s9, 0
    %p85 = por %p83, %p84
    %p86 = scmp.ne.s32.totalorder %s78, %s80
    %p87 = scmp.eq.s32.totalorder %s14, 1
    %p88 = por %p86, %p87
    %p89 = scmp.ne.s32.totalorder %s80, %s81
    %p90 = scmp.eq.s32.totalorder %s14, 0
    %p91 = por %p89, %p90
    %p92 = scmp.ne.s32.totalorder %s80, %s81
    %p93 = scmp.eq.s32.totalorder %s15, 1
    %p94 = por %p92, %p93
    %p96 = scmp.ne.s32.totalorder %s81, %s95
    %p97 = scmp.eq.s32.totalorder %s15, 0
    %p98 = por %p96, %p97
    %s99 = ssub.s32 %s16, %s28
    %s100 = ssub.s32 %s17, %s24
    %s101 = sor.u32 %s99, %s100
    %p102 = scmp.eq.s32.totalorder %s101, 0
    %s104 = sadd.s32 %s103, 1
    %s105 = scalar_select %p102, %s103, %s104
    %p108 = pneg %p102
    %p109 = scmp.eq.s32.totalorder %s9, 1
    %p110 = por %p108, %p109
    %p111 = scmp.ne.s32.totalorder %s103, %s106
    %p112 = scmp.eq.s32.totalorder %s9, 0
    %p113 = por %p111, %p112
    %p114 = scmp.ne.s32.totalorder %s103, %s106
    %p115 = scmp.eq.s32.totalorder %s14, 1
    %p116 = por %p114, %p115
    %p117 = scmp.ne.s32.totalorder %s106, %s107
    %p118 = scmp.eq.s32.totalorder %s14, 0
    %p119 = por %p117, %p118
    %p120 = scmp.ne.s32.totalorder %s106, %s107
    %p121 = scmp.eq.s32.totalorder %s15, 1
    %p122 = por %p120, %p121
    %p124 = scmp.ne.s32.totalorder %s107, %s123
    %p125 = scmp.eq.s32.totalorder %s15, 0
    %p126 = por %p124, %p125
    %p127 = scmp.le.s32.totalorder 1, %s9
    %p128 = scmp.lt.s32.totalorder %s9, 3
    %p129 = pnand %p127, %p128
    %p130 = pneg %p129
    // Predicated region
    $region9: #{residual_network_forward.36} parent=5 // pred_check
      _
    $region10: #{residual_network_forward.36} parent=5 // pred_check_branch
      %132 = sbr.rel (%p129) target = $region12
    $region11: #{residual_network_forward.36} parent=5 // pred_region
      %s133 = ssub.s32 %s9, 1
      // Predicated region
      $region13: #{residual_network_forward.36} parent=11 // pred_check
        %p134 = pneg %p42
      $region14: #{residual_network_forward.36} parent=11 // pred_check_branch
        %136 = sbr.rel (%p134) target = $region16
      $region15: #{residual_network_forward.36} parent=11 // pred_region
        _
      $region16: #{residual_network_forward.36} parent=11 // pred_fallthru
        _
      // Predicated region
      $region17: #{residual_network_forward.36} parent=11 // pred_check
        %p137 = pneg %p91
      $region18: #{residual_network_forward.36} parent=11 // pred_check_branch
        %139 = sbr.rel (%p137) target = $region20
      $region19: #{residual_network_forward.36} parent=11 // pred_region
        _
      $region20: #{residual_network_forward.36} parent=11 // pred_fallthru
        _
    $region12: #{residual_network_forward.36} parent=5 // pred_fallthru
      _
    %p140 = scmp.lt.s32.totalorder %s9, 2
    // Predicated region
    $region21: #{residual_network_forward.36} parent=5 // pred_check
      %p141 = pneg %p140
    $region22: #{residual_network_forward.36} parent=5 // pred_check_branch
      %143 = sbr.rel (%p141) target = $region24
    $region23: #{residual_network_forward.36} parent=5 // pred_region
      // Predicated region
      $region25: #{residual_network_forward.36} parent=23 // pred_check
        %p144 = pneg %p64
      $region26: #{residual_network_forward.36} parent=23 // pred_check_branch
        %146 = sbr.rel (%p144) target = $region28
      $region27: #{residual_network_forward.36} parent=23 // pred_region
        %p147 = scmp.lt.s32.totalorder %s16, 1
        %s148 = scalar_select %p147, %s16, 1
        %p149 = scmp.lt.s32.totalorder %s17, 0
        %s150 = scalar_select %p149, %s17, 0
        %s151 = smul.addr %s148, 38
        %s152 = sadd.s32 %s150, %s151
        %s153 = smul.addr %s152, 8
        %s154 = scalar_lea.vmem %s1, %s153
      $region28: #{residual_network_forward.36} parent=23 // pred_fallthru
        _
    $region24: #{residual_network_forward.36} parent=5 // pred_fallthru
      _
    %p155 = scmp.le.s32.totalorder 1, %s9
    %p156 = scmp.lt.s32.totalorder %s9, 3
    %p157 = pnand %p155, %p156
    %p158 = pneg %p157
    // Predicated region
    $region29: #{residual_network_forward.36} parent=5 // pred_check
      _
    $region30: #{residual_network_forward.36} parent=5 // pred_check_branch
      %160 = sbr.rel (%p157) target = $region32
    $region31: #{residual_network_forward.36} parent=5 // pred_region
      %s161 = ssub.s32 %s9, 1
      %p162 = pneg %p42
      %p163 = pneg %p39
      %p164 = scmp.lt.s32.totalorder %s18, 1
      %s165 = scalar_select %p164, %s18, 1
      %p166 = scmp.lt.s32.totalorder %s19, 0
      %s167 = scalar_select %p166, %s19, 0
      %s168 = smul.addr %s165, 38
      %s169 = sadd.s32 %s167, %s168
      %s170 = smul.addr %s169, 8
      %s171 = scalar_lea.vmem %s1, %s170
      %p172 = pneg %p70
      %p173 = pneg %p67
      %p174 = pneg %p91
      %p175 = pneg %p88
      %p176 = pneg %p119
      %p177 = pneg %p116
      %p178 = scmp.lt.s32.totalorder %s18, 1
      %s179 = scalar_select %p178, %s18, 1
      %p180 = scmp.lt.s32.totalorder %s19, 0
      %s181 = scalar_select %p180, %s19, 0
      %s182 = sadd.s32 %s181, %s179
      %s183 = smul.addr %s182, 4
      %s184 = scalar_lea.vmem %s3, %s183
      %p185 = scmp.lt.s32.totalorder %s18, 1
      %s186 = scalar_select %p185, %s18, 1
      %p187 = scmp.lt.s32.totalorder %s19, 0
      %s188 = scalar_select %p187, %s19, 0
      %s189 = smul.addr %s186, 38
      %s190 = sadd.s32 %s188, %s189
      %s191 = smul.addr %s190, 8
      %s192 = scalar_lea.vmem %s1, %s191
      %p193 = scmp.lt.s32.totalorder %s18, 1
      %s194 = scalar_select %p193, %s18, 1
      %p195 = scmp.lt.s32.totalorder %s19, 0
      %s196 = scalar_select %p195, %s19, 0
      %s197 = sadd.s32 %s196, %s194
      %s198 = smul.addr %s197, 4
      %s199 = scalar_lea.vmem %s3, %s198
      %v200 = vld [vmem:[%s0] sm:$0xff]
      %v201 = vld [vmem:[%s0 + $0x8] sm:$0xf]
      %v202 = vld [vmem:[%s192] sm:$0xff]
      %v203 = vld [vmem:[%s192 + $0x8] sm:$0xff]
      %v204 = vld [vmem:[%s192 + $0x10] sm:$0xff]
      %v205 = vld [vmem:[%s192 + $0x18] sm:$0xff]
      %v206 = vld [vmem:[%s192 + $0x20] sm:$0xff]
      %v207 = vld [vmem:[%s192 + $0x28] sm:$0xff]
      %v208 = vld [vmem:[%s192 + $0x30] sm:$0xff]
      %v209 = vld [vmem:[%s192 + $0x38] sm:$0xff]
      %v210 = vld [vmem:[%s192 + $0x40] sm:$0xff]
      %v211 = vld [vmem:[%s192 + $0x48] sm:$0xff]
      %v212 = vld [vmem:[%s192 + $0x50] sm:$0xff]
      %v213 = vld [vmem:[%s192 + $0x58] sm:$0xff]
      %v214 = vld [vmem:[%s192 + $0x60] sm:$0xff]
      %v215 = vld [vmem:[%s192 + $0x68] sm:$0xff]
      %v216 = vld [vmem:[%s192 + $0x70] sm:$0xff]
      %v217 = vld [vmem:[%s192 + $0x78] sm:$0xff]
      %v218 = vld [vmem:[%s192 + $0x80] sm:$0xff]
      %v219 = vld [vmem:[%s192 + $0x88] sm:$0xff]
      %v220 = vld [vmem:[%s192 + $0x90] sm:$0xff]
      %v221 = vld [vmem:[%s192 + $0x98] sm:$0xff]
      %v222 = vld [vmem:[%s192 + $0xa0] sm:$0xff]
      %v223 = vld [vmem:[%s192 + $0xa8] sm:$0xff]
      %v224 = vld [vmem:[%s192 + $0xb0] sm:$0xff]
      %v225 = vld [vmem:[%s192 + $0xb8] sm:$0xff]
      %v226 = vld [vmem:[%s192 + $0xc0] sm:$0xff]
      %v227 = vld [vmem:[%s192 + $0xc8] sm:$0xff]
      %v228 = vld [vmem:[%s192 + $0xd0] sm:$0xff]
      %v229 = vld [vmem:[%s192 + $0xd8] sm:$0xff]
      %v230 = vld [vmem:[%s192 + $0xe0] sm:$0xff]
      %v231 = vld [vmem:[%s192 + $0xe8] sm:$0xff]
      %v232 = vld [vmem:[%s192 + $0xf0] sm:$0xff]
      %v233 = vld [vmem:[%s192 + $0xf8] sm:$0xff]
      %v234 = vld [vmem:[%s192 + $0x100] sm:$0xff]
      %v235 = vld [vmem:[%s192 + $0x108] sm:$0xff]
      %v236 = vld [vmem:[%s192 + $0x110] sm:$0xff]
      %v237 = vld [vmem:[%s192 + $0x118] sm:$0xff]
      %v238 = vld [vmem:[%s192 + $0x120] sm:$0xff]
      %v239 = vld [vmem:[%s192 + $0x128] sm:$0xf]
      %v240 = vld [vmem:[%s2] sm:$0xf]
      %242 = vset.pattern.permute.xlu0 0
      %243 = vperm.xlu0 %242, %v240
      %v244 = vpop.permute.xlu0 %243
      %248 = vst [vmem:[#allocation1] ss:$2 sm:$0xff] %v200
      %s249 = scalar_lea.vmem [#allocation1], 16
      %250 = vst [vmem:[%s249] ss:$2 sm:$0xff] %v201
      %v251 = vld.sshfl [vmem:[#allocation1] sm:$0xff pattern:$0x75316420]
      %v252 = vld.sshfl [vmem:[#allocation1 + $0x8] sm:$0xff pattern:$0x75316420]
      %v253 = vld.sshfl [vmem:[#allocation1 + $0x10] sm:$0xff pattern:$0x75316420]
      %vm256 = vcmask 359424
      %v257 = vsel %vm256, %v253, 0
      %vm259 = vcmask 1043456
      %v261 = vsel %vm259, %v239, 0
      %263 = vmatpush.msra.mxu0 %v217
      %264 = vmatpush.msra.mxu0 %v216
      %265 = vmatpush.msra.mxu0 %v215
      %266 = vmatpush.msra.mxu0 %v214
      %267 = vmatpush.msra.mxu0 %v213
      %268 = vmatpush.msra.mxu0 %v212
      %269 = vmatpush.msra.mxu0 %v211
      %270 = vmatpush.msra.mxu0 %v210
      %271 = vmatpush.msra.mxu0 %v209
      %272 = vmatpush.msra.mxu0 %v208
      %273 = vmatpush.msra.mxu0 %v207
      %274 = vmatpush.msra.mxu0 %v206
      %275 = vmatpush.msra.mxu0 %v205
      %276 = vmatpush.msra.mxu0 %v204
      %277 = vmatpush.msra.mxu0 %v203
      %278 = vmatpush.msra.mxu0 %v202
      %279 = vmatmul.f32.gmra.mxu0 %v251
      %v280 = vpop.f32.mrf.mxu0
      %v281 = vadd.f32 %v244, %v280
      %282 = vdwg.mxu0
      %283 = vmatpush.msra.mxu0 %v233
      %284 = vmatpush.msra.mxu0 %v232
      %285 = vmatpush.msra.mxu0 %v231
      %286 = vmatpush.msra.mxu0 %v230
      %287 = vmatpush.msra.mxu0 %v229
      %288 = vmatpush.msra.mxu0 %v228
      %289 = vmatpush.msra.mxu0 %v227
      %290 = vmatpush.msra.mxu0 %v226
      %291 = vmatpush.msra.mxu0 %v225
      %292 = vmatpush.msra.mxu0 %v224
      %293 = vmatpush.msra.mxu0 %v223
      %294 = vmatpush.msra.mxu0 %v222
      %295 = vmatpush.msra.mxu0 %v221
      %296 = vmatpush.msra.mxu0 %v220
      %297 = vmatpush.msra.mxu0 %v219
      %298 = vmatpush.msra.mxu0 %v218
      %299 = vmatmul.f32.gmra.mxu0 %v252
      %v300 = vpop.f32.mrf.mxu0
      %v301 = vadd.f32 %v281, %v300
      %302 = vdwg.mxu0
      %303 = vmatpush.msra.mxu0 0.0
      %304 = vmatpush.msra.mxu0 0.0
      %305 = vmatpush.msra.mxu0 0.0
      %306 = vmatpush.msra.mxu0 0.0
      %307 = vmatpush.msra.mxu0 0.0
      %308 = vmatpush.msra.mxu0 0.0
      %309 = vmatpush.msra.mxu0 0.0
      %310 = vmatpush.msra.mxu0 0.0
      %311 = vmatpush.msra.mxu0 0.0
      %312 = vmatpush.msra.mxu0 0.0
      %313 = vmatpush.msra.mxu0 %v261
      %314 = vmatpush.msra.mxu0 %v238
      %315 = vmatpush.msra.mxu0 %v237
      %316 = vmatpush.msra.mxu0 %v236
      %317 = vmatpush.msra.mxu0 %v235
      %318 = vmatpush.msra.mxu0 %v234
      %319 = vmatmul.f32.gmra.mxu0 %v257
      %v320 = vpop.f32.mrf.mxu0
      %v321 = vadd.f32 %v301, %v320
      %322 = vdwg.mxu0
      %v323 = vmin.f32 %v321, 0.0
      %v324 = vmul.f32 %v323, 1.442695
      %v325 = vpow.pop %v324
      %v326 = vsub.f32 %v325, 1.0
      %v327 = vmul.f32 %v326, 1.6732632
      %vm328 = vcmp.gt.f32.partialorder %v321, 0.0
      %v329 = vsel %vm328, %v321, %v327
      %v330 = vmul.f32 %v329, 1.050701
      %vm331 = vcmask 125952
      %332 = vst.msk [vmem:[%s199] sm:$0xf] %vm331, %v330
      %p333 = scmp.lt.s32.totalorder %s18, 1
      %s334 = scalar_select %p333, %s18, 1
      %p335 = scmp.lt.s32.totalorder %s19, 0
      %s336 = scalar_select %p335, %s19, 0
      %s337 = sadd.s32 %s336, %s334
      %s338 = smul.addr %s337, 4
      %s339 = scalar_lea.vmem %s3, %s338
      // Predicated region
      $region33: #{residual_network_forward.36} parent=31 // pred_check
        %p340 = pneg %p116
      $region34: #{residual_network_forward.36} parent=31 // pred_check_branch
        %342 = sbr.rel (%p340) target = $region36
      $region35: #{residual_network_forward.36} parent=31 // pred_region
        _
      $region36: #{residual_network_forward.36} parent=31 // pred_fallthru
        _
    $region32: #{residual_network_forward.36} parent=5 // pred_fallthru
      _
    %p343 = scmp.le.s32.totalorder 2, %s9
    // Predicated region
    $region37: #{residual_network_forward.36} parent=5 // pred_check
      %p344 = pneg %p343
    $region38: #{residual_network_forward.36} parent=5 // pred_check_branch
      %346 = sbr.rel (%p344) target = $region40
    $region39: #{residual_network_forward.36} parent=5 // pred_region
      %s347 = ssub.s32 %s9, 2
      // Predicated region
      $region41: #{residual_network_forward.36} parent=39 // pred_check
        %p348 = pneg %p122
      $region42: #{residual_network_forward.36} parent=39 // pred_check_branch
        %350 = sbr.rel (%p348) target = $region44
      $region43: #{residual_network_forward.36} parent=39 // pred_region
        %p351 = scmp.lt.s32.totalorder %s20, 1
        %s352 = scalar_select %p351, %s20, 1
        %p353 = scmp.lt.s32.totalorder %s21, 0
        %s354 = scalar_select %p353, %s21, 0
        %s355 = sadd.s32 %s354, %s352
        %s356 = smul.addr %s355, 4
        %s357 = scalar_lea.vmem %s3, %s356
      $region44: #{residual_network_forward.36} parent=39 // pred_fallthru
        _
    $region40: #{residual_network_forward.36} parent=5 // pred_fallthru
      _
  $region6: #{residual_network_forward.36} parent=0 // loop_footer
    %s13 = sadd.s32 1, %s9
  $region7: #{residual_network_forward.36} parent=0 // loop_footer_branch
    %8 = sbr.rel target = $region3
  $region8: #{residual_network_forward.36} parent=0 // loop_exit
    _

// kernel: residual_network_forward.37
$region0: #{residual_network_forward.37}
  #allocation0 [shape = 'u32[]', space=smem, size = 0x4, offset = 0x4, fixed_abs, tag = 'smem constant byte address 0x4 - core index']
  #allocation1 [shape = 'u32[72,128]{1,0:T(1,128)}', space=vmem, size = 0x9000, scoped, tag = 'internal scratch']
  %s0 = inlined_call_operand.vmem [shape: f32[4,12], index: 0, kind: input, shape index: {}]
  %s1 = inlined_call_operand.vmem [shape: f32[2,12,256], index: 1, kind: input, shape index: {}]
  %s2 = inlined_call_operand.vmem [shape: f32[4,1], index: 2, kind: input, shape index: {}]
  %s3 = inlined_call_operand.vmem [shape: f32[2,4,256], index: 3, kind: output, shape index: {}]
  %s4 = sld [smem:[#allocation0]]
  $region45: #{residual_network_forward.37} parent=0
    _
  %s6 = ssub.s32 1, %s4
  %s7 = scalar_select 0, %s6, %s4
  loop: start=0, step=1, limit=4
  $region2: #{residual_network_forward.37} parent=0 // loop_pre_header
    _
  $region3: #{residual_network_forward.37} parent=0 // loop_header
    %s9 = sphi 0, %s13
    %p10 = scmp.ge.s32.totalorder %s9, 4
    %s16 = sphi 0, %s28
    %s17 = sphi 0, %s24
    %s18 = sphi 0, %s16
    %s19 = sphi 0, %s17
    %s20 = sphi 0, %s18
    %s21 = sphi 0, %s19
    %s29 = sphi 0, %s29
    %s31 = sphi 0, %s29
    %s32 = sphi 0, %s31
    %s46 = sphi 0, %s32
    %s54 = sphi 0, %s56
    %s57 = sphi 0, %s54
    %s58 = sphi 0, %s57
    %s74 = sphi 0, %s58
    %s78 = sphi 0, %s78
    %s80 = sphi 0, %s78
    %s81 = sphi 0, %s80
    %s95 = sphi 0, %s81
    %s103 = sphi 0, %s105
    %s106 = sphi 0, %s103
    %s107 = sphi 0, %s106
    %s123 = sphi 0, %s107
  $region4: #{residual_network_forward.37} parent=0 // loop_header_branch
    %12 = sbr.rel (%p10) target = $region8
  $region5: #{residual_network_forward.37} parent=0 // loop_body
    %s14 = ssub.s32 %s9, 1
    %s15 = ssub.s32 %s9, 2
    %s22 = sadd.s32 1, %s17
    %p23 = scmp.ge.s32.totalorder %s22, 1
    %s24 = scalar_select %p23, 0, %s22
    %s25 = sadd.s32 1, %s16
    %s26 = scalar_select %p23, %s25, %s16
    %p27 = scmp.ge.s32.totalorder %s26, 2
    %s28 = scalar_select %p27, 0, %s26
    %s30 = sadd.s32 %s29, 1
    %p33 = scmp.eq.s32.totalorder %s9, 1
    %p34 = scmp.ne.s32.totalorder %s29, %s31
    %p35 = scmp.eq.s32.totalorder %s9, 0
    %p36 = por %p34, %p35
    %p37 = scmp.ne.s32.totalorder %s29, %s31
    %p38 = scmp.eq.s32.totalorder %s14, 1
    %p39 = por %p37, %p38
    %p40 = scmp.ne.s32.totalorder %s31, %s32
    %p41 = scmp.eq.s32.totalorder %s14, 0
    %p42 = por %p40, %p41
    %p43 = scmp.ne.s32.totalorder %s31, %s32
    %p44 = scmp.eq.s32.totalorder %s15, 1
    %p45 = por %p43, %p44
    %p47 = scmp.ne.s32.totalorder %s32, %s46
    %p48 = scmp.eq.s32.totalorder %s15, 0
    %p49 = por %p47, %p48
    %s50 = ssub.s32 %s16, %s28
    %s51 = ssub.s32 %s17, %s24
    %s52 = sor.u32 %s50, %s51
    %p53 = scmp.eq.s32.totalorder %s52, 0
    %s55 = sadd.s32 %s54, 1
    %s56 = scalar_select %p53, %s54, %s55
    %p59 = pneg %p53
    %p60 = scmp.eq.s32.totalorder %s9, 1
    %p61 = por %p59, %p60
    %p62 = scmp.ne.s32.totalorder %s54, %s57
    %p63 = scmp.eq.s32.totalorder %s9, 0
    %p64 = por %p62, %p63
    %p65 = scmp.ne.s32.totalorder %s54, %s57
    %p66 = scmp.eq.s32.totalorder %s14, 1
    %p67 = por %p65, %p66
    %p68 = scmp.ne.s32.totalorder %s57, %s58
    %p69 = scmp.eq.s32.totalorder %s14, 0
    %p70 = por %p68, %p69
    %p71 = scmp.ne.s32.totalorder %s57, %s58
    %p72 = scmp.eq.s32.totalorder %s15, 1
    %p73 = por %p71, %p72
    %p75 = scmp.ne.s32.totalorder %s58, %s74
    %p76 = scmp.eq.s32.totalorder %s15, 0
    %p77 = por %p75, %p76
    %s79 = sadd.s32 %s78, 1
    %p82 = scmp.eq.s32.totalorder %s9, 1
    %p83 = scmp.ne.s32.totalorder %s78, %s80
    %p84 = scmp.eq.s32.totalorder %s9, 0
    %p85 = por %p83, %p84
    %p86 = scmp.ne.s32.totalorder %s78, %s80
    %p87 = scmp.eq.s32.totalorder %s14, 1
    %p88 = por %p86, %p87
    %p89 = scmp.ne.s32.totalorder %s80, %s81
    %p90 = scmp.eq.s32.totalorder %s14, 0
    %p91 = por %p89, %p90
    %p92 = scmp.ne.s32.totalorder %s80, %s81
    %p93 = scmp.eq.s32.totalorder %s15, 1
    %p94 = por %p92, %p93
    %p96 = scmp.ne.s32.totalorder %s81, %s95
    %p97 = scmp.eq.s32.totalorder %s15, 0
    %p98 = por %p96, %p97
    %s99 = ssub.s32 %s16, %s28
    %s100 = ssub.s32 %s17, %s24
    %s101 = sor.u32 %s99, %s100
    %p102 = scmp.eq.s32.totalorder %s101, 0
    %s104 = sadd.s32 %s103, 1
    %s105 = scalar_select %p102, %s103, %s104
    %p108 = pneg %p102
    %p109 = scmp.eq.s32.totalorder %s9, 1
    %p110 = por %p108, %p109
    %p111 = scmp.ne.s32.totalorder %s103, %s106
    %p112 = scmp.eq.s32.totalorder %s9, 0
    %p113 = por %p111, %p112
    %p114 = scmp.ne.s32.totalorder %s103, %s106
    %p115 = scmp.eq.s32.totalorder %s14, 1
    %p116 = por %p114, %p115
    %p117 = scmp.ne.s32.totalorder %s106, %s107
    %p118 = scmp.eq.s32.totalorder %s14, 0
    %p119 = por %p117, %p118
    %p120 = scmp.ne.s32.totalorder %s106, %s107
    %p121 = scmp.eq.s32.totalorder %s15, 1
    %p122 = por %p120, %p121
    %p124 = scmp.ne.s32.totalorder %s107, %s123
    %p125 = scmp.eq.s32.totalorder %s15, 0
    %p126 = por %p124, %p125
    %p127 = scmp.le.s32.totalorder 1, %s9
    %p128 = scmp.lt.s32.totalorder %s9, 3
    %p129 = pnand %p127, %p128
    %p130 = pneg %p129
    // Predicated region
    $region9: #{residual_network_forward.37} parent=5 // pred_check
      _
    $region10: #{residual_network_forward.37} parent=5 // pred_check_branch
      %132 = sbr.rel (%p129) target = $region12
    $region11: #{residual_network_forward.37} parent=5 // pred_region
      %s133 = ssub.s32 %s9, 1
      // Predicated region
      $region13: #{residual_network_forward.37} parent=11 // pred_check
        %p134 = pneg %p42
      $region14: #{residual_network_forward.37} parent=11 // pred_check_branch
        %136 = sbr.rel (%p134) target = $region16
      $region15: #{residual_network_forward.37} parent=11 // pred_region
        _
      $region16: #{residual_network_forward.37} parent=11 // pred_fallthru
        _
      // Predicated region
      $region17: #{residual_network_forward.37} parent=11 // pred_check
        %p137 = pneg %p91
      $region18: #{residual_network_forward.37} parent=11 // pred_check_branch
        %139 = sbr.rel (%p137) target = $region20
      $region19: #{residual_network_forward.37} parent=11 // pred_region
        _
      $region20: #{residual_network_forward.37} parent=11 // pred_fallthru
        _
    $region12: #{residual_network_forward.37} parent=5 // pred_fallthru
      _
    %p140 = scmp.lt.s32.totalorder %s9, 2
    // Predicated region
    $region21: #{residual_network_forward.37} parent=5 // pred_check
      %p141 = pneg %p140
    $region22: #{residual_network_forward.37} parent=5 // pred_check_branch
      %143 = sbr.rel (%p141) target = $region24
    $region23: #{residual_network_forward.37} parent=5 // pred_region
      // Predicated region
      $region25: #{residual_network_forward.37} parent=23 // pred_check
        %p144 = pneg %p64
      $region26: #{residual_network_forward.37} parent=23 // pred_check_branch
        %146 = sbr.rel (%p144) target = $region28
      $region27: #{residual_network_forward.37} parent=23 // pred_region
        %s147 = smul.u32 2, %s17
        %p148 = scmp.lt.s32.totalorder %s16, 1
        %s149 = scalar_select %p148, %s16, 1
        %p150 = scmp.lt.s32.totalorder %s147, 1
        %s151 = scalar_select %p150, %s147, 1
        %s152 = smul.addr %s149, 4
        %s153 = sadd.s32 %s151, %s152
        %s154 = smul.addr %s153, 8
        %s155 = scalar_lea.vmem %s1, %s154
        %s156 = smul.u32 2, %s17
      $region28: #{residual_network_forward.37} parent=23 // pred_fallthru
        _
    $region24: #{residual_network_forward.37} parent=5 // pred_fallthru
      _
    %p157 = scmp.le.s32.totalorder 1, %s9
    %p158 = scmp.lt.s32.totalorder %s9, 3
    %p159 = pnand %p157, %p158
    %p160 = pneg %p159
    // Predicated region
    $region29: #{residual_network_forward.37} parent=5 // pred_check
      _
    $region30: #{residual_network_forward.37} parent=5 // pred_check_branch
      %162 = sbr.rel (%p159) target = $region32
    $region31: #{residual_network_forward.37} parent=5 // pred_region
      %s163 = ssub.s32 %s9, 1
      %p164 = pneg %p42
      %p165 = pneg %p39
      %s166 = smul.u32 2, %s19
      %p167 = scmp.lt.s32.totalorder %s18, 1
      %s168 = scalar_select %p167, %s18, 1
      %p169 = scmp.lt.s32.totalorder %s166, 1
      %s170 = scalar_select %p169, %s166, 1
      %s171 = smul.addr %s168, 4
      %s172 = sadd.s32 %s170, %s171
      %s173 = smul.addr %s172, 8
      %s174 = scalar_lea.vmem %s1, %s173
      %p175 = pneg %p70
      %p176 = pneg %p67
      %p177 = pneg %p91
      %p178 = pneg %p88
      %p179 = pneg %p119
      %p180 = pneg %p116
      %s181 = smul.u32 2, %s19
      %p182 = scmp.lt.s32.totalorder %s18, 1
      %s183 = scalar_select %p182, %s18, 1
      %p184 = scmp.lt.s32.totalorder %s181, 1
      %s185 = scalar_select %p184, %s181, 1
      %s186 = smul.addr %s183, 2
      %s187 = sadd.s32 %s185, %s186
      %s188 = smul.addr %s187, 4
      %s189 = scalar_lea.vmem %s3, %s188
      %s190 = smul.u32 2, %s19
      %p191 = scmp.lt.s32.totalorder %s18, 1
      %s192 = scalar_select %p191, %s18, 1
      %p193 = scmp.lt.s32.totalorder %s190, 1
      %s194 = scalar_select %p193, %s190, 1
      %s195 = smul.addr %s192, 4
      %s196 = sadd.s32 %s194, %s195
      %s197 = smul.addr %s196, 8
      %s198 = scalar_lea.vmem %s1, %s197
      %s199 = smul.u32 2, %s19
      %s200 = smul.u32 2, %s19
      %p201 = scmp.lt.s32.totalorder %s18, 1
      %s202 = scalar_select %p201, %s18, 1
      %p203 = scmp.lt.s32.totalorder %s200, 1
      %s204 = scalar_select %p203, %s200, 1
      %s205 = smul.addr %s202, 2
      %s206 = sadd.s32 %s204, %s205
      %s207 = smul.addr %s206, 4
      %s208 = scalar_lea.vmem %s3, %s207
      %s209 = smul.u32 2, %s19
      %v210 = vld [vmem:[%s0] sm:$0xf]
      %v211 = vld [vmem:[%s198] sm:$0xff]
      %v212 = vld [vmem:[%s198 + $0x8] sm:$0xff]
      %v213 = vld [vmem:[%s198 + $0x10] sm:$0xf]
      %v214 = vld [vmem:[%s198 + $0x18] sm:$0xf]
      %v215 = vld [vmem:[%s2] sm:$0xf]
      %217 = vset.pattern.permute.xlu0 0
      %218 = vperm.xlu0 %217, %v215
      %v219 = vpop.permute.xlu0 %218
      %vm221 = vcmask 97280
      %v223 = vsel %vm221, %v210, 0
      %vm225 = vcmask 1043456
      %v227 = vsel %vm225, %v213, 0
      %v230 = vsel %vm225, %v214, 0
      %232 = vmatpush.msra.mxu0 0.0
      %233 = vmatpush.msra.mxu0 0.0
      %234 = vmatpush.msra.mxu0 0.0
      %235 = vmatpush.msra.mxu0 0.0
      %236 = vmatpush.msra.mxu0 0.0
      %237 = vmatpush.msra.mxu0 0.0
      %238 = vmatpush.msra.mxu0 0.0
      %239 = vmatpush.msra.mxu0 0.0
      %240 = vmatpush.msra.mxu0 0.0
      %241 = vmatpush.msra.mxu0 0.0
      %242 = vmatpush.msra.mxu0 0.0
      %243 = vmatpush.msra.mxu0 0.0
      %244 = vmatpush.msra.mxu0 0.0
      %245 = vmatpush.msra.mxu0 0.0
      %246 = vmatpush.msra.mxu0 %v227
      %247 = vmatpush.msra.mxu0 %v211
      %248 = vmatmul.f32.gmra.mxu0 %v223
      %v249 = vpop.f32.mrf.mxu0
      %v250 = vadd.f32 %v219, %v249
      %251 = vdwg.mxu0
      %252 = vmatpush.msra.mxu0 0.0
      %253 = vmatpush.msra.mxu0 0.0
      %254 = vmatpush.msra.mxu0 0.0
      %255 = vmatpush.msra.mxu0 0.0
      %256 = vmatpush.msra.mxu0 0.0
      %257 = vmatpush.msra.mxu0 0.0
      %258 = vmatpush.msra.mxu0 0.0
      %259 = vmatpush.msra.mxu0 0.0
      %260 = vmatpush.msra.mxu0 0.0
      %261 = vmatpush.msra.mxu0 0.0
      %262 = vmatpush.msra.mxu0 0.0
      %263 = vmatpush.msra.mxu0 0.0
      %264 = vmatpush.msra.mxu0 0.0
      %265 = vmatpush.msra.mxu0 0.0
      %266 = vmatpush.msra.mxu0 %v230
      %267 = vmatpush.msra.mxu0 %v212
      %268 = vmatmul.f32.gmra.mxu0 %v223
      %v269 = vpop.f32.mrf.mxu0
      %v270 = vadd.f32 %v219, %v269
      %271 = vdwg.mxu0
      %v272 = vmin.f32 %v250, 0.0
      %v273 = vmin.f32 %v270, 0.0
      %v274 = vmul.f32 %v272, 1.442695
      %v275 = vpow.pop %v274
      %v276 = vmul.f32 %v273, 1.442695
      %v277 = vpow.pop %v276
      %v278 = vsub.f32 %v275, 1.0
      %v279 = vsub.f32 %v277, 1.0
      %v280 = vmul.f32 %v278, 1.6732632
      %v281 = vmul.f32 %v279, 1.6732632
      %vm282 = vcmp.gt.f32.partialorder %v250, 0.0
      %vm283 = vcmp.gt.f32.partialorder %v270, 0.0
      %v284 = vsel %vm282, %v250, %v280
      %v285 = vsel %vm283, %v270, %v281
      %v286 = vmul.f32 %v284, 1.050701
      %v287 = vmul.f32 %v285, 1.050701
      %v290 = vrot.slane %v287, 4
      %v291 = vsel %vm225, %v286, %v290
      %293 = vst [vmem:[%s208] sm:$0xff] %v291
      %s294 = smul.u32 2, %s19
      %p295 = scmp.lt.s32.totalorder %s18, 1
      %s296 = scalar_select %p295, %s18, 1
      %p297 = scmp.lt.s32.totalorder %s294, 1
      %s298 = scalar_select %p297, %s294, 1
      %s299 = smul.addr %s296, 2
      %s300 = sadd.s32 %s298, %s299
      %s301 = smul.addr %s300, 4
      %s302 = scalar_lea.vmem %s3, %s301
      // Predicated region
      $region33: #{residual_network_forward.37} parent=31 // pred_check
        %p303 = pneg %p116
      $region34: #{residual_network_forward.37} parent=31 // pred_check_branch
        %305 = sbr.rel (%p303) target = $region36
      $region35: #{residual_network_forward.37} parent=31 // pred_region
        %s306 = smul.u32 2, %s19
      $region36: #{residual_network_forward.37} parent=31 // pred_fallthru
        _
    $region32: #{residual_network_forward.37} parent=5 // pred_fallthru
      _
    %p307 = scmp.le.s32.totalorder 2, %s9
    // Predicated region
    $region37: #{residual_network_forward.37} parent=5 // pred_check
      %p308 = pneg %p307
    $region38: #{residual_network_forward.37} parent=5 // pred_check_branch
      %310 = sbr.rel (%p308) target = $region40
    $region39: #{residual_network_forward.37} parent=5 // pred_region
      %s311 = ssub.s32 %s9, 2
      // Predicated region
      $region41: #{residual_network_forward.37} parent=39 // pred_check
        %p312 = pneg %p122
      $region42: #{residual_network_forward.37} parent=39 // pred_check_branch
        %314 = sbr.rel (%p312) target = $region44
      $region43: #{residual_network_forward.37} parent=39 // pred_region
        %s315 = smul.u32 2, %s21
        %p316 = scmp.lt.s32.totalorder %s20, 1
        %s317 = scalar_select %p316, %s20, 1
        %p318 = scmp.lt.s32.totalorder %s315, 1
        %s319 = scalar_select %p318, %s315, 1
        %s320 = smul.addr %s317, 2
        %s321 = sadd.s32 %s319, %s320
        %s322 = smul.addr %s321, 4
        %s323 = scalar_lea.vmem %s3, %s322
      $region44: #{residual_network_forward.37} parent=39 // pred_fallthru
        _
    $region40: #{residual_network_forward.37} parent=5 // pred_fallthru
      _
  $region6: #{residual_network_forward.37} parent=0 // loop_footer
    %s13 = sadd.s32 1, %s9
  $region7: #{residual_network_forward.37} parent=0 // loop_footer_branch
    %8 = sbr.rel target = $region3
  $region8: #{residual_network_forward.37} parent=0 // loop_exit
    _

// kernel: residual_network_forward.63
$region0: #{residual_network_forward.63}
  #allocation0 [shape = 'u32[]', space=smem, size = 0x4, offset = 0x4, fixed_abs, tag = 'smem constant byte address 0x4 - core index']
  #allocation1 [shape = 'u32[72,128]{1,0:T(1,128)}', space=vmem, size = 0x9000, scoped, tag = 'internal scratch']
  #allocation2 [shape = 'f32[1,1]{1,0:T(1,128)S(1)}', space=vmem, size = 0x200, scoped, tag = 'scoped memory for residual_network_forward.63']
  %s0 = inlined_call_operand.vmem [shape: f32[1,108], index: 0, kind: input, shape index: {}]
  %s1 = inlined_call_operand.vmem [shape: f32[2,108,256], index: 1, kind: input, shape index: {}]
  %s2 = inlined_call_operand.<no memory space> [shape: f32[1,1], index: 2, kind: input, shape index: {}]
  %s3 = inlined_call_operand.vmem [shape: f32[2,1,256], index: 3, kind: output, shape index: {}]
  %s4 = sld [smem:[#allocation0]]
  $region45: #{residual_network_forward.63} parent=0
    _
  %s6 = ssub.s32 1, %s4
  %s7 = scalar_select 0, %s6, %s4
  %v8 = vstv %s2
  %9 = vst [vmem:[#allocation2] sm:$0x1] %v8
  loop: start=0, step=1, limit=4
  $region2: #{residual_network_forward.63} parent=0 // loop_pre_header
    _
  $region3: #{residual_network_forward.63} parent=0 // loop_header
    %s11 = sphi 0, %s15
    %p12 = scmp.ge.s32.totalorder %s11, 4
    %s18 = sphi 0, %s30
    %s19 = sphi 0, %s26
    %s20 = sphi 0, %s18
    %s21 = sphi 0, %s19
    %s22 = sphi 0, %s20
    %s23 = sphi 0, %s21
    %s31 = sphi 0, %s31
    %s33 = sphi 0, %s31
    %s34 = sphi 0, %s33
    %s48 = sphi 0, %s34
    %s56 = sphi 0, %s58
    %s59 = sphi 0, %s56
    %s60 = sphi 0, %s59
    %s76 = sphi 0, %s60
    %s80 = sphi 0, %s80
    %s82 = sphi 0, %s80
    %s83 = sphi 0, %s82
    %s97 = sphi 0, %s83
    %s105 = sphi 0, %s107
    %s108 = sphi 0, %s105
    %s109 = sphi 0, %s108
    %s125 = sphi 0, %s109
  $region4: #{residual_network_forward.63} parent=0 // loop_header_branch
    %14 = sbr.rel (%p12) target = $region8
  $region5: #{residual_network_forward.63} parent=0 // loop_body
    %s16 = ssub.s32 %s11, 1
    %s17 = ssub.s32 %s11, 2
    %s24 = sadd.s32 1, %s19
    %p25 = scmp.ge.s32.totalorder %s24, 1
    %s26 = scalar_select %p25, 0, %s24
    %s27 = sadd.s32 1, %s18
    %s28 = scalar_select %p25, %s27, %s18
    %p29 = scmp.ge.s32.totalorder %s28, 2
    %s30 = scalar_select %p29, 0, %s28
    %s32 = sadd.s32 %s31, 1
    %p35 = scmp.eq.s32.totalorder %s11, 1
    %p36 = scmp.ne.s32.totalorder %s31, %s33
    %p37 = scmp.eq.s32.totalorder %s11, 0
    %p38 = por %p36, %p37
    %p39 = scmp.ne.s32.totalorder %s31, %s33
    %p40 = scmp.eq.s32.totalorder %s16, 1
    %p41 = por %p39, %p40
    %p42 = scmp.ne.s32.totalorder %s33, %s34
    %p43 = scmp.eq.s32.totalorder %s16, 0
    %p44 = por %p42, %p43
    %p45 = scmp.ne.s32.totalorder %s33, %s34
    %p46 = scmp.eq.s32.totalorder %s17, 1
    %p47 = por %p45, %p46
    %p49 = scmp.ne.s32.totalorder %s34, %s48
    %p50 = scmp.eq.s32.totalorder %s17, 0
    %p51 = por %p49, %p50
    %s52 = ssub.s32 %s18, %s30
    %s53 = ssub.s32 %s19, %s26
    %s54 = sor.u32 %s52, %s53
    %p55 = scmp.eq.s32.totalorder %s54, 0
    %s57 = sadd.s32 %s56, 1
    %s58 = scalar_select %p55, %s56, %s57
    %p61 = pneg %p55
    %p62 = scmp.eq.s32.totalorder %s11, 1
    %p63 = por %p61, %p62
    %p64 = scmp.ne.s32.totalorder %s56, %s59
    %p65 = scmp.eq.s32.totalorder %s11, 0
    %p66 = por %p64, %p65
    %p67 = scmp.ne.s32.totalorder %s56, %s59
    %p68 = scmp.eq.s32.totalorder %s16, 1
    %p69 = por %p67, %p68
    %p70 = scmp.ne.s32.totalorder %s59, %s60
    %p71 = scmp.eq.s32.totalorder %s16, 0
    %p72 = por %p70, %p71
    %p73 = scmp.ne.s32.totalorder %s59, %s60
    %p74 = scmp.eq.s32.totalorder %s17, 1
    %p75 = por %p73, %p74
    %p77 = scmp.ne.s32.totalorder %s60, %s76
    %p78 = scmp.eq.s32.totalorder %s17, 0
    %p79 = por %p77, %p78
    %s81 = sadd.s32 %s80, 1
    %p84 = scmp.eq.s32.totalorder %s11, 1
    %p85 = scmp.ne.s32.totalorder %s80, %s82
    %p86 = scmp.eq.s32.totalorder %s11, 0
    %p87 = por %p85, %p86
    %p88 = scmp.ne.s32.totalorder %s80, %s82
    %p89 = scmp.eq.s32.totalorder %s16, 1
    %p90 = por %p88, %p89
    %p91 = scmp.ne.s32.totalorder %s82, %s83
    %p92 = scmp.eq.s32.totalorder %s16, 0
    %p93 = por %p91, %p92
    %p94 = scmp.ne.s32.totalorder %s82, %s83
    %p95 = scmp.eq.s32.totalorder %s17, 1
    %p96 = por %p94, %p95
    %p98 = scmp.ne.s32.totalorder %s83, %s97
    %p99 = scmp.eq.s32.totalorder %s17, 0
    %p100 = por %p98, %p99
    %s101 = ssub.s32 %s18, %s30
    %s102 = ssub.s32 %s19, %s26
    %s103 = sor.u32 %s101, %s102
    %p104 = scmp.eq.s32.totalorder %s103, 0
    %s106 = sadd.s32 %s105, 1
    %s107 = scalar_select %p104, %s105, %s106
    %p110 = pneg %p104
    %p111 = scmp.eq.s32.totalorder %s11, 1
    %p112 = por %p110, %p111
    %p113 = scmp.ne.s32.totalorder %s105, %s108
    %p114 = scmp.eq.s32.totalorder %s11, 0
    %p115 = por %p113, %p114
    %p116 = scmp.ne.s32.totalorder %s105, %s108
    %p117 = scmp.eq.s32.totalorder %s16, 1
    %p118 = por %p116, %p117
    %p119 = scmp.ne.s32.totalorder %s108, %s109
    %p120 = scmp.eq.s32.totalorder %s16, 0
    %p121 = por %p119, %p120
    %p122 = scmp.ne.s32.totalorder %s108, %s109
    %p123 = scmp.eq.s32.totalorder %s17, 1
    %p124 = por %p122, %p123
    %p126 = scmp.ne.s32.totalorder %s109, %s125
    %p127 = scmp.eq.s32.totalorder %s17, 0
    %p128 = por %p126, %p127
    %p129 = scmp.le.s32.totalorder 1, %s11
    %p130 = scmp.lt.s32.totalorder %s11, 3
    %p131 = pnand %p129, %p130
    %p132 = pneg %p131
    // Predicated region
    $region9: #{residual_network_forward.63} parent=5 // pred_check
      _
    $region10: #{residual_network_forward.63} parent=5 // pred_check_branch
      %134 = sbr.rel (%p131) target = $region12
    $region11: #{residual_network_forward.63} parent=5 // pred_region
      %s135 = ssub.s32 %s11, 1
      // Predicated region
      $region13: #{residual_network_forward.63} parent=11 // pred_check
        %p136 = pneg %p44
      $region14: #{residual_network_forward.63} parent=11 // pred_check_branch
        %138 = sbr.rel (%p136) target = $region16
      $region15: #{residual_network_forward.63} parent=11 // pred_region
        _
      $region16: #{residual_network_forward.63} parent=11 // pred_fallthru
        _
      // Predicated region
      $region17: #{residual_network_forward.63} parent=11 // pred_check
        %p139 = pneg %p93
      $region18: #{residual_network_forward.63} parent=11 // pred_check_branch
        %141 = sbr.rel (%p139) target = $region20
      $region19: #{residual_network_forward.63} parent=11 // pred_region
        _
      $region20: #{residual_network_forward.63} parent=11 // pred_fallthru
        _
    $region12: #{residual_network_forward.63} parent=5 // pred_fallthru
      _
    %p142 = scmp.lt.s32.totalorder %s11, 2
    // Predicated region
    $region21: #{residual_network_forward.63} parent=5 // pred_check
      %p143 = pneg %p142
    $region22: #{residual_network_forward.63} parent=5 // pred_check_branch
      %145 = sbr.rel (%p143) target = $region24
    $region23: #{residual_network_forward.63} parent=5 // pred_region
      // Predicated region
      $region25: #{residual_network_forward.63} parent=23 // pred_check
        %p146 = pneg %p66
      $region26: #{residual_network_forward.63} parent=23 // pred_check_branch
        %148 = sbr.rel (%p146) target = $region28
      $region27: #{residual_network_forward.63} parent=23 // pred_region
        %s149 = smul.u32 2, %s19
        %p150 = scmp.lt.s32.totalorder %s18, 1
        %s151 = scalar_select %p150, %s18, 1
        %p152 = scmp.lt.s32.totalorder %s149, 1
        %s153 = scalar_select %p152, %s149, 1
        %s154 = smul.addr %s151, 28
        %s155 = sadd.s32 %s153, %s154
        %s156 = smul.addr %s155, 8
        %s157 = scalar_lea.vmem %s1, %s156
        %s158 = smul.u32 2, %s19
      $region28: #{residual_network_forward.63} parent=23 // pred_fallthru
        _
    $region24: #{residual_network_forward.63} parent=5 // pred_fallthru
      _
    %p159 = scmp.le.s32.totalorder 1, %s11
    %p160 = scmp.lt.s32.totalorder %s11, 3
    %p161 = pnand %p159, %p160
    %p162 = pneg %p161
    // Predicated region
    $region29: #{residual_network_forward.63} parent=5 // pred_check
      _
    $region30: #{residual_network_forward.63} parent=5 // pred_check_branch
      %164 = sbr.rel (%p161) target = $region32
    $region31: #{residual_network_forward.63} parent=5 // pred_region
      %s165 = ssub.s32 %s11, 1
      %p166 = pneg %p44
      %p167 = pneg %p41
      %s168 = smul.u32 2, %s21
      %p169 = scmp.lt.s32.totalorder %s20, 1
      %s170 = scalar_select %p169, %s20, 1
      %p171 = scmp.lt.s32.totalorder %s168, 1
      %s172 = scalar_select %p171, %s168, 1
      %s173 = smul.addr %s170, 28
      %s174 = sadd.s32 %s172, %s173
      %s175 = smul.addr %s174, 8
      %s176 = scalar_lea.vmem %s1, %s175
      %p177 = pneg %p72
      %p178 = pneg %p69
      %p179 = pneg %p93
      %p180 = pneg %p90
      %p181 = pneg %p121
      %p182 = pneg %p118
      %s183 = smul.u32 2, %s21
      %p184 = scmp.lt.s32.totalorder %s20, 1
      %s185 = scalar_select %p184, %s20, 1
      %p186 = scmp.lt.s32.totalorder %s183, 1
      %s187 = scalar_select %p186, %s183, 1
      %s188 = smul.addr %s185, 2
      %s189 = sadd.s32 %s187, %s188
      %s190 = scalar_lea.vmem %s3, %s189
      %s191 = smul.u32 2, %s21
      %p192 = scmp.lt.s32.totalorder %s20, 1
      %s193 = scalar_select %p192, %s20, 1
      %p194 = scmp.lt.s32.totalorder %s191, 1
      %s195 = scalar_select %p194, %s191, 1
      %s196 = smul.addr %s193, 28
      %s197 = sadd.s32 %s195, %s196
      %s198 = smul.addr %s197, 8
      %s199 = scalar_lea.vmem %s1, %s198
      %s200 = smul.u32 2, %s21
      %s201 = smul.u32 2, %s21
      %p202 = scmp.lt.s32.totalorder %s20, 1
      %s203 = scalar_select %p202, %s20, 1
      %p204 = scmp.lt.s32.totalorder %s201, 1
      %s205 = scalar_select %p204, %s201, 1
      %s206 = smul.addr %s203, 2
      %s207 = sadd.s32 %s205, %s206
      %s208 = scalar_lea.vmem %s3, %s207
      %s209 = smul.u32 2, %s21
      %v210 = vld [vmem:[%s0] sm:$0x1]
      %v211 = vld [vmem:[%s199] sm:$0xff]
      %v212 = vld [vmem:[%s199 + $0x8] sm:$0xff]
      %v213 = vld [vmem:[%s199 + $0x10] sm:$0xff]
      %v214 = vld [vmem:[%s199 + $0x18] sm:$0xff]
      %v215 = vld [vmem:[%s199 + $0x20] sm:$0xff]
      %v216 = vld [vmem:[%s199 + $0x28] sm:$0xff]
      %v217 = vld [vmem:[%s199 + $0x30] sm:$0xff]
      %v218 = vld [vmem:[%s199 + $0x38] sm:$0xff]
      %v219 = vld [vmem:[%s199 + $0x40] sm:$0xff]
      %v220 = vld [vmem:[%s199 + $0x48] sm:$0xff]
      %v221 = vld [vmem:[%s199 + $0x50] sm:$0xff]
      %v222 = vld [vmem:[%s199 + $0x58] sm:$0xff]
      %v223 = vld [vmem:[%s199 + $0x60] sm:$0xff]
      %v224 = vld [vmem:[%s199 + $0x68] sm:$0xff]
      %v225 = vld [vmem:[%s199 + $0x70] sm:$0xff]
      %v226 = vld [vmem:[%s199 + $0x78] sm:$0xff]
      %v227 = vld [vmem:[%s199 + $0x80] sm:$0xff]
      %v228 = vld [vmem:[%s199 + $0x88] sm:$0xff]
      %v229 = vld [vmem:[%s199 + $0x90] sm:$0xff]
      %v230 = vld [vmem:[%s199 + $0x98] sm:$0xff]
      %v231 = vld [vmem:[%s199 + $0xa0] sm:$0xff]
      %v232 = vld [vmem:[%s199 + $0xa8] sm:$0xff]
      %v233 = vld [vmem:[%s199 + $0xb0] sm:$0xff]
      %v234 = vld [vmem:[%s199 + $0xb8] sm:$0xff]
      %v235 = vld [vmem:[%s199 + $0xc0] sm:$0xff]
      %v236 = vld [vmem:[%s199 + $0xc8] sm:$0xff]
      %v237 = vld [vmem:[%s199 + $0xd0] sm:$0xf]
      %v238 = vld [vmem:[%s199 + $0xd8] sm:$0xf]
      %v239 = vld [vmem:[#allocation2] sm:$0x1]
      %241 = vset.pattern.permute.xlu0 0
      %242 = vperm.xlu0 %241, %v239
      %v243 = vpop.permute.xlu0 %242
      %v245 = vperm.slane %v243, 0
      %vm246 = vcmask 883712
      %v248 = vsel %vm246, %v210, 0
      %vm250 = vcmask 1043456
      %v252 = vsel %vm250, %v237, 0
      %v255 = vsel %vm250, %v238, 0
      %257 = vmatpush.msra.mxu0 0.0
      %258 = vmatpush.msra.mxu0 0.0
      %259 = vmatpush.msra.mxu0 %v252
      %260 = vmatpush.msra.mxu0 %v235
      %261 = vmatpush.msra.mxu0 %v233
      %262 = vmatpush.msra.mxu0 %v231
      %263 = vmatpush.msra.mxu0 %v229
      %264 = vmatpush.msra.mxu0 %v227
      %265 = vmatpush.msra.mxu0 %v225
      %266 = vmatpush.msra.mxu0 %v223
      %267 = vmatpush.msra.mxu0 %v221
      %268 = vmatpush.msra.mxu0 %v219
      %269 = vmatpush.msra.mxu0 %v217
      %270 = vmatpush.msra.mxu0 %v215
      %271 = vmatpush.msra.mxu0 %v213
      %272 = vmatpush.msra.mxu0 %v211
      %273 = vmatmul.f32.gmra.mxu0 %v248
      %v274 = vpop.f32.mrf.mxu0
      %v275 = vadd.f32 %v245, %v274
      %276 = vdwg.mxu0
      %277 = vmatpush.msra.mxu0 0.0
      %278 = vmatpush.msra.mxu0 0.0
      %279 = vmatpush.msra.mxu0 %v255
      %280 = vmatpush.msra.mxu0 %v236
      %281 = vmatpush.msra.mxu0 %v234
      %282 = vmatpush.msra.mxu0 %v232
      %283 = vmatpush.msra.mxu0 %v230
      %284 = vmatpush.msra.mxu0 %v228
      %285 = vmatpush.msra.mxu0 %v226
      %286 = vmatpush.msra.mxu0 %v224
      %287 = vmatpush.msra.mxu0 %v222
      %288 = vmatpush.msra.mxu0 %v220
      %289 = vmatpush.msra.mxu0 %v218
      %290 = vmatpush.msra.mxu0 %v216
      %291 = vmatpush.msra.mxu0 %v214
      %292 = vmatpush.msra.mxu0 %v212
      %293 = vmatmul.f32.gmra.mxu0 %v248
      %v294 = vpop.f32.mrf.mxu0
      %v295 = vadd.f32 %v245, %v294
      %296 = vdwg.mxu0
      %v299 = vrot.slane %v295, 7
      %vm300 = vcmask 1040384
      %v301 = vsel %vm300, %v275, %v299
      %v303 = vlaneseq
      %vm304 = vcmp.ge.s32.totalorder %v303, 0
      %vm305 = vcmp.lt.s32.totalorder %v303, 256
      %vm306 = vmand %vm304, %vm305
      %307 = vst.msk [vmem:[%s208] sm:$0x3] %vm306, %v301
      %s308 = smul.u32 2, %s21
      %p309 = scmp.lt.s32.totalorder %s20, 1
      %s310 = scalar_select %p309, %s20, 1
      %p311 = scmp.lt.s32.totalorder %s308, 1
      %s312 = scalar_select %p311, %s308, 1
      %s313 = smul.addr %s310, 2
      %s314 = sadd.s32 %s312, %s313
      %s315 = scalar_lea.vmem %s3, %s314
      // Predicated region
      $region33: #{residual_network_forward.63} parent=31 // pred_check
        %p316 = pneg %p118
      $region34: #{residual_network_forward.63} parent=31 // pred_check_branch
        %318 = sbr.rel (%p316) target = $region36
      $region35: #{residual_network_forward.63} parent=31 // pred_region
        %s319 = smul.u32 2, %s21
      $region36: #{residual_network_forward.63} parent=31 // pred_fallthru
        _
    $region32: #{residual_network_forward.63} parent=5 // pred_fallthru
      _
    %p320 = scmp.le.s32.totalorder 2, %s11
    // Predicated region
    $region37: #{residual_network_forward.63} parent=5 // pred_check
      %p321 = pneg %p320
    $region38: #{residual_network_forward.63} parent=5 // pred_check_branch
      %323 = sbr.rel (%p321) target = $region40
    $region39: #{residual_network_forward.63} parent=5 // pred_region
      %s324 = ssub.s32 %s11, 2
      // Predicated region
      $region41: #{residual_network_forward.63} parent=39 // pred_check
        %p325 = pneg %p124
      $region42: #{residual_network_forward.63} parent=39 // pred_check_branch
        %327 = sbr.rel (%p325) target = $region44
      $region43: #{residual_network_forward.63} parent=39 // pred_region
        %s328 = smul.u32 2, %s23
        %p329 = scmp.lt.s32.totalorder %s22, 1
        %s330 = scalar_select %p329, %s22, 1
        %p331 = scmp.lt.s32.totalorder %s328, 1
        %s332 = scalar_select %p331, %s328, 1
        %s333 = smul.addr %s330, 2
        %s334 = sadd.s32 %s332, %s333
        %s335 = scalar_lea.vmem %s3, %s334
      $region44: #{residual_network_forward.63} parent=39 // pred_fallthru
        _
    $region40: #{residual_network_forward.63} parent=5 // pred_fallthru
      _
  $region6: #{residual_network_forward.63} parent=0 // loop_footer
    %s15 = sadd.s32 1, %s11
  $region7: #{residual_network_forward.63} parent=0 // loop_footer_branch
    %10 = sbr.rel target = $region3
  $region8: #{residual_network_forward.63} parent=0 // loop_exit
    _

</llo_original>
